<compile_context>
chip_gen: v5e
topology: v5e:2x2
jax: 0.10.0
libtpu: 0.0.40
codegen_flags: <defaults>
</compile_context>

<pallas_src>
import math
import jax
import jax.numpy as jnp
from jax import lax
from jax.experimental import pallas as pl
from jax.experimental.pallas import tpu as pltpu

NEG_INF = -1e30
BBOX_XFORM_CLIP = math.log(1000.0 / 16.0)


def _round_up(x, m):
    return ((x + m - 1) // m) * m


# ----------------------------------------------------------------------------
# Pallas kernel 1: fused RPN head for one feature level
#   t = relu(conv3x3(x)); [cls | bbox] = t @ [Wcls | Wbbox]
# ----------------------------------------------------------------------------
def rpn_head_level(x_nchw, w3, b3, whead, bhead, A, row_target=256):
    N, Cin, H, W = x_nchw.shape
    Ch = w3.shape[-1]
    C5 = whead.shape[-1]                    # A + 4A

    Wp8 = _round_up(W, 8)                   # compute width (8-aligned)
    TH = H                                  # smallest row tile giving M >= row_target
    for cand in range(1, H + 1):
        if H % cand == 0 and cand * Wp8 >= row_target:
            TH = cand
            break
    NT = H // TH
    TILE = TH * Wp8                         # matmul M dim / output lane dim
    WpK = Wp8 + 2                           # tile width incl. conv halo

    # NHWC + zero halo; materialize per-row-tile haloed views so each grid step
    # gets a private (TH+2, WpK, Cin) block (double-buffered by BlockSpec).
    x = jnp.transpose(x_nchw, (0, 2, 3, 1))
    xpad = jnp.pad(x, ((0, 0), (1, 1), (1, 1 + Wp8 - W), (0, 0)))
    xh = jnp.stack([xpad[:, r * TH: r * TH + TH + 2] for r in range(NT)], axis=1)
    # xh: (N, NT, TH+2, WpK, Cin)

    def kernel(xh_ref, w3_ref, b3_ref, wh_ref, bh_ref, out_ref, acc_ref):
        acc_ref[...] = jnp.zeros_like(acc_ref)
        for dy in range(3):                 # 9 taps, each a (TILE, Cin)@(Cin, Ch) matmul
            for dx in range(3):
                patch = xh_ref[0, 0, dy:dy + TH, dx:dx + Wp8, :].reshape(TILE, Cin)
                acc_ref[...] += jnp.dot(patch, w3_ref[dy * 3 + dx],
                                        preferred_element_type=jnp.float32)
        t = jnp.maximum(acc_ref[...] + b3_ref[...], 0.0)                 # (TILE, Ch)
        head = jnp.dot(t, wh_ref[...],
                       preferred_element_type=jnp.float32) + bh_ref[...]  # (TILE, C5)
        out_ref[0, 0] = head.T                                            # lane-dense

    cls_box = pl.pallas_call(
        kernel,
        out_shape=jax.ShapeDtypeStruct((N, NT, C5, TILE), jnp.float32),
        grid=(N, NT),
        in_specs=[
            pl.BlockSpec((1, 1, TH + 2, WpK, Cin), lambda n, r: (n, r, 0, 0, 0)),
            pl.BlockSpec((9, Cin, Ch), lambda n, r: (0, 0, 0)),
            pl.BlockSpec((1, Ch), lambda n, r: (0, 0)),
            pl.BlockSpec((Ch, C5), lambda n, r: (0, 0)),
            pl.BlockSpec((1, C5), lambda n, r: (0, 0)),
        ],
        out_specs=pl.BlockSpec((1, 1, C5, TILE), lambda n, r: (n, r, 0, 0)),
        scratch_shapes=[pltpu.VMEM((TILE, Ch), jnp.float32)],
        compiler_params=pltpu.CompilerParams(
            dimension_semantics=("parallel", "parallel")),
    )(xh, w3, b3, whead, bhead)

    # permute_and_flatten equivalent (XLA layout plumbing, outside the kernel)
    out = cls_box.reshape(N, NT, C5, TH, Wp8)[..., :W]       # drop width padding
    cls = jnp.transpose(out[:, :, :A], (0, 1, 3, 4, 2)).reshape(N, H * W * A)
    box = out[:, :, A:].reshape(N, NT, A, 4, TH, W)
    box = jnp.transpose(box, (0, 1, 4, 5, 2, 3)).reshape(N, H * W * A, 4)
    return cls, box


# ----------------------------------------------------------------------------
# Pallas kernel 2: fused decode + sigmoid + clip + small-box/score/pad masking
# operating on the post-top-k selection (coordinate-major, padded to TP%128==0)
# ----------------------------------------------------------------------------
def proposal_filter_pallas(deltas_sel, anchors_sel, obj_sel, img_h, img_w,
                           min_size, score_thresh, t_valid):
    N, TP, _ = deltas_sel.shape
    d_t = jnp.transpose(deltas_sel, (0, 2, 1))      # (N, 4, TP)
    a_t = jnp.transpose(anchors_sel, (0, 2, 1))     # (N, 4, TP)
    o3 = obj_sel.reshape(N, 1, TP)

    def kernel(d_ref, a_ref, o_ref, ob_ref, os_ref):
        d = d_ref[0]                                 # (4, TP)
        a = a_ref[0]                                 # (4, TP)
        widths = a[2:3] - a[0:1]
        heights = a[3:4] - a[1:2]
        ctr_x = a[0:1] + 0.5 * widths
        ctr_y = a[1:2] + 0.5 * heights
        dw = jnp.minimum(d[2:3], BBOX_XFORM_CLIP)
        dh = jnp.minimum(d[3:4], BBOX_XFORM_CLIP)
        pcx = d[0:1] * widths + ctr_x
        pcy = d[1:2] * heights + ctr_y
        pw = jnp.exp(dw) * widths
        ph = jnp.exp(dh) * heights
        x1 = jnp.clip(pcx - 0.5 * pw, 0.0, img_w)
        y1 = jnp.clip(pcy - 0.5 * ph, 0.0, img_h)
        x2 = jnp.clip(pcx + 0.5 * pw, 0.0, img_w)
        y2 = jnp.clip(pcy + 0.5 * ph, 0.0, img_h)
        # sigmoid via EUP exp + approximate reciprocal (divide off the VALU)
        scores = pl.reciprocal(1.0 + jnp.exp(-o_ref[0]), approx=True)     # (1, TP)
        col = lax.broadcasted_iota(jnp.int32, scores.shape, 1)
        keep = ((x2 - x1) >= min_size) & ((y2 - y1) >= min_size)
        keep = keep & (scores >= score_thresh) & (col < t_valid)
        ob_ref[0, 0:1] = x1
        ob_ref[0, 1:2] = y1
        ob_ref[0, 2:3] = x2
        ob_ref[0, 3:4] = y2
        os_ref[0] = jnp.where(keep, scores, NEG_INF)

    boxes_t, scores = pl.pallas_call(
        kernel,
        out_shape=(jax.ShapeDtypeStruct((N, 4, TP), jnp.float32),
                   jax.ShapeDtypeStruct((N, 1, TP), jnp.float32)),
        grid=(N,),
        in_specs=[pl.BlockSpec((1, 4, TP), lambda n: (n, 0, 0)),
                  pl.BlockSpec((1, 4, TP), lambda n: (n, 0, 0)),
                  pl.BlockSpec((1, 1, TP), lambda n: (n, 0, 0))],
        out_specs=(pl.BlockSpec((1, 4, TP), lambda n: (n, 0, 0)),
                   pl.BlockSpec((1, 1, TP), lambda n: (n, 0, 0))),
        compiler_params=pltpu.CompilerParams(dimension_semantics=("parallel",)),
    )(d_t, a_t, o3)
    return jnp.transpose(boxes_t, (0, 2, 1)), scores.reshape(N, TP)


# ----------------------------------------------------------------------------
# Pallas kernel 3: pairwise IoU -> suppression mask (row-tiled), computed once
# so the sequential greedy NMS loop only does argmax + masking per step.
# ----------------------------------------------------------------------------
def iou_suppress_pallas(boxes_off, nms_thresh, row_tile=64):
    N, TP, _ = boxes_off.shape
    TR = min(row_tile, TP)
    bc = jnp.transpose(boxes_off, (0, 2, 1))        # (N, 4, TP)

    def kernel(br_ref, bc_ref, sup_ref):
        br = br_ref[0]                               # (TR, 4)
        c = bc_ref[0]                                # (4, TP)
        x1i, y1i = br[:, 0:1], br[:, 1:2]
        x2i, y2i = br[:, 2:3], br[:, 3:4]
        x1j, y1j, x2j, y2j = c[0:1], c[1:2], c[2:3], c[3:4]
        iw = jnp.maximum(jnp.minimum(x2i, x2j) - jnp.maximum(x1i, x1j), 0.0)
        ih = jnp.maximum(jnp.minimum(y2i, y2j) - jnp.maximum(y1i, y1j), 0.0)
        inter = iw * ih
        area_i = (x2i - x1i) * (y2i - y1i)
        area_j = (x2j - x1j) * (y2j - y1j)
        union = area_i + area_j - inter
        iou = jnp.where(union > 0.0, inter / union, 0.0)
        sup_ref[0] = (iou > nms_thresh).astype(jnp.float32)

    return pl.pallas_call(
        kernel,
        out_shape=jax.ShapeDtypeStruct((N, TP, TP), jnp.float32),
        grid=(N, TP // TR),
        in_specs=[pl.BlockSpec((1, TR, 4), lambda n, r: (n, r, 0)),
                  pl.BlockSpec((1, 4, TP), lambda n, r: (n, 0, 0))],
        out_specs=pl.BlockSpec((1, TR, TP), lambda n, r: (n, r, 0)),
        compiler_params=pltpu.CompilerParams(
            dimension_semantics=("parallel", "parallel")),
    )(boxes_off, bc)


# ----------------------------------------------------------------------------
# Glue: anchor generation (torchvision AnchorGenerator semantics)
# ----------------------------------------------------------------------------
def generate_cell_anchors(scales, aspect_ratios):
    scales = jnp.asarray(scales, jnp.float32)
    ar = jnp.asarray(aspect_ratios, jnp.float32)
    h_ratios = jnp.sqrt(ar)
    w_ratios = 1.0 / h_ratios
    ws = (w_ratios[:, None] * scales[None, :]).reshape(-1)
    hs = (h_ratios[:, None] * scales[None, :]).reshape(-1)
    base = jnp.stack([-ws, -hs, ws, hs], axis=1) / 2.0
    return jnp.round(base)


def grid_anchors(feat_h, feat_w, stride_h, stride_w, cell_anchors):
    shifts_x = jnp.arange(feat_w, dtype=jnp.float32) * stride_w
    shifts_y = jnp.arange(feat_h, dtype=jnp.float32) * stride_h
    sy, sx = jnp.meshgrid(shifts_y, shifts_x, indexing="ij")
    sx = sx.reshape(-1)
    sy = sy.reshape(-1)
    shifts = jnp.stack([sx, sy, sx, sy], axis=1)                 # (H*W, 4)
    anchors = shifts[:, None, :] + cell_anchors[None, :, :]      # (H*W, A, 4)
    return anchors.reshape(-1, 4)


# ----------------------------------------------------------------------------
# Glue: per-level top-k and greedy batched NMS
# TODO(synk): per-level top-k and the greedy NMS argmax loop are sequential /
# data-dependent with no clean Pallas TPU equivalent; kept in plain JAX (the
# O(T^2) IoU work is hoisted into Pallas kernel 3 above).
# ----------------------------------------------------------------------------
def get_top_n_idx(objectness, num_anchors_per_level, pre_nms_top_n):
    r = []
    offset = 0
    for n in num_anchors_per_level:
        ob = objectness[:, offset:offset + n]
        k = min(pre_nms_top_n, n)
        _, idx = lax.top_k(ob, k)
        r.append(idx + offset)
        offset += n
    return jnp.concatenate(r, axis=1)


def nms_select(boxes, scores, suppress, num_out):
    # boxes (TP,4), scores (TP,) (invalid == NEG_INF), suppress (TP,TP) 0/1
    def body(i, state):
        out_b, out_s, cur = state
        idx = jnp.argmax(cur)
        best = cur[idx]
        valid = best > NEG_INF * 0.5
        out_b = out_b.at[i].set(jnp.where(valid, boxes[idx],
                                          jnp.zeros((4,), jnp.float32)))
        out_s = out_s.at[i].set(jnp.where(valid, best, NEG_INF))
        kill = valid & (suppress[idx] > 0.5)
        cur = jnp.where(kill, NEG_INF, cur)
        cur = cur.at[idx].set(NEG_INF)
        return out_b, out_s, cur

    init = (jnp.zeros((num_out, 4), jnp.float32),
            jnp.full((num_out,), NEG_INF, jnp.float32),
            scores)
    out_b, out_s, _ = lax.fori_loop(0, num_out, body, init)
    return out_b, out_s


# ----------------------------------------------------------------------------
# Full RPN forward (inference: losses = {})
# ----------------------------------------------------------------------------
def rpn_forward(features, params, image_size, config):
    N = features[0].shape[0]
    A = config["num_anchors"]
    img_h, img_w = image_size

    # fuse cls / bbox 1x1 convs into one head matmul
    whead = jnp.concatenate([params["cls_w"], params["bbox_w"]], axis=1)   # (Ch, 5A)
    bhead = jnp.concatenate([params["cls_b"], params["bbox_b"]], axis=1)   # (1, 5A)

    cls_levels, box_levels = [], []
    num_anchors_per_level, anchors_levels = [], []
    for lvl, x in enumerate(features):
        _, _, H, W = x.shape
        cls_l, box_l = rpn_head_level(x, params["conv_w"], params["conv_b"],
                                      whead, bhead, A)
        cls_levels.append(cls_l)
        box_levels.append(box_l)
        num_anchors_per_level.append(H * W * A)
        cell = generate_cell_anchors(config["sizes"][lvl],
                                     config["aspect_ratios"][lvl])
        anchors_levels.append(grid_anchors(H, W, img_h // H, img_w // W, cell))

    objectness = jnp.concatenate(cls_levels, axis=1)          # (N, K)
    pred_deltas = jnp.concatenate(box_levels, axis=1)         # (N, K, 4)
    anchors_img = jnp.concatenate(anchors_levels, axis=0)     # (K, 4) - not tiled per image

    levels = jnp.concatenate([jnp.full((n,), i, jnp.int32)
                              for i, n in enumerate(num_anchors_per_level)])

    # per-level top-k on raw objectness, then gather ONLY the selection
    top_n_idx = get_top_n_idx(objectness, num_anchors_per_level,
                              config["pre_nms_top_n"])                     # (N, T)
    T = top_n_idx.shape[1]
    obj_sel = jnp.take_along_axis(objectness, top_n_idx, axis=1)           # (N, T)
    lvl_sel = levels[top_n_idx]                                            # (N, T)
    idx3 = jnp.broadcast_to(top_n_idx[:, :, None], (N, T, 4))
    deltas_sel = jnp.take_along_axis(pred_deltas, idx3, axis=1)            # (N, T, 4)
    anchors_sel = anchors_img[top_n_idx]                                   # (N, T, 4)

    # pad selection to a multiple of 128 lanes
    TP = _round_up(T, 128)
    pad = TP - T
    deltas_sel = jnp.pad(deltas_sel, ((0, 0), (0, pad), (0, 0)))
    anchors_sel = jnp.pad(anchors_sel, ((0, 0), (0, pad), (0, 0)))
    obj_sel = jnp.pad(obj_sel, ((0, 0), (0, pad)))
    lvl_sel = jnp.pad(lvl_sel, ((0, 0), (0, pad)))

    boxes_clipped, scores = proposal_filter_pallas(
        deltas_sel, anchors_sel, obj_sel, float(img_h), float(img_w),
        config["min_size"], config["score_thresh"], T)

    # batched NMS: per-level coordinate offsets, precomputed suppression matrix
    max_coord = jnp.max(boxes_clipped, axis=(1, 2))                        # (N,)
    offs = lvl_sel.astype(jnp.float32) * (max_coord[:, None] + 1.0)        # (N, TP)
    boxes_off = boxes_clipped + offs[:, :, None]
    suppress = iou_suppress_pallas(boxes_off, config["nms_thresh"])        # (N, TP, TP)

    final_boxes, final_scores = jax.vmap(
        lambda b, s, sup: nms_select(b, s, sup, config["post_nms_top_n"]))(
        boxes_clipped, scores, suppress)
    # Padded outputs: scores == NEG_INF marks padding slots (PyTorch returns
    # variable-length lists; JAX requires static shapes).
    return final_boxes, final_scores, {}


if __name__ == "__main__":
    key = jax.random.PRNGKey(0)
    kf0, kf1, kw1, kw2, kw3 = jax.random.split(key, 5)

    N, Cin = 2, 16
    Ch = Cin            # RPNHead keeps in_channels
    A = 3               # anchors per location (3 aspect ratios x 1 size)

    # Two feature levels in PyTorch NCHW layout
    features = [jax.random.normal(kf0, (N, Cin, 16, 16), jnp.float32),
                jax.random.normal(kf1, (N, Cin, 8, 8), jnp.float32)]

    # Deterministic RPNHead parameters (N(0, 0.01) weights, zero biases),
    # stored directly in kernel layout: conv3x3 -> (9, Cin, Ch), 1x1 -> (Ch, out)
    params = {
        "conv_w": jax.random.normal(kw1, (9, Cin, Ch), jnp.float32) * 0.01,
        "conv_b": jnp.zeros((1, Ch), jnp.float32),
        "cls_w": jax.random.normal(kw2, (Ch, A), jnp.float32) * 0.01,
        "cls_b": jnp.zeros((1, A), jnp.float32),
        "bbox_w": jax.random.normal(kw3, (Ch, 4 * A), jnp.float32) * 0.01,
        "bbox_b": jnp.zeros((1, 4 * A), jnp.float32),
    }

    config = dict(num_anchors=A,
                  sizes=((32.0,), (64.0,)),
                  aspect_ratios=((0.5, 1.0, 2.0), (0.5, 1.0, 2.0)),
                  pre_nms_top_n=200,        # testing
                  post_nms_top_n=50,        # testing
                  nms_thresh=0.7,
                  score_thresh=0.0,
                  min_size=1.0)

    boxes, scores, losses = rpn_forward(features, params, (64, 64), config)
    jax.block_until_ready((boxes, scores))
    assert boxes.shape == (N, config["post_nms_top_n"], 4)
    assert scores.shape == (N, config["post_nms_top_n"])
    print("KERNEL_OK")
</pallas_src>

<mosaic_0001>
module attributes {stable_mosaic.version = 11 : i64} {
  func.func @kernel(%arg0: i32, %arg1: i32, %arg2: memref<1x1x18x18x16xf32, #tpu.memory_space<vmem>>, %arg3: memref<9x16x16xf32, #tpu.memory_space<vmem>>, %arg4: memref<1x16xf32, #tpu.memory_space<vmem>>, %arg5: memref<16x15xf32, #tpu.memory_space<vmem>>, %arg6: memref<1x15xf32, #tpu.memory_space<vmem>>, %arg7: memref<1x1x15x256xf32, #tpu.memory_space<vmem>>, %arg8: memref<256x16xf32, #tpu.memory_space<vmem>>) attributes {dimension_semantics = [#tpu.dimension_semantics<parallel>, #tpu.dimension_semantics<parallel>], iteration_bounds = array<i64: 2, 1>, scalar_prefetch = 0 : i64, scratch_operands = 1 : i64, tpu.core_type = #tpu.core_type<tc>, window_params = [{transform_indices = @transform_0, window_bounds = array<i64: 1, 1, 18, 18, 16>}, {pipeline_mode = #tpu.pipeline_mode<synchronous>, transform_indices = @transform_1, window_bounds = array<i64: 9, 16, 16>}, {pipeline_mode = #tpu.pipeline_mode<synchronous>, transform_indices = @transform_2, window_bounds = array<i64: 1, 16>}, {pipeline_mode = #tpu.pipeline_mode<synchronous>, transform_indices = @transform_3, window_bounds = array<i64: 16, 15>}, {pipeline_mode = #tpu.pipeline_mode<synchronous>, transform_indices = @transform_4, window_bounds = array<i64: 1, 15>}, {transform_indices = @transform_5, window_bounds = array<i64: 1, 1, 15, 256>}]} {
    %cst = arith.constant 0.000000e+00 : f32
    %0 = vector.broadcast %cst : f32 to vector<256x16xf32>
    %c0 = arith.constant 0 : index
    %c0_0 = arith.constant 0 : index
    %1 = vector.load %arg8[%c0, %c0_0] : memref<256x16xf32, #tpu.memory_space<vmem>>, vector<256x16xf32>
    tpu.vector_store %arg8[%c0, %c0_0], %0 {strides = array<i32>} : memref<256x16xf32, #tpu.memory_space<vmem>>, vector<256x16xf32>,
    %c0_1 = arith.constant 0 : index
    %c0_2 = arith.constant 0 : index
    %c0_3 = arith.constant 0 : index
    %c0_4 = arith.constant 0 : index
    %c0_5 = arith.constant 0 : index
    %2 = vector.load %arg2[%c0_1, %c0_2, %c0_3, %c0_4, %c0_5] : memref<1x1x18x18x16xf32, #tpu.memory_space<vmem>>, vector<1x1x16x16x16xf32>
    %3 = vector.shape_cast %2 : vector<1x1x16x16x16xf32> to vector<16x16x16xf32>
    %4 = vector.shape_cast %3 : vector<16x16x16xf32> to vector<256x16xf32>
    %c0_6 = arith.constant 0 : index
    %c0_7 = arith.constant 0 : index
    %5 = vector.load %arg8[%c0_6, %c0_7] : memref<256x16xf32, #tpu.memory_space<vmem>>, vector<256x16xf32>
    %c0_8 = arith.constant 0 : index
    %c0_9 = arith.constant 0 : index
    %c0_10 = arith.constant 0 : index
    %6 = vector.load %arg3[%c0_8, %c0_9, %c0_10] : memref<9x16x16xf32, #tpu.memory_space<vmem>>, vector<1x16x16xf32>
    %7 = vector.shape_cast %6 : vector<1x16x16xf32> to vector<16x16xf32>
    %cst_11 = arith.constant dense<0.000000e+00> : vector<256x16xf32>
    %8 = tpu.matmul %4, %7, %cst_11 {dimension_numbers = #tpu.dot_dimension_numbers<[1], [0], [0], [1], [0, 0, 1, 1], [], []>} : vector<256x16xf32>, vector<16x16xf32>, vector<256x16xf32> -> vector<256x16xf32>
    %9 = arith.addf %5, %8 : vector<256x16xf32>
    %c0_12 = arith.constant 0 : index
    %c0_13 = arith.constant 0 : index
    %10 = vector.load %arg8[%c0_12, %c0_13] : memref<256x16xf32, #tpu.memory_space<vmem>>, vector<256x16xf32>
    tpu.vector_store %arg8[%c0_12, %c0_13], %9 {strides = array<i32>} : memref<256x16xf32, #tpu.memory_space<vmem>>, vector<256x16xf32>,
    %c0_14 = arith.constant 0 : index
    %c0_15 = arith.constant 0 : index
    %c0_16 = arith.constant 0 : index
    %c1 = arith.constant 1 : index
    %c0_17 = arith.constant 0 : index
    %11 = vector.load %arg2[%c0_14, %c0_15, %c0_16, %c1, %c0_17] : memref<1x1x18x18x16xf32, #tpu.memory_space<vmem>>, vector<1x1x16x16x16xf32>
    %12 = vector.shape_cast %11 : vector<1x1x16x16x16xf32> to vector<16x16x16xf32>
    %13 = vector.shape_cast %12 : vector<16x16x16xf32> to vector<256x16xf32>
    %c0_18 = arith.constant 0 : index
    %c0_19 = arith.constant 0 : index
    %14 = vector.load %arg8[%c0_18, %c0_19] : memref<256x16xf32, #tpu.memory_space<vmem>>, vector<256x16xf32>
    %c1_20 = arith.constant 1 : index
    %c0_21 = arith.constant 0 : index
    %c0_22 = arith.constant 0 : index
    %15 = vector.load %arg3[%c1_20, %c0_21, %c0_22] : memref<9x16x16xf32, #tpu.memory_space<vmem>>, vector<1x16x16xf32>
    %16 = vector.shape_cast %15 : vector<1x16x16xf32> to vector<16x16xf32>
    %cst_23 = arith.constant dense<0.000000e+00> : vector<256x16xf32>
    %17 = tpu.matmul %13, %16, %cst_23 {dimension_numbers = #tpu.dot_dimension_numbers<[1], [0], [0], [1], [0, 0, 1, 1], [], []>} : vector<256x16xf32>, vector<16x16xf32>, vector<256x16xf32> -> vector<256x16xf32>
    %18 = arith.addf %14, %17 : vector<256x16xf32>
    %c0_24 = arith.constant 0 : index
    %c0_25 = arith.constant 0 : index
    %19 = vector.load %arg8[%c0_24, %c0_25] : memref<256x16xf32, #tpu.memory_space<vmem>>, vector<256x16xf32>
    tpu.vector_store %arg8[%c0_24, %c0_25], %18 {strides = array<i32>} : memref<256x16xf32, #tpu.memory_space<vmem>>, vector<256x16xf32>,
    %c0_26 = arith.constant 0 : index
    %c0_27 = arith.constant 0 : index
    %c0_28 = arith.constant 0 : index
    %c2 = arith.constant 2 : index
    %c0_29 = arith.constant 0 : index
    %20 = vector.load %arg2[%c0_26, %c0_27, %c0_28, %c2, %c0_29] : memref<1x1x18x18x16xf32, #tpu.memory_space<vmem>>, vector<1x1x16x16x16xf32>
    %21 = vector.shape_cast %20 : vector<1x1x16x16x16xf32> to vector<16x16x16xf32>
    %22 = vector.shape_cast %21 : vector<16x16x16xf32> to vector<256x16xf32>
    %c0_30 = arith.constant 0 : index
    %c0_31 = arith.constant 0 : index
    %23 = vector.load %arg8[%c0_30, %c0_31] : memref<256x16xf32, #tpu.memory_space<vmem>>, vector<256x16xf32>
    %c2_32 = arith.constant 2 : index
    %c0_33 = arith.constant 0 : index
    %c0_34 = arith.constant 0 : index
    %24 = vector.load %arg3[%c2_32, %c0_33, %c0_34] : memref<9x16x16xf32, #tpu.memory_space<vmem>>, vector<1x16x16xf32>
    %25 = vector.shape_cast %24 : vector<1x16x16xf32> to vector<16x16xf32>
    %cst_35 = arith.constant dense<0.000000e+00> : vector<256x16xf32>
    %26 = tpu.matmul %22, %25, %cst_35 {dimension_numbers = #tpu.dot_dimension_numbers<[1], [0], [0], [1], [0, 0, 1, 1], [], []>} : vector<256x16xf32>, vector<16x16xf32>, vector<256x16xf32> -> vector<256x16xf32>
    %27 = arith.addf %23, %26 : vector<256x16xf32>
    %c0_36 = arith.constant 0 : index
    %c0_37 = arith.constant 0 : index
    %28 = vector.load %arg8[%c0_36, %c0_37] : memref<256x16xf32, #tpu.memory_space<vmem>>, vector<256x16xf32>
    tpu.vector_store %arg8[%c0_36, %c0_37], %27 {strides = array<i32>} : memref<256x16xf32, #tpu.memory_space<vmem>>, vector<256x16xf32>,
    %c0_38 = arith.constant 0 : index
    %c0_39 = arith.constant 0 : index
    %c1_40 = arith.constant 1 : index
    %c0_41 = arith.constant 0 : index
    %c0_42 = arith.constant 0 : index
    %29 = vector.load %arg2[%c0_38, %c0_39, %c1_40, %c0_41, %c0_42] : memref<1x1x18x18x16xf32, #tpu.memory_space<vmem>>, vector<1x1x16x16x16xf32>
    %30 = vector.shape_cast %29 : vector<1x1x16x16x16xf32> to vector<16x16x16xf32>
    %31 = vector.shape_cast %30 : vector<16x16x16xf32> to vector<256x16xf32>
    %c0_43 = arith.constant 0 : index
    %c0_44 = arith.constant 0 : index
    %32 = vector.load %arg8[%c0_43, %c0_44] : memref<256x16xf32, #tpu.memory_space<vmem>>, vector<256x16xf32>
    %c3 = arith.constant 3 : index
    %c0_45 = arith.constant 0 : index
    %c0_46 = arith.constant 0 : index
    %33 = vector.load %arg3[%c3, %c0_45, %c0_46] : memref<9x16x16xf32, #tpu.memory_space<vmem>>, vector<1x16x16xf32>
    %34 = vector.shape_cast %33 : vector<1x16x16xf32> to vector<16x16xf32>
    %cst_47 = arith.constant dense<0.000000e+00> : vector<256x16xf32>
    %35 = tpu.matmul %31, %34, %cst_47 {dimension_numbers = #tpu.dot_dimension_numbers<[1], [0], [0], [1], [0, 0, 1, 1], [], []>} : vector<256x16xf32>, vector<16x16xf32>, vector<256x16xf32> -> vector<256x16xf32>
    %36 = arith.addf %32, %35 : vector<256x16xf32>
    %c0_48 = arith.constant 0 : index
    %c0_49 = arith.constant 0 : index
    %37 = vector.load %arg8[%c0_48, %c0_49] : memref<256x16xf32, #tpu.memory_space<vmem>>, vector<256x16xf32>
    tpu.vector_store %arg8[%c0_48, %c0_49], %36 {strides = array<i32>} : memref<256x16xf32, #tpu.memory_space<vmem>>, vector<256x16xf32>,
    %c0_50 = arith.constant 0 : index
    %c0_51 = arith.constant 0 : index
    %c1_52 = arith.constant 1 : index
    %c1_53 = arith.constant 1 : index
    %c0_54 = arith.constant 0 : index
    %38 = vector.load %arg2[%c0_50, %c0_51, %c1_52, %c1_53, %c0_54] : memref<1x1x18x18x16xf32, #tpu.memory_space<vmem>>, vector<1x1x16x16x16xf32>
    %39 = vector.shape_cast %38 : vector<1x1x16x16x16xf32> to vector<16x16x16xf32>
    %40 = vector.shape_cast %39 : vector<16x16x16xf32> to vector<256x16xf32>
    %c0_55 = arith.constant 0 : index
    %c0_56 = arith.constant 0 : index
    %41 = vector.load %arg8[%c0_55, %c0_56] : memref<256x16xf32, #tpu.memory_space<vmem>>, vector<256x16xf32>
    %c4 = arith.constant 4 : index
    %c0_57 = arith.constant 0 : index
    %c0_58 = arith.constant 0 : index
    %42 = vector.load %arg3[%c4, %c0_57, %c0_58] : memref<9x16x16xf32, #tpu.memory_space<vmem>>, vector<1x16x16xf32>
    %43 = vector.shape_cast %42 : vector<1x16x16xf32> to vector<16x16xf32>
    %cst_59 = arith.constant dense<0.000000e+00> : vector<256x16xf32>
    %44 = tpu.matmul %40, %43, %cst_59 {dimension_numbers = #tpu.dot_dimension_numbers<[1], [0], [0], [1], [0, 0, 1, 1], [], []>} : vector<256x16xf32>, vector<16x16xf32>, vector<256x16xf32> -> vector<256x16xf32>
    %45 = arith.addf %41, %44 : vector<256x16xf32>
    %c0_60 = arith.constant 0 : index
    %c0_61 = arith.constant 0 : index
    %46 = vector.load %arg8[%c0_60, %c0_61] : memref<256x16xf32, #tpu.memory_space<vmem>>, vector<256x16xf32>
    tpu.vector_store %arg8[%c0_60, %c0_61], %45 {strides = array<i32>} : memref<256x16xf32, #tpu.memory_space<vmem>>, vector<256x16xf32>,
    %c0_62 = arith.constant 0 : index
    %c0_63 = arith.constant 0 : index
    %c1_64 = arith.constant 1 : index
    %c2_65 = arith.constant 2 : index
    %c0_66 = arith.constant 0 : index
    %47 = vector.load %arg2[%c0_62, %c0_63, %c1_64, %c2_65, %c0_66] : memref<1x1x18x18x16xf32, #tpu.memory_space<vmem>>, vector<1x1x16x16x16xf32>
    %48 = vector.shape_cast %47 : vector<1x1x16x16x16xf32> to vector<16x16x16xf32>
    %49 = vector.shape_cast %48 : vector<16x16x16xf32> to vector<256x16xf32>
    %c0_67 = arith.constant 0 : index
    %c0_68 = arith.constant 0 : index
    %50 = vector.load %arg8[%c0_67, %c0_68] : memref<256x16xf32, #tpu.memory_space<vmem>>, vector<256x16xf32>
    %c5 = arith.constant 5 : index
    %c0_69 = arith.constant 0 : index
    %c0_70 = arith.constant 0 : index
    %51 = vector.load %arg3[%c5, %c0_69, %c0_70] : memref<9x16x16xf32, #tpu.memory_space<vmem>>, vector<1x16x16xf32>
    %52 = vector.shape_cast %51 : vector<1x16x16xf32> to vector<16x16xf32>
    %cst_71 = arith.constant dense<0.000000e+00> : vector<256x16xf32>
    %53 = tpu.matmul %49, %52, %cst_71 {dimension_numbers = #tpu.dot_dimension_numbers<[1], [0], [0], [1], [0, 0, 1, 1], [], []>} : vector<256x16xf32>, vector<16x16xf32>, vector<256x16xf32> -> vector<256x16xf32>
    %54 = arith.addf %50, %53 : vector<256x16xf32>
    %c0_72 = arith.constant 0 : index
    %c0_73 = arith.constant 0 : index
    %55 = vector.load %arg8[%c0_72, %c0_73] : memref<256x16xf32, #tpu.memory_space<vmem>>, vector<256x16xf32>
    tpu.vector_store %arg8[%c0_72, %c0_73], %54 {strides = array<i32>} : memref<256x16xf32, #tpu.memory_space<vmem>>, vector<256x16xf32>,
    %c0_74 = arith.constant 0 : index
    %c0_75 = arith.constant 0 : index
    %c2_76 = arith.constant 2 : index
    %c0_77 = arith.constant 0 : index
    %c0_78 = arith.constant 0 : index
    %56 = vector.load %arg2[%c0_74, %c0_75, %c2_76, %c0_77, %c0_78] : memref<1x1x18x18x16xf32, #tpu.memory_space<vmem>>, vector<1x1x16x16x16xf32>
    %57 = vector.shape_cast %56 : vector<1x1x16x16x16xf32> to vector<16x16x16xf32>
    %58 = vector.shape_cast %57 : vector<16x16x16xf32> to vector<256x16xf32>
    %c0_79 = arith.constant 0 : index
    %c0_80 = arith.constant 0 : index
    %59 = vector.load %arg8[%c0_79, %c0_80] : memref<256x16xf32, #tpu.memory_space<vmem>>, vector<256x16xf32>
    %c6 = arith.constant 6 : index
    %c0_81 = arith.constant 0 : index
    %c0_82 = arith.constant 0 : index
    %60 = vector.load %arg3[%c6, %c0_81, %c0_82] : memref<9x16x16xf32, #tpu.memory_space<vmem>>, vector<1x16x16xf32>
    %61 = vector.shape_cast %60 : vector<1x16x16xf32> to vector<16x16xf32>
    %cst_83 = arith.constant dense<0.000000e+00> : vector<256x16xf32>
    %62 = tpu.matmul %58, %61, %cst_83 {dimension_numbers = #tpu.dot_dimension_numbers<[1], [0], [0], [1], [0, 0, 1, 1], [], []>} : vector<256x16xf32>, vector<16x16xf32>, vector<256x16xf32> -> vector<256x16xf32>
    %63 = arith.addf %59, %62 : vector<256x16xf32>
    %c0_84 = arith.constant 0 : index
    %c0_85 = arith.constant 0 : index
    %64 = vector.load %arg8[%c0_84, %c0_85] : memref<256x16xf32, #tpu.memory_space<vmem>>, vector<256x16xf32>
    tpu.vector_store %arg8[%c0_84, %c0_85], %63 {strides = array<i32>} : memref<256x16xf32, #tpu.memory_space<vmem>>, vector<256x16xf32>,
    %c0_86 = arith.constant 0 : index
    %c0_87 = arith.constant 0 : index
    %c2_88 = arith.constant 2 : index
    %c1_89 = arith.constant 1 : index
    %c0_90 = arith.constant 0 : index
    %65 = vector.load %arg2[%c0_86, %c0_87, %c2_88, %c1_89, %c0_90] : memref<1x1x18x18x16xf32, #tpu.memory_space<vmem>>, vector<1x1x16x16x16xf32>
    %66 = vector.shape_cast %65 : vector<1x1x16x16x16xf32> to vector<16x16x16xf32>
    %67 = vector.shape_cast %66 : vector<16x16x16xf32> to vector<256x16xf32>
    %c0_91 = arith.constant 0 : index
    %c0_92 = arith.constant 0 : index
    %68 = vector.load %arg8[%c0_91, %c0_92] : memref<256x16xf32, #tpu.memory_space<vmem>>, vector<256x16xf32>
    %c7 = arith.constant 7 : index
    %c0_93 = arith.constant 0 : index
    %c0_94 = arith.constant 0 : index
    %69 = vector.load %arg3[%c7, %c0_93, %c0_94] : memref<9x16x16xf32, #tpu.memory_space<vmem>>, vector<1x16x16xf32>
    %70 = vector.shape_cast %69 : vector<1x16x16xf32> to vector<16x16xf32>
    %cst_95 = arith.constant dense<0.000000e+00> : vector<256x16xf32>
    %71 = tpu.matmul %67, %70, %cst_95 {dimension_numbers = #tpu.dot_dimension_numbers<[1], [0], [0], [1], [0, 0, 1, 1], [], []>} : vector<256x16xf32>, vector<16x16xf32>, vector<256x16xf32> -> vector<256x16xf32>
    %72 = arith.addf %68, %71 : vector<256x16xf32>
    %c0_96 = arith.constant 0 : index
    %c0_97 = arith.constant 0 : index
    %73 = vector.load %arg8[%c0_96, %c0_97] : memref<256x16xf32, #tpu.memory_space<vmem>>, vector<256x16xf32>
    tpu.vector_store %arg8[%c0_96, %c0_97], %72 {strides = array<i32>} : memref<256x16xf32, #tpu.memory_space<vmem>>, vector<256x16xf32>,
    %c0_98 = arith.constant 0 : index
    %c0_99 = arith.constant 0 : index
    %c2_100 = arith.constant 2 : index
    %c2_101 = arith.constant 2 : index
    %c0_102 = arith.constant 0 : index
    %74 = vector.load %arg2[%c0_98, %c0_99, %c2_100, %c2_101, %c0_102] : memref<1x1x18x18x16xf32, #tpu.memory_space<vmem>>, vector<1x1x16x16x16xf32>
    %75 = vector.shape_cast %74 : vector<1x1x16x16x16xf32> to vector<16x16x16xf32>
    %76 = vector.shape_cast %75 : vector<16x16x16xf32> to vector<256x16xf32>
    %c0_103 = arith.constant 0 : index
    %c0_104 = arith.constant 0 : index
    %77 = vector.load %arg8[%c0_103, %c0_104] : memref<256x16xf32, #tpu.memory_space<vmem>>, vector<256x16xf32>
    %c8 = arith.constant 8 : index
    %c0_105 = arith.constant 0 : index
    %c0_106 = arith.constant 0 : index
    %78 = vector.load %arg3[%c8, %c0_105, %c0_106] : memref<9x16x16xf32, #tpu.memory_space<vmem>>, vector<1x16x16xf32>
    %79 = vector.shape_cast %78 : vector<1x16x16xf32> to vector<16x16xf32>
    %cst_107 = arith.constant dense<0.000000e+00> : vector<256x16xf32>
    %80 = tpu.matmul %76, %79, %cst_107 {dimension_numbers = #tpu.dot_dimension_numbers<[1], [0], [0], [1], [0, 0, 1, 1], [], []>} : vector<256x16xf32>, vector<16x16xf32>, vector<256x16xf32> -> vector<256x16xf32>
    %81 = arith.addf %77, %80 : vector<256x16xf32>
    %c0_108 = arith.constant 0 : index
    %c0_109 = arith.constant 0 : index
    %82 = vector.load %arg8[%c0_108, %c0_109] : memref<256x16xf32, #tpu.memory_space<vmem>>, vector<256x16xf32>
    tpu.vector_store %arg8[%c0_108, %c0_109], %81 {strides = array<i32>} : memref<256x16xf32, #tpu.memory_space<vmem>>, vector<256x16xf32>,
    %c0_110 = arith.constant 0 : index
    %c0_111 = arith.constant 0 : index
    %83 = vector.load %arg8[%c0_110, %c0_111] : memref<256x16xf32, #tpu.memory_space<vmem>>, vector<256x16xf32>
    %c0_112 = arith.constant 0 : index
    %c0_113 = arith.constant 0 : index
    %84 = vector.load %arg4[%c0_112, %c0_113] : memref<1x16xf32, #tpu.memory_space<vmem>>, vector<1x16xf32>
    %85 = vector.broadcast %84 : vector<1x16xf32> to vector<256x16xf32>
    %86 = arith.addf %83, %85 : vector<256x16xf32>
    %cst_114 = arith.constant 0.000000e+00 : f32
    %87 = vector.broadcast %cst_114 : f32 to vector<256x16xf32>
    %88 = arith.maximumf %86, %87 : vector<256x16xf32>
    %c0_115 = arith.constant 0 : index
    %c0_116 = arith.constant 0 : index
    %89 = vector.load %arg5[%c0_115, %c0_116] : memref<16x15xf32, #tpu.memory_space<vmem>>, vector<16x15xf32>
    %cst_117 = arith.constant dense<0.000000e+00> : vector<256x15xf32>
    %90 = tpu.matmul %88, %89, %cst_117 {dimension_numbers = #tpu.dot_dimension_numbers<[1], [0], [0], [1], [0, 0, 1, 1], [], []>} : vector<256x16xf32>, vector<16x15xf32>, vector<256x15xf32> -> vector<256x15xf32>
    %c0_118 = arith.constant 0 : index
    %c0_119 = arith.constant 0 : index
    %91 = vector.load %arg6[%c0_118, %c0_119] : memref<1x15xf32, #tpu.memory_space<vmem>>, vector<1x15xf32>
    %92 = vector.broadcast %91 : vector<1x15xf32> to vector<256x15xf32>
    %93 = arith.addf %90, %92 : vector<256x15xf32>
    %94 = tpu.transpose %93, [1, 0] : vector<256x15xf32> -> vector<15x256xf32>
    %c0_120 = arith.constant 0 : index
    %c0_121 = arith.constant 0 : index
    %c0_122 = arith.constant 0 : index
    %c0_123 = arith.constant 0 : index
    %95 = vector.load %arg7[%c0_120, %c0_121, %c0_122, %c0_123] : memref<1x1x15x256xf32, #tpu.memory_space<vmem>>, vector<1x1x15x256xf32>
    %96 = vector.shape_cast %95 : vector<1x1x15x256xf32> to vector<15x256xf32>
    %97 = vector.shape_cast %94 : vector<15x256xf32> to vector<1x1x15x256xf32>
    tpu.vector_store %arg7[%c0_120, %c0_121, %c0_122, %c0_123], %97 {strides = array<i32>} : memref<1x1x15x256xf32, #tpu.memory_space<vmem>>, vector<1x1x15x256xf32>,
    return
  }
  func.func @transform_0(%arg0: i32, %arg1: i32) -> (i32, i32, i32, i32, i32) {
    %c0_i32 = arith.constant 0 : i32
    %c0_i32_0 = arith.constant 0 : i32
    %c0_i32_1 = arith.constant 0 : i32
    %c0_i32_2 = arith.constant 0 : i32
    return %arg0, %arg1, %c0_i32, %c0_i32_0, %c0_i32_1 : i32, i32, i32, i32, i32
  }
  func.func @transform_1(%arg0: i32, %arg1: i32) -> (i32, i32, i32) {
    %c0_i32 = arith.constant 0 : i32
    %c0_i32_0 = arith.constant 0 : i32
    %c0_i32_1 = arith.constant 0 : i32
    %c0_i32_2 = arith.constant 0 : i32
    return %c0_i32, %c0_i32_0, %c0_i32_1 : i32, i32, i32
  }
  func.func @transform_2(%arg0: i32, %arg1: i32) -> (i32, i32) {
    %c0_i32 = arith.constant 0 : i32
    %c0_i32_0 = arith.constant 0 : i32
    %c0_i32_1 = arith.constant 0 : i32
    return %c0_i32, %c0_i32_0 : i32, i32
  }
  func.func @transform_3(%arg0: i32, %arg1: i32) -> (i32, i32) {
    %c0_i32 = arith.constant 0 : i32
    %c0_i32_0 = arith.constant 0 : i32
    %c0_i32_1 = arith.constant 0 : i32
    return %c0_i32, %c0_i32_0 : i32, i32
  }
  func.func @transform_4(%arg0: i32, %arg1: i32) -> (i32, i32) {
    %c0_i32 = arith.constant 0 : i32
    %c0_i32_0 = arith.constant 0 : i32
    %c0_i32_1 = arith.constant 0 : i32
    return %c0_i32, %c0_i32_0 : i32, i32
  }
  func.func @transform_5(%arg0: i32, %arg1: i32) -> (i32, i32, i32, i32) {
    %c0_i32 = arith.constant 0 : i32
    %c0_i32_0 = arith.constant 0 : i32
    %c0_i32_1 = arith.constant 0 : i32
    return %arg0, %arg1, %c0_i32, %c0_i32_0 : i32, i32, i32, i32
  }
}

</mosaic_0001>

<llo_original>
// kernel: tpu_custom_call.1
$region0: #{tpu_custom_call.1}
  #allocation0 [shape = 'u32[]', space=smem, size = 0x4, offset = 0x4, fixed_abs, tag = 'smem constant byte address 0x4 - core index']
  #allocation1 [shape = 'u32[72,128]{1,0:T(1,128)}', space=vmem, size = 0x9000, scoped, tag = 'internal scratch']
  #allocation2 [shape = 'f32[256,16]{1,0:T(8,128)}', space=vmem, size = 0x20000, scoped, tag = 'scratch operand']
  %s0 = inlined_call_operand.vmem [shape: f32[2,1,18,18,16], index: 0, kind: input, shape index: {}]
  %s1 = inlined_call_operand.vmem [shape: f32[9,16,16], index: 1, kind: input, shape index: {}]
  %s2 = inlined_call_operand.vmem [shape: f32[1,16], index: 2, kind: input, shape index: {}]
  %s3 = inlined_call_operand.vmem [shape: f32[16,15], index: 3, kind: input, shape index: {}]
  %s4 = inlined_call_operand.vmem [shape: f32[1,15], index: 4, kind: input, shape index: {}]
  %s5 = inlined_call_operand.vmem [shape: f32[2,1,15,256], index: 5, kind: output, shape index: {}]
  %s6 = sld [smem:[#allocation0]]
  $region53: #{tpu_custom_call.1} parent=0
    _
  %s8 = ssub.s32 1, %s6
  %s9 = scalar_select 0, %s8, %s6
  loop: start=0, step=1, limit=4
  $region2: #{tpu_custom_call.1} parent=0 // loop_pre_header
    _
  $region3: #{tpu_custom_call.1} parent=0 // loop_header
    %s11 = sphi 0, %s15
    %p12 = scmp.ge.s32.totalorder %s11, 4
    %s18 = sphi 0, %s30
    %s19 = sphi 0, %s26
    %s20 = sphi 0, %s18
    %s21 = sphi 0, %s19
    %s22 = sphi 0, %s20
    %s23 = sphi 0, %s21
    %s35 = sphi 0, %s37
    %s38 = sphi 0, %s35
    %s39 = sphi 0, %s38
    %s55 = sphi 0, %s39
    %s59 = sphi 0, %s59
    %s61 = sphi 0, %s59
    %s62 = sphi 0, %s61
    %s76 = sphi 0, %s62
    %s80 = sphi 0, %s80
    %s82 = sphi 0, %s80
    %s83 = sphi 0, %s82
    %s97 = sphi 0, %s83
    %s101 = sphi 0, %s101
    %s103 = sphi 0, %s101
    %s104 = sphi 0, %s103
    %s118 = sphi 0, %s104
    %s122 = sphi 0, %s122
    %s124 = sphi 0, %s122
    %s125 = sphi 0, %s124
    %s139 = sphi 0, %s125
    %s147 = sphi 0, %s149
    %s150 = sphi 0, %s147
    %s151 = sphi 0, %s150
    %s167 = sphi 0, %s151
  $region4: #{tpu_custom_call.1} parent=0 // loop_header_branch
    %14 = sbr.rel (%p12) target = $region8
  $region5: #{tpu_custom_call.1} parent=0 // loop_body
    %s16 = ssub.s32 %s11, 1
    %s17 = ssub.s32 %s11, 2
    %s24 = sadd.s32 1, %s19
    %p25 = scmp.ge.s32.totalorder %s24, 1
    %s26 = scalar_select %p25, 0, %s24
    %s27 = sadd.s32 1, %s18
    %s28 = scalar_select %p25, %s27, %s18
    %p29 = scmp.ge.s32.totalorder %s28, 2
    %s30 = scalar_select %p29, 0, %s28
    %s31 = ssub.s32 %s18, %s30
    %s32 = ssub.s32 %s19, %s26
    %s33 = sor.u32 %s31, %s32
    %p34 = scmp.eq.s32.totalorder %s33, 0
    %s36 = sadd.s32 %s35, 1
    %s37 = scalar_select %p34, %s35, %s36
    %p40 = pneg %p34
    %p41 = scmp.eq.s32.totalorder %s11, 1
    %p42 = por %p40, %p41
    %p43 = scmp.ne.s32.totalorder %s35, %s38
    %p44 = scmp.eq.s32.totalorder %s11, 0
    %p45 = por %p43, %p44
    %p46 = scmp.ne.s32.totalorder %s35, %s38
    %p47 = scmp.eq.s32.totalorder %s16, 1
    %p48 = por %p46, %p47
    %p49 = scmp.ne.s32.totalorder %s38, %s39
    %p50 = scmp.eq.s32.totalorder %s16, 0
    %p51 = por %p49, %p50
    %p52 = scmp.ne.s32.totalorder %s38, %s39
    %p53 = scmp.eq.s32.totalorder %s17, 1
    %p54 = por %p52, %p53
    %p56 = scmp.ne.s32.totalorder %s39, %s55
    %p57 = scmp.eq.s32.totalorder %s17, 0
    %p58 = por %p56, %p57
    %s60 = sadd.s32 %s59, 1
    %p63 = scmp.eq.s32.totalorder %s11, 1
    %p64 = scmp.ne.s32.totalorder %s59, %s61
    %p65 = scmp.eq.s32.totalorder %s11, 0
    %p66 = por %p64, %p65
    %p67 = scmp.ne.s32.totalorder %s59, %s61
    %p68 = scmp.eq.s32.totalorder %s16, 1
    %p69 = por %p67, %p68
    %p70 = scmp.ne.s32.totalorder %s61, %s62
    %p71 = scmp.eq.s32.totalorder %s16, 0
    %p72 = por %p70, %p71
    %p73 = scmp.ne.s32.totalorder %s61, %s62
    %p74 = scmp.eq.s32.totalorder %s17, 1
    %p75 = por %p73, %p74
    %p77 = scmp.ne.s32.totalorder %s62, %s76
    %p78 = scmp.eq.s32.totalorder %s17, 0
    %p79 = por %p77, %p78
    %s81 = sadd.s32 %s80, 1
    %p84 = scmp.eq.s32.totalorder %s11, 1
    %p85 = scmp.ne.s32.totalorder %s80, %s82
    %p86 = scmp.eq.s32.totalorder %s11, 0
    %p87 = por %p85, %p86
    %p88 = scmp.ne.s32.totalorder %s80, %s82
    %p89 = scmp.eq.s32.totalorder %s16, 1
    %p90 = por %p88, %p89
    %p91 = scmp.ne.s32.totalorder %s82, %s83
    %p92 = scmp.eq.s32.totalorder %s16, 0
    %p93 = por %p91, %p92
    %p94 = scmp.ne.s32.totalorder %s82, %s83
    %p95 = scmp.eq.s32.totalorder %s17, 1
    %p96 = por %p94, %p95
    %p98 = scmp.ne.s32.totalorder %s83, %s97
    %p99 = scmp.eq.s32.totalorder %s17, 0
    %p100 = por %p98, %p99
    %s102 = sadd.s32 %s101, 1
    %p105 = scmp.eq.s32.totalorder %s11, 1
    %p106 = scmp.ne.s32.totalorder %s101, %s103
    %p107 = scmp.eq.s32.totalorder %s11, 0
    %p108 = por %p106, %p107
    %p109 = scmp.ne.s32.totalorder %s101, %s103
    %p110 = scmp.eq.s32.totalorder %s16, 1
    %p111 = por %p109, %p110
    %p112 = scmp.ne.s32.totalorder %s103, %s104
    %p113 = scmp.eq.s32.totalorder %s16, 0
    %p114 = por %p112, %p113
    %p115 = scmp.ne.s32.totalorder %s103, %s104
    %p116 = scmp.eq.s32.totalorder %s17, 1
    %p117 = por %p115, %p116
    %p119 = scmp.ne.s32.totalorder %s104, %s118
    %p120 = scmp.eq.s32.totalorder %s17, 0
    %p121 = por %p119, %p120
    %s123 = sadd.s32 %s122, 1
    %p126 = scmp.eq.s32.totalorder %s11, 1
    %p127 = scmp.ne.s32.totalorder %s122, %s124
    %p128 = scmp.eq.s32.totalorder %s11, 0
    %p129 = por %p127, %p128
    %p130 = scmp.ne.s32.totalorder %s122, %s124
    %p131 = scmp.eq.s32.totalorder %s16, 1
    %p132 = por %p130, %p131
    %p133 = scmp.ne.s32.totalorder %s124, %s125
    %p134 = scmp.eq.s32.totalorder %s16, 0
    %p135 = por %p133, %p134
    %p136 = scmp.ne.s32.totalorder %s124, %s125
    %p137 = scmp.eq.s32.totalorder %s17, 1
    %p138 = por %p136, %p137
    %p140 = scmp.ne.s32.totalorder %s125, %s139
    %p141 = scmp.eq.s32.totalorder %s17, 0
    %p142 = por %p140, %p141
    %s143 = ssub.s32 %s18, %s30
    %s144 = ssub.s32 %s19, %s26
    %s145 = sor.u32 %s143, %s144
    %p146 = scmp.eq.s32.totalorder %s145, 0
    %s148 = sadd.s32 %s147, 1
    %s149 = scalar_select %p146, %s147, %s148
    %p152 = pneg %p146
    %p153 = scmp.eq.s32.totalorder %s11, 1
    %p154 = por %p152, %p153
    %p155 = scmp.ne.s32.totalorder %s147, %s150
    %p156 = scmp.eq.s32.totalorder %s11, 0
    %p157 = por %p155, %p156
    %p158 = scmp.ne.s32.totalorder %s147, %s150
    %p159 = scmp.eq.s32.totalorder %s16, 1
    %p160 = por %p158, %p159
    %p161 = scmp.ne.s32.totalorder %s150, %s151
    %p162 = scmp.eq.s32.totalorder %s16, 0
    %p163 = por %p161, %p162
    %p164 = scmp.ne.s32.totalorder %s150, %s151
    %p165 = scmp.eq.s32.totalorder %s17, 1
    %p166 = por %p164, %p165
    %p168 = scmp.ne.s32.totalorder %s151, %s167
    %p169 = scmp.eq.s32.totalorder %s17, 0
    %p170 = por %p168, %p169
    %p171 = scmp.le.s32.totalorder 1, %s11
    %p172 = scmp.lt.s32.totalorder %s11, 3
    %p173 = pnand %p171, %p172
    %p174 = pneg %p173
    // Predicated region
    $region9: #{tpu_custom_call.1} parent=5 // pred_check
      _
    $region10: #{tpu_custom_call.1} parent=5 // pred_check_branch
      %176 = sbr.rel (%p173) target = $region12
    $region11: #{tpu_custom_call.1} parent=5 // pred_region
      %s177 = ssub.s32 %s11, 1
      // Predicated region
      $region13: #{tpu_custom_call.1} parent=11 // pred_check
        %p178 = pneg %p72
      $region14: #{tpu_custom_call.1} parent=11 // pred_check_branch
        %180 = sbr.rel (%p178) target = $region16
      $region15: #{tpu_custom_call.1} parent=11 // pred_region
        _
      $region16: #{tpu_custom_call.1} parent=11 // pred_fallthru
        _
      // Predicated region
      $region17: #{tpu_custom_call.1} parent=11 // pred_check
        %p181 = pneg %p93
      $region18: #{tpu_custom_call.1} parent=11 // pred_check_branch
        %183 = sbr.rel (%p181) target = $region20
      $region19: #{tpu_custom_call.1} parent=11 // pred_region
        _
      $region20: #{tpu_custom_call.1} parent=11 // pred_fallthru
        _
      // Predicated region
      $region21: #{tpu_custom_call.1} parent=11 // pred_check
        %p184 = pneg %p114
      $region22: #{tpu_custom_call.1} parent=11 // pred_check_branch
        %186 = sbr.rel (%p184) target = $region24
      $region23: #{tpu_custom_call.1} parent=11 // pred_region
        _
      $region24: #{tpu_custom_call.1} parent=11 // pred_fallthru
        _
      // Predicated region
      $region25: #{tpu_custom_call.1} parent=11 // pred_check
        %p187 = pneg %p135
      $region26: #{tpu_custom_call.1} parent=11 // pred_check_branch
        %189 = sbr.rel (%p187) target = $region28
      $region27: #{tpu_custom_call.1} parent=11 // pred_region
        _
      $region28: #{tpu_custom_call.1} parent=11 // pred_fallthru
        _
    $region12: #{tpu_custom_call.1} parent=5 // pred_fallthru
      _
    %p190 = scmp.lt.s32.totalorder %s11, 2
    // Predicated region
    $region29: #{tpu_custom_call.1} parent=5 // pred_check
      %p191 = pneg %p190
    $region30: #{tpu_custom_call.1} parent=5 // pred_check_branch
      %193 = sbr.rel (%p191) target = $region32
    $region31: #{tpu_custom_call.1} parent=5 // pred_region
      // Predicated region
      $region33: #{tpu_custom_call.1} parent=31 // pred_check
        %p194 = pneg %p45
      $region34: #{tpu_custom_call.1} parent=31 // pred_check_branch
        %196 = sbr.rel (%p194) target = $region36
      $region35: #{tpu_custom_call.1} parent=31 // pred_region
        %p197 = scmp.lt.s32.totalorder %s18, 1
        %s198 = scalar_select %p197, %s18, 1
        %p199 = scmp.lt.s32.totalorder %s19, 0
        %s200 = scalar_select %p199, %s19, 0
        %s201 = smul.addr %s200, 54
        %s202 = smul.addr %s198, 54
        %s203 = sadd.s32 %s201, %s202
        %s204 = smul.addr %s203, 8
        %s205 = scalar_lea.vmem %s0, %s204
      $region36: #{tpu_custom_call.1} parent=31 // pred_fallthru
        _
    $region32: #{tpu_custom_call.1} parent=5 // pred_fallthru
      _
    %p206 = scmp.le.s32.totalorder 1, %s11
    %p207 = scmp.lt.s32.totalorder %s11, 3
    %p208 = pnand %p206, %p207
    %p209 = pneg %p208
    // Predicated region
    $region37: #{tpu_custom_call.1} parent=5 // pred_check
      _
    $region38: #{tpu_custom_call.1} parent=5 // pred_check_branch
      %211 = sbr.rel (%p208) target = $region40
    $region39: #{tpu_custom_call.1} parent=5 // pred_region
      %s212 = ssub.s32 %s11, 1
      %p213 = scmp.lt.s32.totalorder %s20, 1
      %s214 = scalar_select %p213, %s20, 1
      %p215 = scmp.lt.s32.totalorder %s21, 0
      %s216 = scalar_select %p215, %s21, 0
      %s217 = smul.addr %s216, 54
      %s218 = smul.addr %s214, 54
      %s219 = sadd.s32 %s217, %s218
      %s220 = smul.addr %s219, 8
      %s221 = scalar_lea.vmem %s0, %s220
      %p222 = pneg %p51
      %p223 = pneg %p48
      %p224 = pneg %p72
      %p225 = pneg %p69
      %p226 = pneg %p93
      %p227 = pneg %p90
      %p228 = pneg %p114
      %p229 = pneg %p111
      %p230 = pneg %p135
      %p231 = pneg %p132
      %p232 = pneg %p163
      %p233 = pneg %p160
      %p234 = scmp.lt.s32.totalorder %s20, 1
      %s235 = scalar_select %p234, %s20, 1
      %p236 = scmp.lt.s32.totalorder %s21, 0
      %s237 = scalar_select %p236, %s21, 0
      %s238 = smul.addr %s237, 4
      %s239 = smul.addr %s235, 4
      %s240 = sadd.s32 %s238, %s239
      %s241 = smul.addr %s240, 8
      %s242 = scalar_lea.vmem %s5, %s241
      %p243 = scmp.lt.s32.totalorder %s20, 1
      %s244 = scalar_select %p243, %s20, 1
      %p245 = scmp.lt.s32.totalorder %s21, 0
      %s246 = scalar_select %p245, %s21, 0
      %s247 = smul.addr %s246, 54
      %s248 = smul.addr %s244, 54
      %s249 = sadd.s32 %s247, %s248
      %s250 = smul.addr %s249, 8
      %s251 = scalar_lea.vmem %s0, %s250
      %p252 = scmp.lt.s32.totalorder %s20, 1
      %s253 = scalar_select %p252, %s20, 1
      %p254 = scmp.lt.s32.totalorder %s21, 0
      %s255 = scalar_select %p254, %s21, 0
      %s256 = smul.addr %s255, 4
      %s257 = smul.addr %s253, 4
      %s258 = sadd.s32 %s256, %s257
      %s259 = smul.addr %s258, 8
      %s260 = scalar_lea.vmem %s5, %s259
      %vm261 = vcmask 130048
      %262 = vst.msk [vmem:[#allocation2] sm:$0xff] %vm261, 0.0
      %263 = vst.msk [vmem:[#allocation2 + $0x8] sm:$0xff] %vm261, 0.0
      %264 = vst.msk [vmem:[#allocation2 + $0x10] sm:$0xff] %vm261, 0.0
      %265 = vst.msk [vmem:[#allocation2 + $0x18] sm:$0xff] %vm261, 0.0
      %266 = vst.msk [vmem:[#allocation2 + $0x20] sm:$0xff] %vm261, 0.0
      %267 = vst.msk [vmem:[#allocation2 + $0x28] sm:$0xff] %vm261, 0.0
      %268 = vst.msk [vmem:[#allocation2 + $0x30] sm:$0xff] %vm261, 0.0
      %269 = vst.msk [vmem:[#allocation2 + $0x38] sm:$0xff] %vm261, 0.0
      %270 = vst.msk [vmem:[#allocation2 + $0x40] sm:$0xff] %vm261, 0.0
      %271 = vst.msk [vmem:[#allocation2 + $0x48] sm:$0xff] %vm261, 0.0
      %272 = vst.msk [vmem:[#allocation2 + $0x50] sm:$0xff] %vm261, 0.0
      %273 = vst.msk [vmem:[#allocation2 + $0x58] sm:$0xff] %vm261, 0.0
      %274 = vst.msk [vmem:[#allocation2 + $0x60] sm:$0xff] %vm261, 0.0
      %275 = vst.msk [vmem:[#allocation2 + $0x68] sm:$0xff] %vm261, 0.0
      %276 = vst.msk [vmem:[#allocation2 + $0x70] sm:$0xff] %vm261, 0.0
      %277 = vst.msk [vmem:[#allocation2 + $0x78] sm:$0xff] %vm261, 0.0
      %278 = vst.msk [vmem:[#allocation2 + $0x80] sm:$0xff] %vm261, 0.0
      %279 = vst.msk [vmem:[#allocation2 + $0x88] sm:$0xff] %vm261, 0.0
      %280 = vst.msk [vmem:[#allocation2 + $0x90] sm:$0xff] %vm261, 0.0
      %281 = vst.msk [vmem:[#allocation2 + $0x98] sm:$0xff] %vm261, 0.0
      %282 = vst.msk [vmem:[#allocation2 + $0xa0] sm:$0xff] %vm261, 0.0
      %283 = vst.msk [vmem:[#allocation2 + $0xa8] sm:$0xff] %vm261, 0.0
      %284 = vst.msk [vmem:[#allocation2 + $0xb0] sm:$0xff] %vm261, 0.0
      %285 = vst.msk [vmem:[#allocation2 + $0xb8] sm:$0xff] %vm261, 0.0
      %286 = vst.msk [vmem:[#allocation2 + $0xc0] sm:$0xff] %vm261, 0.0
      %287 = vst.msk [vmem:[#allocation2 + $0xc8] sm:$0xff] %vm261, 0.0
      %288 = vst.msk [vmem:[#allocation2 + $0xd0] sm:$0xff] %vm261, 0.0
      %289 = vst.msk [vmem:[#allocation2 + $0xd8] sm:$0xff] %vm261, 0.0
      %290 = vst.msk [vmem:[#allocation2 + $0xe0] sm:$0xff] %vm261, 0.0
      %291 = vst.msk [vmem:[#allocation2 + $0xe8] sm:$0xff] %vm261, 0.0
      %292 = vst.msk [vmem:[#allocation2 + $0xf0] sm:$0xff] %vm261, 0.0
      %293 = vst.msk [vmem:[#allocation2 + $0xf8] sm:$0xff] %vm261, 0.0
      %v294 = vld [vmem:[%s251] sm:$0xff]
      %v295 = vld [vmem:[%s251 + $0x8] sm:$0xff]
      %v296 = vld [vmem:[%s251 + $0x18] sm:$0xff]
      %v297 = vld [vmem:[%s251 + $0x20] sm:$0xff]
      %v298 = vld [vmem:[%s251 + $0x30] sm:$0xff]
      %v299 = vld [vmem:[%s251 + $0x38] sm:$0xff]
      %v300 = vld [vmem:[%s251 + $0x48] sm:$0xff]
      %v301 = vld [vmem:[%s251 + $0x50] sm:$0xff]
      %v302 = vld [vmem:[%s251 + $0x60] sm:$0xff]
      %v303 = vld [vmem:[%s251 + $0x68] sm:$0xff]
      %v304 = vld [vmem:[%s251 + $0x78] sm:$0xff]
      %v305 = vld [vmem:[%s251 + $0x80] sm:$0xff]
      %v306 = vld [vmem:[%s251 + $0x90] sm:$0xff]
      %v307 = vld [vmem:[%s251 + $0x98] sm:$0xff]
      %v308 = vld [vmem:[%s251 + $0xa8] sm:$0xff]
      %v309 = vld [vmem:[%s251 + $0xb0] sm:$0xff]
      %v310 = vld [vmem:[%s251 + $0xc0] sm:$0xff]
      %v311 = vld [vmem:[%s251 + $0xc8] sm:$0xff]
      %v312 = vld [vmem:[%s251 + $0xd8] sm:$0xff]
      %v313 = vld [vmem:[%s251 + $0xe0] sm:$0xff]
      %v314 = vld [vmem:[%s251 + $0xf0] sm:$0xff]
      %v315 = vld [vmem:[%s251 + $0xf8] sm:$0xff]
      %v316 = vld [vmem:[%s251 + $0x108] sm:$0xff]
      %v317 = vld [vmem:[%s251 + $0x110] sm:$0xff]
      %v318 = vld [vmem:[%s251 + $0x120] sm:$0xff]
      %v319 = vld [vmem:[%s251 + $0x128] sm:$0xff]
      %v320 = vld [vmem:[%s251 + $0x138] sm:$0xff]
      %v321 = vld [vmem:[%s251 + $0x140] sm:$0xff]
      %v322 = vld [vmem:[%s251 + $0x150] sm:$0xff]
      %v323 = vld [vmem:[%s251 + $0x158] sm:$0xff]
      %v324 = vld [vmem:[%s251 + $0x168] sm:$0xff]
      %v325 = vld [vmem:[%s251 + $0x170] sm:$0xff]
      %v326 = vld [vmem:[#allocation2] sm:$0xff]
      %v327 = vld [vmem:[#allocation2 + $0x8] sm:$0xff]
      %v328 = vld [vmem:[#allocation2 + $0x10] sm:$0xff]
      %v329 = vld [vmem:[#allocation2 + $0x18] sm:$0xff]
      %v330 = vld [vmem:[#allocation2 + $0x20] sm:$0xff]
      %v331 = vld [vmem:[#allocation2 + $0x28] sm:$0xff]
      %v332 = vld [vmem:[#allocation2 + $0x30] sm:$0xff]
      %v333 = vld [vmem:[#allocation2 + $0x38] sm:$0xff]
      %v334 = vld [vmem:[#allocation2 + $0x40] sm:$0xff]
      %v335 = vld [vmem:[#allocation2 + $0x48] sm:$0xff]
      %v336 = vld [vmem:[#allocation2 + $0x50] sm:$0xff]
      %v337 = vld [vmem:[#allocation2 + $0x58] sm:$0xff]
      %v338 = vld [vmem:[#allocation2 + $0x60] sm:$0xff]
      %v339 = vld [vmem:[#allocation2 + $0x68] sm:$0xff]
      %v340 = vld [vmem:[#allocation2 + $0x70] sm:$0xff]
      %v341 = vld [vmem:[#allocation2 + $0x78] sm:$0xff]
      %v342 = vld [vmem:[#allocation2 + $0x80] sm:$0xff]
      %v343 = vld [vmem:[#allocation2 + $0x88] sm:$0xff]
      %v344 = vld [vmem:[#allocation2 + $0x90] sm:$0xff]
      %v345 = vld [vmem:[#allocation2 + $0x98] sm:$0xff]
      %v346 = vld [vmem:[#allocation2 + $0xa0] sm:$0xff]
      %v347 = vld [vmem:[#allocation2 + $0xa8] sm:$0xff]
      %v348 = vld [vmem:[#allocation2 + $0xb0] sm:$0xff]
      %v349 = vld [vmem:[#allocation2 + $0xb8] sm:$0xff]
      %v350 = vld [vmem:[#allocation2 + $0xc0] sm:$0xff]
      %v351 = vld [vmem:[#allocation2 + $0xc8] sm:$0xff]
      %v352 = vld [vmem:[#allocation2 + $0xd0] sm:$0xff]
      %v353 = vld [vmem:[#allocation2 + $0xd8] sm:$0xff]
      %v354 = vld [vmem:[#allocation2 + $0xe0] sm:$0xff]
      %v355 = vld [vmem:[#allocation2 + $0xe8] sm:$0xff]
      %v356 = vld [vmem:[#allocation2 + $0xf0] sm:$0xff]
      %v357 = vld [vmem:[#allocation2 + $0xf8] sm:$0xff]
      %v358 = vld [vmem:[%s1] sm:$0xff]
      %v359 = vld [vmem:[%s1 + $0x8] sm:$0xff]
      %v361 = vsel %vm261, %v294, 0
      %v364 = vsel %vm261, %v295, 0
      %v367 = vsel %vm261, %v296, 0
      %v370 = vsel %vm261, %v297, 0
      %v373 = vsel %vm261, %v298, 0
      %v376 = vsel %vm261, %v299, 0
      %v379 = vsel %vm261, %v300, 0
      %v382 = vsel %vm261, %v301, 0
      %v385 = vsel %vm261, %v302, 0
      %v388 = vsel %vm261, %v303, 0
      %v391 = vsel %vm261, %v304, 0
      %v394 = vsel %vm261, %v305, 0
      %v397 = vsel %vm261, %v306, 0
      %v400 = vsel %vm261, %v307, 0
      %v403 = vsel %vm261, %v308, 0
      %v406 = vsel %vm261, %v309, 0
      %v409 = vsel %vm261, %v310, 0
      %v412 = vsel %vm261, %v311, 0
      %v415 = vsel %vm261, %v312, 0
      %v418 = vsel %vm261, %v313, 0
      %v421 = vsel %vm261, %v314, 0
      %v424 = vsel %vm261, %v315, 0
      %v427 = vsel %vm261, %v316, 0
      %v430 = vsel %vm261, %v317, 0
      %v433 = vsel %vm261, %v318, 0
      %v436 = vsel %vm261, %v319, 0
      %v439 = vsel %vm261, %v320, 0
      %v442 = vsel %vm261, %v321, 0
      %v445 = vsel %vm261, %v322, 0
      %v448 = vsel %vm261, %v323, 0
      %v451 = vsel %vm261, %v324, 0
      %v454 = vsel %vm261, %v325, 0
      %456 = vmatpush.msra.mxu0 0.0
      %457 = vmatpush.msra.mxu0 0.0
      %458 = vmatpush.msra.mxu0 0.0
      %459 = vmatpush.msra.mxu0 0.0
      %460 = vmatpush.msra.mxu0 0.0
      %461 = vmatpush.msra.mxu0 0.0
      %462 = vmatpush.msra.mxu0 0.0
      %463 = vmatpush.msra.mxu0 0.0
      %464 = vmatpush.msra.mxu0 0.0
      %465 = vmatpush.msra.mxu0 0.0
      %466 = vmatpush.msra.mxu0 0.0
      %467 = vmatpush.msra.mxu0 0.0
      %468 = vmatpush.msra.mxu0 0.0
      %469 = vmatpush.msra.mxu0 0.0
      %470 = vmatpush.msra.mxu0 %v359
      %471 = vmatpush.msra.mxu0 %v358
      %472 = vmatmul.f32.gmra.mxu0 %v361
      %v473 = vpop.f32.mrf.mxu0
      %v474 = vadd.f32 0.0, %v473
      %475 = vmatmul.f32.gmra.mxu0 %v364
      %v476 = vpop.f32.mrf.mxu0
      %v477 = vadd.f32 0.0, %v476
      %478 = vmatmul.f32.gmra.mxu0 %v367
      %v479 = vpop.f32.mrf.mxu0
      %v480 = vadd.f32 0.0, %v479
      %481 = vmatmul.f32.gmra.mxu0 %v370
      %v482 = vpop.f32.mrf.mxu0
      %v483 = vadd.f32 0.0, %v482
      %484 = vmatmul.f32.gmra.mxu0 %v373
      %v485 = vpop.f32.mrf.mxu0
      %v486 = vadd.f32 0.0, %v485
      %487 = vmatmul.f32.gmra.mxu0 %v376
      %v488 = vpop.f32.mrf.mxu0
      %v489 = vadd.f32 0.0, %v488
      %490 = vmatmul.f32.gmra.mxu0 %v379
      %v491 = vpop.f32.mrf.mxu0
      %v492 = vadd.f32 0.0, %v491
      %493 = vmatmul.f32.gmra.mxu0 %v382
      %v494 = vpop.f32.mrf.mxu0
      %v495 = vadd.f32 0.0, %v494
      %496 = vmatmul.f32.gmra.mxu0 %v385
      %v497 = vpop.f32.mrf.mxu0
      %v498 = vadd.f32 0.0, %v497
      %499 = vmatmul.f32.gmra.mxu0 %v388
      %v500 = vpop.f32.mrf.mxu0
      %v501 = vadd.f32 0.0, %v500
      %502 = vmatmul.f32.gmra.mxu0 %v391
      %v503 = vpop.f32.mrf.mxu0
      %v504 = vadd.f32 0.0, %v503
      %505 = vmatmul.f32.gmra.mxu0 %v394
      %v506 = vpop.f32.mrf.mxu0
      %v507 = vadd.f32 0.0, %v506
      %508 = vmatmul.f32.gmra.mxu0 %v397
      %v509 = vpop.f32.mrf.mxu0
      %v510 = vadd.f32 0.0, %v509
      %511 = vmatmul.f32.gmra.mxu0 %v400
      %v512 = vpop.f32.mrf.mxu0
      %v513 = vadd.f32 0.0, %v512
      %514 = vmatmul.f32.gmra.mxu0 %v403
      %v515 = vpop.f32.mrf.mxu0
      %v516 = vadd.f32 0.0, %v515
      %517 = vmatmul.f32.gmra.mxu0 %v406
      %v518 = vpop.f32.mrf.mxu0
      %v519 = vadd.f32 0.0, %v518
      %520 = vmatmul.f32.gmra.mxu0 %v409
      %v521 = vpop.f32.mrf.mxu0
      %v522 = vadd.f32 0.0, %v521
      %523 = vmatmul.f32.gmra.mxu0 %v412
      %v524 = vpop.f32.mrf.mxu0
      %v525 = vadd.f32 0.0, %v524
      %526 = vmatmul.f32.gmra.mxu0 %v415
      %v527 = vpop.f32.mrf.mxu0
      %v528 = vadd.f32 0.0, %v527
      %529 = vmatmul.f32.gmra.mxu0 %v418
      %v530 = vpop.f32.mrf.mxu0
      %v531 = vadd.f32 0.0, %v530
      %532 = vmatmul.f32.gmra.mxu0 %v421
      %v533 = vpop.f32.mrf.mxu0
      %v534 = vadd.f32 0.0, %v533
      %535 = vmatmul.f32.gmra.mxu0 %v424
      %v536 = vpop.f32.mrf.mxu0
      %v537 = vadd.f32 0.0, %v536
      %538 = vmatmul.f32.gmra.mxu0 %v427
      %v539 = vpop.f32.mrf.mxu0
      %v540 = vadd.f32 0.0, %v539
      %541 = vmatmul.f32.gmra.mxu0 %v430
      %v542 = vpop.f32.mrf.mxu0
      %v543 = vadd.f32 0.0, %v542
      %544 = vmatmul.f32.gmra.mxu0 %v433
      %v545 = vpop.f32.mrf.mxu0
      %v546 = vadd.f32 0.0, %v545
      %547 = vmatmul.f32.gmra.mxu0 %v436
      %v548 = vpop.f32.mrf.mxu0
      %v549 = vadd.f32 0.0, %v548
      %550 = vmatmul.f32.gmra.mxu0 %v439
      %v551 = vpop.f32.mrf.mxu0
      %v552 = vadd.f32 0.0, %v551
      %553 = vmatmul.f32.gmra.mxu0 %v442
      %v554 = vpop.f32.mrf.mxu0
      %v555 = vadd.f32 0.0, %v554
      %556 = vmatmul.f32.gmra.mxu0 %v445
      %v557 = vpop.f32.mrf.mxu0
      %v558 = vadd.f32 0.0, %v557
      %559 = vmatmul.f32.gmra.mxu0 %v448
      %v560 = vpop.f32.mrf.mxu0
      %v561 = vadd.f32 0.0, %v560
      %562 = vmatmul.f32.gmra.mxu0 %v451
      %v563 = vpop.f32.mrf.mxu0
      %v564 = vadd.f32 0.0, %v563
      %565 = vmatmul.f32.gmra.mxu0 %v454
      %v566 = vpop.f32.mrf.mxu0
      %v567 = vadd.f32 0.0, %v566
      %568 = vdwg.mxu0
      %v569 = vadd.f32 %v326, %v474
      %v570 = vadd.f32 %v327, %v477
      %v571 = vadd.f32 %v328, %v480
      %v572 = vadd.f32 %v329, %v483
      %v573 = vadd.f32 %v330, %v486
      %v574 = vadd.f32 %v331, %v489
      %v575 = vadd.f32 %v332, %v492
      %v576 = vadd.f32 %v333, %v495
      %v577 = vadd.f32 %v334, %v498
      %v578 = vadd.f32 %v335, %v501
      %v579 = vadd.f32 %v336, %v504
      %v580 = vadd.f32 %v337, %v507
      %v581 = vadd.f32 %v338, %v510
      %v582 = vadd.f32 %v339, %v513
      %v583 = vadd.f32 %v340, %v516
      %v584 = vadd.f32 %v341, %v519
      %v585 = vadd.f32 %v342, %v522
      %v586 = vadd.f32 %v343, %v525
      %v587 = vadd.f32 %v344, %v528
      %v588 = vadd.f32 %v345, %v531
      %v589 = vadd.f32 %v346, %v534
      %v590 = vadd.f32 %v347, %v537
      %v591 = vadd.f32 %v348, %v540
      %v592 = vadd.f32 %v349, %v543
      %v593 = vadd.f32 %v350, %v546
      %v594 = vadd.f32 %v351, %v549
      %v595 = vadd.f32 %v352, %v552
      %v596 = vadd.f32 %v353, %v555
      %v597 = vadd.f32 %v354, %v558
      %v598 = vadd.f32 %v355, %v561
      %v599 = vadd.f32 %v356, %v564
      %v600 = vadd.f32 %v357, %v567
      %601 = vst.msk [vmem:[#allocation2] sm:$0xff] %vm261, %v569
      %602 = vst.msk [vmem:[#allocation2 + $0x8] sm:$0xff] %vm261, %v570
      %603 = vst.msk [vmem:[#allocation2 + $0x10] sm:$0xff] %vm261, %v571
      %604 = vst.msk [vmem:[#allocation2 + $0x18] sm:$0xff] %vm261, %v572
      %605 = vst.msk [vmem:[#allocation2 + $0x20] sm:$0xff] %vm261, %v573
      %606 = vst.msk [vmem:[#allocation2 + $0x28] sm:$0xff] %vm261, %v574
      %607 = vst.msk [vmem:[#allocation2 + $0x30] sm:$0xff] %vm261, %v575
      %608 = vst.msk [vmem:[#allocation2 + $0x38] sm:$0xff] %vm261, %v576
      %609 = vst.msk [vmem:[#allocation2 + $0x40] sm:$0xff] %vm261, %v577
      %610 = vst.msk [vmem:[#allocation2 + $0x48] sm:$0xff] %vm261, %v578
      %611 = vst.msk [vmem:[#allocation2 + $0x50] sm:$0xff] %vm261, %v579
      %612 = vst.msk [vmem:[#allocation2 + $0x58] sm:$0xff] %vm261, %v580
      %613 = vst.msk [vmem:[#allocation2 + $0x60] sm:$0xff] %vm261, %v581
      %614 = vst.msk [vmem:[#allocation2 + $0x68] sm:$0xff] %vm261, %v582
      %615 = vst.msk [vmem:[#allocation2 + $0x70] sm:$0xff] %vm261, %v583
      %616 = vst.msk [vmem:[#allocation2 + $0x78] sm:$0xff] %vm261, %v584
      %617 = vst.msk [vmem:[#allocation2 + $0x80] sm:$0xff] %vm261, %v585
      %618 = vst.msk [vmem:[#allocation2 + $0x88] sm:$0xff] %vm261, %v586
      %619 = vst.msk [vmem:[#allocation2 + $0x90] sm:$0xff] %vm261, %v587
      %620 = vst.msk [vmem:[#allocation2 + $0x98] sm:$0xff] %vm261, %v588
      %621 = vst.msk [vmem:[#allocation2 + $0xa0] sm:$0xff] %vm261, %v589
      %622 = vst.msk [vmem:[#allocation2 + $0xa8] sm:$0xff] %vm261, %v590
      %623 = vst.msk [vmem:[#allocation2 + $0xb0] sm:$0xff] %vm261, %v591
      %624 = vst.msk [vmem:[#allocation2 + $0xb8] sm:$0xff] %vm261, %v592
      %625 = vst.msk [vmem:[#allocation2 + $0xc0] sm:$0xff] %vm261, %v593
      %626 = vst.msk [vmem:[#allocation2 + $0xc8] sm:$0xff] %vm261, %v594
      %627 = vst.msk [vmem:[#allocation2 + $0xd0] sm:$0xff] %vm261, %v595
      %628 = vst.msk [vmem:[#allocation2 + $0xd8] sm:$0xff] %vm261, %v596
      %629 = vst.msk [vmem:[#allocation2 + $0xe0] sm:$0xff] %vm261, %v597
      %630 = vst.msk [vmem:[#allocation2 + $0xe8] sm:$0xff] %vm261, %v598
      %631 = vst.msk [vmem:[#allocation2 + $0xf0] sm:$0xff] %vm261, %v599
      %632 = vst.msk [vmem:[#allocation2 + $0xf8] sm:$0xff] %vm261, %v600
      %v633 = vld [vmem:[%s251 + $0x1] sm:$0xff]
      %v634 = vld [vmem:[%s251 + $0x9] sm:$0xff]
      %v635 = vld [vmem:[%s251 + $0x19] sm:$0xff]
      %v636 = vld [vmem:[%s251 + $0x21] sm:$0xff]
      %v637 = vld [vmem:[%s251 + $0x31] sm:$0xff]
      %v638 = vld [vmem:[%s251 + $0x39] sm:$0xff]
      %v639 = vld [vmem:[%s251 + $0x49] sm:$0xff]
      %v640 = vld [vmem:[%s251 + $0x51] sm:$0xff]
      %v641 = vld [vmem:[%s251 + $0x61] sm:$0xff]
      %v642 = vld [vmem:[%s251 + $0x69] sm:$0xff]
      %v643 = vld [vmem:[%s251 + $0x79] sm:$0xff]
      %v644 = vld [vmem:[%s251 + $0x81] sm:$0xff]
      %v645 = vld [vmem:[%s251 + $0x91] sm:$0xff]
      %v646 = vld [vmem:[%s251 + $0x99] sm:$0xff]
      %v647 = vld [vmem:[%s251 + $0xa9] sm:$0xff]
      %v648 = vld [vmem:[%s251 + $0xb1] sm:$0xff]
      %v649 = vld [vmem:[%s251 + $0xc1] sm:$0xff]
      %v650 = vld [vmem:[%s251 + $0xc9] sm:$0xff]
      %v651 = vld [vmem:[%s251 + $0xd9] sm:$0xff]
      %v652 = vld [vmem:[%s251 + $0xe1] sm:$0xff]
      %v653 = vld [vmem:[%s251 + $0xf1] sm:$0xff]
      %v654 = vld [vmem:[%s251 + $0xf9] sm:$0xff]
      %v655 = vld [vmem:[%s251 + $0x109] sm:$0xff]
      %v656 = vld [vmem:[%s251 + $0x111] sm:$0xff]
      %v657 = vld [vmem:[%s251 + $0x121] sm:$0xff]
      %v658 = vld [vmem:[%s251 + $0x129] sm:$0xff]
      %v659 = vld [vmem:[%s251 + $0x139] sm:$0xff]
      %v660 = vld [vmem:[%s251 + $0x141] sm:$0xff]
      %v661 = vld [vmem:[%s251 + $0x151] sm:$0xff]
      %v662 = vld [vmem:[%s251 + $0x159] sm:$0xff]
      %v663 = vld [vmem:[%s251 + $0x169] sm:$0xff]
      %v664 = vld [vmem:[%s251 + $0x171] sm:$0xff]
      %v665 = vld [vmem:[#allocation2] sm:$0xff]
      %v666 = vld [vmem:[#allocation2 + $0x8] sm:$0xff]
      %v667 = vld [vmem:[#allocation2 + $0x10] sm:$0xff]
      %v668 = vld [vmem:[#allocation2 + $0x18] sm:$0xff]
      %v669 = vld [vmem:[#allocation2 + $0x20] sm:$0xff]
      %v670 = vld [vmem:[#allocation2 + $0x28] sm:$0xff]
      %v671 = vld [vmem:[#allocation2 + $0x30] sm:$0xff]
      %v672 = vld [vmem:[#allocation2 + $0x38] sm:$0xff]
      %v673 = vld [vmem:[#allocation2 + $0x40] sm:$0xff]
      %v674 = vld [vmem:[#allocation2 + $0x48] sm:$0xff]
      %v675 = vld [vmem:[#allocation2 + $0x50] sm:$0xff]
      %v676 = vld [vmem:[#allocation2 + $0x58] sm:$0xff]
      %v677 = vld [vmem:[#allocation2 + $0x60] sm:$0xff]
      %v678 = vld [vmem:[#allocation2 + $0x68] sm:$0xff]
      %v679 = vld [vmem:[#allocation2 + $0x70] sm:$0xff]
      %v680 = vld [vmem:[#allocation2 + $0x78] sm:$0xff]
      %v681 = vld [vmem:[#allocation2 + $0x80] sm:$0xff]
      %v682 = vld [vmem:[#allocation2 + $0x88] sm:$0xff]
      %v683 = vld [vmem:[#allocation2 + $0x90] sm:$0xff]
      %v684 = vld [vmem:[#allocation2 + $0x98] sm:$0xff]
      %v685 = vld [vmem:[#allocation2 + $0xa0] sm:$0xff]
      %v686 = vld [vmem:[#allocation2 + $0xa8] sm:$0xff]
      %v687 = vld [vmem:[#allocation2 + $0xb0] sm:$0xff]
      %v688 = vld [vmem:[#allocation2 + $0xb8] sm:$0xff]
      %v689 = vld [vmem:[#allocation2 + $0xc0] sm:$0xff]
      %v690 = vld [vmem:[#allocation2 + $0xc8] sm:$0xff]
      %v691 = vld [vmem:[#allocation2 + $0xd0] sm:$0xff]
      %v692 = vld [vmem:[#allocation2 + $0xd8] sm:$0xff]
      %v693 = vld [vmem:[#allocation2 + $0xe0] sm:$0xff]
      %v694 = vld [vmem:[#allocation2 + $0xe8] sm:$0xff]
      %v695 = vld [vmem:[#allocation2 + $0xf0] sm:$0xff]
      %v696 = vld [vmem:[#allocation2 + $0xf8] sm:$0xff]
      %s697 = scalar_lea.vmem %s1, 16
      %v698 = vld [vmem:[%s697] sm:$0xff]
      %v699 = vld [vmem:[%s697 + $0x8] sm:$0xff]
      %v701 = vsel %vm261, %v633, 0
      %v704 = vsel %vm261, %v634, 0
      %v707 = vsel %vm261, %v635, 0
      %v710 = vsel %vm261, %v636, 0
      %v713 = vsel %vm261, %v637, 0
      %v716 = vsel %vm261, %v638, 0
      %v719 = vsel %vm261, %v639, 0
      %v722 = vsel %vm261, %v640, 0
      %v725 = vsel %vm261, %v641, 0
      %v728 = vsel %vm261, %v642, 0
      %v731 = vsel %vm261, %v643, 0
      %v734 = vsel %vm261, %v644, 0
      %v737 = vsel %vm261, %v645, 0
      %v740 = vsel %vm261, %v646, 0
      %v743 = vsel %vm261, %v647, 0
      %v746 = vsel %vm261, %v648, 0
      %v749 = vsel %vm261, %v649, 0
      %v752 = vsel %vm261, %v650, 0
      %v755 = vsel %vm261, %v651, 0
      %v758 = vsel %vm261, %v652, 0
      %v761 = vsel %vm261, %v653, 0
      %v764 = vsel %vm261, %v654, 0
      %v767 = vsel %vm261, %v655, 0
      %v770 = vsel %vm261, %v656, 0
      %v773 = vsel %vm261, %v657, 0
      %v776 = vsel %vm261, %v658, 0
      %v779 = vsel %vm261, %v659, 0
      %v782 = vsel %vm261, %v660, 0
      %v785 = vsel %vm261, %v661, 0
      %v788 = vsel %vm261, %v662, 0
      %v791 = vsel %vm261, %v663, 0
      %v794 = vsel %vm261, %v664, 0
      %796 = vmatpush.msra.mxu0 0.0
      %797 = vmatpush.msra.mxu0 0.0
      %798 = vmatpush.msra.mxu0 0.0
      %799 = vmatpush.msra.mxu0 0.0
      %800 = vmatpush.msra.mxu0 0.0
      %801 = vmatpush.msra.mxu0 0.0
      %802 = vmatpush.msra.mxu0 0.0
      %803 = vmatpush.msra.mxu0 0.0
      %804 = vmatpush.msra.mxu0 0.0
      %805 = vmatpush.msra.mxu0 0.0
      %806 = vmatpush.msra.mxu0 0.0
      %807 = vmatpush.msra.mxu0 0.0
      %808 = vmatpush.msra.mxu0 0.0
      %809 = vmatpush.msra.mxu0 0.0
      %810 = vmatpush.msra.mxu0 %v699
      %811 = vmatpush.msra.mxu0 %v698
      %812 = vmatmul.f32.gmra.mxu0 %v701
      %v813 = vpop.f32.mrf.mxu0
      %v814 = vadd.f32 0.0, %v813
      %815 = vmatmul.f32.gmra.mxu0 %v704
      %v816 = vpop.f32.mrf.mxu0
      %v817 = vadd.f32 0.0, %v816
      %818 = vmatmul.f32.gmra.mxu0 %v707
      %v819 = vpop.f32.mrf.mxu0
      %v820 = vadd.f32 0.0, %v819
      %821 = vmatmul.f32.gmra.mxu0 %v710
      %v822 = vpop.f32.mrf.mxu0
      %v823 = vadd.f32 0.0, %v822
      %824 = vmatmul.f32.gmra.mxu0 %v713
      %v825 = vpop.f32.mrf.mxu0
      %v826 = vadd.f32 0.0, %v825
      %827 = vmatmul.f32.gmra.mxu0 %v716
      %v828 = vpop.f32.mrf.mxu0
      %v829 = vadd.f32 0.0, %v828
      %830 = vmatmul.f32.gmra.mxu0 %v719
      %v831 = vpop.f32.mrf.mxu0
      %v832 = vadd.f32 0.0, %v831
      %833 = vmatmul.f32.gmra.mxu0 %v722
      %v834 = vpop.f32.mrf.mxu0
      %v835 = vadd.f32 0.0, %v834
      %836 = vmatmul.f32.gmra.mxu0 %v725
      %v837 = vpop.f32.mrf.mxu0
      %v838 = vadd.f32 0.0, %v837
      %839 = vmatmul.f32.gmra.mxu0 %v728
      %v840 = vpop.f32.mrf.mxu0
      %v841 = vadd.f32 0.0, %v840
      %842 = vmatmul.f32.gmra.mxu0 %v731
      %v843 = vpop.f32.mrf.mxu0
      %v844 = vadd.f32 0.0, %v843
      %845 = vmatmul.f32.gmra.mxu0 %v734
      %v846 = vpop.f32.mrf.mxu0
      %v847 = vadd.f32 0.0, %v846
      %848 = vmatmul.f32.gmra.mxu0 %v737
      %v849 = vpop.f32.mrf.mxu0
      %v850 = vadd.f32 0.0, %v849
      %851 = vmatmul.f32.gmra.mxu0 %v740
      %v852 = vpop.f32.mrf.mxu0
      %v853 = vadd.f32 0.0, %v852
      %854 = vmatmul.f32.gmra.mxu0 %v743
      %v855 = vpop.f32.mrf.mxu0
      %v856 = vadd.f32 0.0, %v855
      %857 = vmatmul.f32.gmra.mxu0 %v746
      %v858 = vpop.f32.mrf.mxu0
      %v859 = vadd.f32 0.0, %v858
      %860 = vmatmul.f32.gmra.mxu0 %v749
      %v861 = vpop.f32.mrf.mxu0
      %v862 = vadd.f32 0.0, %v861
      %863 = vmatmul.f32.gmra.mxu0 %v752
      %v864 = vpop.f32.mrf.mxu0
      %v865 = vadd.f32 0.0, %v864
      %866 = vmatmul.f32.gmra.mxu0 %v755
      %v867 = vpop.f32.mrf.mxu0
      %v868 = vadd.f32 0.0, %v867
      %869 = vmatmul.f32.gmra.mxu0 %v758
      %v870 = vpop.f32.mrf.mxu0
      %v871 = vadd.f32 0.0, %v870
      %872 = vmatmul.f32.gmra.mxu0 %v761
      %v873 = vpop.f32.mrf.mxu0
      %v874 = vadd.f32 0.0, %v873
      %875 = vmatmul.f32.gmra.mxu0 %v764
      %v876 = vpop.f32.mrf.mxu0
      %v877 = vadd.f32 0.0, %v876
      %878 = vmatmul.f32.gmra.mxu0 %v767
      %v879 = vpop.f32.mrf.mxu0
      %v880 = vadd.f32 0.0, %v879
      %881 = vmatmul.f32.gmra.mxu0 %v770
      %v882 = vpop.f32.mrf.mxu0
      %v883 = vadd.f32 0.0, %v882
      %884 = vmatmul.f32.gmra.mxu0 %v773
      %v885 = vpop.f32.mrf.mxu0
      %v886 = vadd.f32 0.0, %v885
      %887 = vmatmul.f32.gmra.mxu0 %v776
      %v888 = vpop.f32.mrf.mxu0
      %v889 = vadd.f32 0.0, %v888
      %890 = vmatmul.f32.gmra.mxu0 %v779
      %v891 = vpop.f32.mrf.mxu0
      %v892 = vadd.f32 0.0, %v891
      %893 = vmatmul.f32.gmra.mxu0 %v782
      %v894 = vpop.f32.mrf.mxu0
      %v895 = vadd.f32 0.0, %v894
      %896 = vmatmul.f32.gmra.mxu0 %v785
      %v897 = vpop.f32.mrf.mxu0
      %v898 = vadd.f32 0.0, %v897
      %899 = vmatmul.f32.gmra.mxu0 %v788
      %v900 = vpop.f32.mrf.mxu0
      %v901 = vadd.f32 0.0, %v900
      %902 = vmatmul.f32.gmra.mxu0 %v791
      %v903 = vpop.f32.mrf.mxu0
      %v904 = vadd.f32 0.0, %v903
      %905 = vmatmul.f32.gmra.mxu0 %v794
      %v906 = vpop.f32.mrf.mxu0
      %v907 = vadd.f32 0.0, %v906
      %908 = vdwg.mxu0
      %v909 = vadd.f32 %v665, %v814
      %v910 = vadd.f32 %v666, %v817
      %v911 = vadd.f32 %v667, %v820
      %v912 = vadd.f32 %v668, %v823
      %v913 = vadd.f32 %v669, %v826
      %v914 = vadd.f32 %v670, %v829
      %v915 = vadd.f32 %v671, %v832
      %v916 = vadd.f32 %v672, %v835
      %v917 = vadd.f32 %v673, %v838
      %v918 = vadd.f32 %v674, %v841
      %v919 = vadd.f32 %v675, %v844
      %v920 = vadd.f32 %v676, %v847
      %v921 = vadd.f32 %v677, %v850
      %v922 = vadd.f32 %v678, %v853
      %v923 = vadd.f32 %v679, %v856
      %v924 = vadd.f32 %v680, %v859
      %v925 = vadd.f32 %v681, %v862
      %v926 = vadd.f32 %v682, %v865
      %v927 = vadd.f32 %v683, %v868
      %v928 = vadd.f32 %v684, %v871
      %v929 = vadd.f32 %v685, %v874
      %v930 = vadd.f32 %v686, %v877
      %v931 = vadd.f32 %v687, %v880
      %v932 = vadd.f32 %v688, %v883
      %v933 = vadd.f32 %v689, %v886
      %v934 = vadd.f32 %v690, %v889
      %v935 = vadd.f32 %v691, %v892
      %v936 = vadd.f32 %v692, %v895
      %v937 = vadd.f32 %v693, %v898
      %v938 = vadd.f32 %v694, %v901
      %v939 = vadd.f32 %v695, %v904
      %v940 = vadd.f32 %v696, %v907
      %941 = vst.msk [vmem:[#allocation2] sm:$0xff] %vm261, %v909
      %942 = vst.msk [vmem:[#allocation2 + $0x8] sm:$0xff] %vm261, %v910
      %943 = vst.msk [vmem:[#allocation2 + $0x10] sm:$0xff] %vm261, %v911
      %944 = vst.msk [vmem:[#allocation2 + $0x18] sm:$0xff] %vm261, %v912
      %945 = vst.msk [vmem:[#allocation2 + $0x20] sm:$0xff] %vm261, %v913
      %946 = vst.msk [vmem:[#allocation2 + $0x28] sm:$0xff] %vm261, %v914
      %947 = vst.msk [vmem:[#allocation2 + $0x30] sm:$0xff] %vm261, %v915
      %948 = vst.msk [vmem:[#allocation2 + $0x38] sm:$0xff] %vm261, %v916
      %949 = vst.msk [vmem:[#allocation2 + $0x40] sm:$0xff] %vm261, %v917
      %950 = vst.msk [vmem:[#allocation2 + $0x48] sm:$0xff] %vm261, %v918
      %951 = vst.msk [vmem:[#allocation2 + $0x50] sm:$0xff] %vm261, %v919
      %952 = vst.msk [vmem:[#allocation2 + $0x58] sm:$0xff] %vm261, %v920
      %953 = vst.msk [vmem:[#allocation2 + $0x60] sm:$0xff] %vm261, %v921
      %954 = vst.msk [vmem:[#allocation2 + $0x68] sm:$0xff] %vm261, %v922
      %955 = vst.msk [vmem:[#allocation2 + $0x70] sm:$0xff] %vm261, %v923
      %956 = vst.msk [vmem:[#allocation2 + $0x78] sm:$0xff] %vm261, %v924
      %957 = vst.msk [vmem:[#allocation2 + $0x80] sm:$0xff] %vm261, %v925
      %958 = vst.msk [vmem:[#allocation2 + $0x88] sm:$0xff] %vm261, %v926
      %959 = vst.msk [vmem:[#allocation2 + $0x90] sm:$0xff] %vm261, %v927
      %960 = vst.msk [vmem:[#allocation2 + $0x98] sm:$0xff] %vm261, %v928
      %961 = vst.msk [vmem:[#allocation2 + $0xa0] sm:$0xff] %vm261, %v929
      %962 = vst.msk [vmem:[#allocation2 + $0xa8] sm:$0xff] %vm261, %v930
      %963 = vst.msk [vmem:[#allocation2 + $0xb0] sm:$0xff] %vm261, %v931
      %964 = vst.msk [vmem:[#allocation2 + $0xb8] sm:$0xff] %vm261, %v932
      %965 = vst.msk [vmem:[#allocation2 + $0xc0] sm:$0xff] %vm261, %v933
      %966 = vst.msk [vmem:[#allocation2 + $0xc8] sm:$0xff] %vm261, %v934
      %967 = vst.msk [vmem:[#allocation2 + $0xd0] sm:$0xff] %vm261, %v935
      %968 = vst.msk [vmem:[#allocation2 + $0xd8] sm:$0xff] %vm261, %v936
      %969 = vst.msk [vmem:[#allocation2 + $0xe0] sm:$0xff] %vm261, %v937
      %970 = vst.msk [vmem:[#allocation2 + $0xe8] sm:$0xff] %vm261, %v938
      %971 = vst.msk [vmem:[#allocation2 + $0xf0] sm:$0xff] %vm261, %v939
      %972 = vst.msk [vmem:[#allocation2 + $0xf8] sm:$0xff] %vm261, %v940
      %v973 = vld [vmem:[%s251 + $0x2] sm:$0xff]
      %v974 = vld [vmem:[%s251 + $0xa] sm:$0xff]
      %v975 = vld [vmem:[%s251 + $0x1a] sm:$0xff]
      %v976 = vld [vmem:[%s251 + $0x22] sm:$0xff]
      %v977 = vld [vmem:[%s251 + $0x32] sm:$0xff]
      %v978 = vld [vmem:[%s251 + $0x3a] sm:$0xff]
      %v979 = vld [vmem:[%s251 + $0x4a] sm:$0xff]
      %v980 = vld [vmem:[%s251 + $0x52] sm:$0xff]
      %v981 = vld [vmem:[%s251 + $0x62] sm:$0xff]
      %v982 = vld [vmem:[%s251 + $0x6a] sm:$0xff]
      %v983 = vld [vmem:[%s251 + $0x7a] sm:$0xff]
      %v984 = vld [vmem:[%s251 + $0x82] sm:$0xff]
      %v985 = vld [vmem:[%s251 + $0x92] sm:$0xff]
      %v986 = vld [vmem:[%s251 + $0x9a] sm:$0xff]
      %v987 = vld [vmem:[%s251 + $0xaa] sm:$0xff]
      %v988 = vld [vmem:[%s251 + $0xb2] sm:$0xff]
      %v989 = vld [vmem:[%s251 + $0xc2] sm:$0xff]
      %v990 = vld [vmem:[%s251 + $0xca] sm:$0xff]
      %v991 = vld [vmem:[%s251 + $0xda] sm:$0xff]
      %v992 = vld [vmem:[%s251 + $0xe2] sm:$0xff]
      %v993 = vld [vmem:[%s251 + $0xf2] sm:$0xff]
      %v994 = vld [vmem:[%s251 + $0xfa] sm:$0xff]
      %v995 = vld [vmem:[%s251 + $0x10a] sm:$0xff]
      %v996 = vld [vmem:[%s251 + $0x112] sm:$0xff]
      %v997 = vld [vmem:[%s251 + $0x122] sm:$0xff]
      %v998 = vld [vmem:[%s251 + $0x12a] sm:$0xff]
      %v999 = vld [vmem:[%s251 + $0x13a] sm:$0xff]
      %v1000 = vld [vmem:[%s251 + $0x142] sm:$0xff]
      %v1001 = vld [vmem:[%s251 + $0x152] sm:$0xff]
      %v1002 = vld [vmem:[%s251 + $0x15a] sm:$0xff]
      %v1003 = vld [vmem:[%s251 + $0x16a] sm:$0xff]
      %v1004 = vld [vmem:[%s251 + $0x172] sm:$0xff]
      %v1005 = vld [vmem:[#allocation2] sm:$0xff]
      %v1006 = vld [vmem:[#allocation2 + $0x8] sm:$0xff]
      %v1007 = vld [vmem:[#allocation2 + $0x10] sm:$0xff]
      %v1008 = vld [vmem:[#allocation2 + $0x18] sm:$0xff]
      %v1009 = vld [vmem:[#allocation2 + $0x20] sm:$0xff]
      %v1010 = vld [vmem:[#allocation2 + $0x28] sm:$0xff]
      %v1011 = vld [vmem:[#allocation2 + $0x30] sm:$0xff]
      %v1012 = vld [vmem:[#allocation2 + $0x38] sm:$0xff]
      %v1013 = vld [vmem:[#allocation2 + $0x40] sm:$0xff]
      %v1014 = vld [vmem:[#allocation2 + $0x48] sm:$0xff]
      %v1015 = vld [vmem:[#allocation2 + $0x50] sm:$0xff]
      %v1016 = vld [vmem:[#allocation2 + $0x58] sm:$0xff]
      %v1017 = vld [vmem:[#allocation2 + $0x60] sm:$0xff]
      %v1018 = vld [vmem:[#allocation2 + $0x68] sm:$0xff]
      %v1019 = vld [vmem:[#allocation2 + $0x70] sm:$0xff]
      %v1020 = vld [vmem:[#allocation2 + $0x78] sm:$0xff]
      %v1021 = vld [vmem:[#allocation2 + $0x80] sm:$0xff]
      %v1022 = vld [vmem:[#allocation2 + $0x88] sm:$0xff]
      %v1023 = vld [vmem:[#allocation2 + $0x90] sm:$0xff]
      %v1024 = vld [vmem:[#allocation2 + $0x98] sm:$0xff]
      %v1025 = vld [vmem:[#allocation2 + $0xa0] sm:$0xff]
      %v1026 = vld [vmem:[#allocation2 + $0xa8] sm:$0xff]
      %v1027 = vld [vmem:[#allocation2 + $0xb0] sm:$0xff]
      %v1028 = vld [vmem:[#allocation2 + $0xb8] sm:$0xff]
      %v1029 = vld [vmem:[#allocation2 + $0xc0] sm:$0xff]
      %v1030 = vld [vmem:[#allocation2 + $0xc8] sm:$0xff]
      %v1031 = vld [vmem:[#allocation2 + $0xd0] sm:$0xff]
      %v1032 = vld [vmem:[#allocation2 + $0xd8] sm:$0xff]
      %v1033 = vld [vmem:[#allocation2 + $0xe0] sm:$0xff]
      %v1034 = vld [vmem:[#allocation2 + $0xe8] sm:$0xff]
      %v1035 = vld [vmem:[#allocation2 + $0xf0] sm:$0xff]
      %v1036 = vld [vmem:[#allocation2 + $0xf8] sm:$0xff]
      %s1037 = scalar_lea.vmem %s1, 32
      %v1038 = vld [vmem:[%s1037] sm:$0xff]
      %v1039 = vld [vmem:[%s1037 + $0x8] sm:$0xff]
      %v1041 = vsel %vm261, %v973, 0
      %v1044 = vsel %vm261, %v974, 0
      %v1047 = vsel %vm261, %v975, 0
      %v1050 = vsel %vm261, %v976, 0
      %v1053 = vsel %vm261, %v977, 0
      %v1056 = vsel %vm261, %v978, 0
      %v1059 = vsel %vm261, %v979, 0
      %v1062 = vsel %vm261, %v980, 0
      %v1065 = vsel %vm261, %v981, 0
      %v1068 = vsel %vm261, %v982, 0
      %v1071 = vsel %vm261, %v983, 0
      %v1074 = vsel %vm261, %v984, 0
      %v1077 = vsel %vm261, %v985, 0
      %v1080 = vsel %vm261, %v986, 0
      %v1083 = vsel %vm261, %v987, 0
      %v1086 = vsel %vm261, %v988, 0
      %v1089 = vsel %vm261, %v989, 0
      %v1092 = vsel %vm261, %v990, 0
      %v1095 = vsel %vm261, %v991, 0
      %v1098 = vsel %vm261, %v992, 0
      %v1101 = vsel %vm261, %v993, 0
      %v1104 = vsel %vm261, %v994, 0
      %v1107 = vsel %vm261, %v995, 0
      %v1110 = vsel %vm261, %v996, 0
      %v1113 = vsel %vm261, %v997, 0
      %v1116 = vsel %vm261, %v998, 0
      %v1119 = vsel %vm261, %v999, 0
      %v1122 = vsel %vm261, %v1000, 0
      %v1125 = vsel %vm261, %v1001, 0
      %v1128 = vsel %vm261, %v1002, 0
      %v1131 = vsel %vm261, %v1003, 0
      %v1134 = vsel %vm261, %v1004, 0
      %1136 = vmatpush.msra.mxu0 0.0
      %1137 = vmatpush.msra.mxu0 0.0
      %1138 = vmatpush.msra.mxu0 0.0
      %1139 = vmatpush.msra.mxu0 0.0
      %1140 = vmatpush.msra.mxu0 0.0
      %1141 = vmatpush.msra.mxu0 0.0
      %1142 = vmatpush.msra.mxu0 0.0
      %1143 = vmatpush.msra.mxu0 0.0
      %1144 = vmatpush.msra.mxu0 0.0
      %1145 = vmatpush.msra.mxu0 0.0
      %1146 = vmatpush.msra.mxu0 0.0
      %1147 = vmatpush.msra.mxu0 0.0
      %1148 = vmatpush.msra.mxu0 0.0
      %1149 = vmatpush.msra.mxu0 0.0
      %1150 = vmatpush.msra.mxu0 %v1039
      %1151 = vmatpush.msra.mxu0 %v1038
      %1152 = vmatmul.f32.gmra.mxu0 %v1041
      %v1153 = vpop.f32.mrf.mxu0
      %v1154 = vadd.f32 0.0, %v1153
      %1155 = vmatmul.f32.gmra.mxu0 %v1044
      %v1156 = vpop.f32.mrf.mxu0
      %v1157 = vadd.f32 0.0, %v1156
      %1158 = vmatmul.f32.gmra.mxu0 %v1047
      %v1159 = vpop.f32.mrf.mxu0
      %v1160 = vadd.f32 0.0, %v1159
      %1161 = vmatmul.f32.gmra.mxu0 %v1050
      %v1162 = vpop.f32.mrf.mxu0
      %v1163 = vadd.f32 0.0, %v1162
      %1164 = vmatmul.f32.gmra.mxu0 %v1053
      %v1165 = vpop.f32.mrf.mxu0
      %v1166 = vadd.f32 0.0, %v1165
      %1167 = vmatmul.f32.gmra.mxu0 %v1056
      %v1168 = vpop.f32.mrf.mxu0
      %v1169 = vadd.f32 0.0, %v1168
      %1170 = vmatmul.f32.gmra.mxu0 %v1059
      %v1171 = vpop.f32.mrf.mxu0
      %v1172 = vadd.f32 0.0, %v1171
      %1173 = vmatmul.f32.gmra.mxu0 %v1062
      %v1174 = vpop.f32.mrf.mxu0
      %v1175 = vadd.f32 0.0, %v1174
      %1176 = vmatmul.f32.gmra.mxu0 %v1065
      %v1177 = vpop.f32.mrf.mxu0
      %v1178 = vadd.f32 0.0, %v1177
      %1179 = vmatmul.f32.gmra.mxu0 %v1068
      %v1180 = vpop.f32.mrf.mxu0
      %v1181 = vadd.f32 0.0, %v1180
      %1182 = vmatmul.f32.gmra.mxu0 %v1071
      %v1183 = vpop.f32.mrf.mxu0
      %v1184 = vadd.f32 0.0, %v1183
      %1185 = vmatmul.f32.gmra.mxu0 %v1074
      %v1186 = vpop.f32.mrf.mxu0
      %v1187 = vadd.f32 0.0, %v1186
      %1188 = vmatmul.f32.gmra.mxu0 %v1077
      %v1189 = vpop.f32.mrf.mxu0
      %v1190 = vadd.f32 0.0, %v1189
      %1191 = vmatmul.f32.gmra.mxu0 %v1080
      %v1192 = vpop.f32.mrf.mxu0
      %v1193 = vadd.f32 0.0, %v1192
      %1194 = vmatmul.f32.gmra.mxu0 %v1083
      %v1195 = vpop.f32.mrf.mxu0
      %v1196 = vadd.f32 0.0, %v1195
      %1197 = vmatmul.f32.gmra.mxu0 %v1086
      %v1198 = vpop.f32.mrf.mxu0
      %v1199 = vadd.f32 0.0, %v1198
      %1200 = vmatmul.f32.gmra.mxu0 %v1089
      %v1201 = vpop.f32.mrf.mxu0
      %v1202 = vadd.f32 0.0, %v1201
      %1203 = vmatmul.f32.gmra.mxu0 %v1092
      %v1204 = vpop.f32.mrf.mxu0
      %v1205 = vadd.f32 0.0, %v1204
      %1206 = vmatmul.f32.gmra.mxu0 %v1095
      %v1207 = vpop.f32.mrf.mxu0
      %v1208 = vadd.f32 0.0, %v1207
      %1209 = vmatmul.f32.gmra.mxu0 %v1098
      %v1210 = vpop.f32.mrf.mxu0
      %v1211 = vadd.f32 0.0, %v1210
      %1212 = vmatmul.f32.gmra.mxu0 %v1101
      %v1213 = vpop.f32.mrf.mxu0
      %v1214 = vadd.f32 0.0, %v1213
      %1215 = vmatmul.f32.gmra.mxu0 %v1104
      %v1216 = vpop.f32.mrf.mxu0
      %v1217 = vadd.f32 0.0, %v1216
      %1218 = vmatmul.f32.gmra.mxu0 %v1107
      %v1219 = vpop.f32.mrf.mxu0
      %v1220 = vadd.f32 0.0, %v1219
      %1221 = vmatmul.f32.gmra.mxu0 %v1110
      %v1222 = vpop.f32.mrf.mxu0
      %v1223 = vadd.f32 0.0, %v1222
      %1224 = vmatmul.f32.gmra.mxu0 %v1113
      %v1225 = vpop.f32.mrf.mxu0
      %v1226 = vadd.f32 0.0, %v1225
      %1227 = vmatmul.f32.gmra.mxu0 %v1116
      %v1228 = vpop.f32.mrf.mxu0
      %v1229 = vadd.f32 0.0, %v1228
      %1230 = vmatmul.f32.gmra.mxu0 %v1119
      %v1231 = vpop.f32.mrf.mxu0
      %v1232 = vadd.f32 0.0, %v1231
      %1233 = vmatmul.f32.gmra.mxu0 %v1122
      %v1234 = vpop.f32.mrf.mxu0
      %v1235 = vadd.f32 0.0, %v1234
      %1236 = vmatmul.f32.gmra.mxu0 %v1125
      %v1237 = vpop.f32.mrf.mxu0
      %v1238 = vadd.f32 0.0, %v1237
      %1239 = vmatmul.f32.gmra.mxu0 %v1128
      %v1240 = vpop.f32.mrf.mxu0
      %v1241 = vadd.f32 0.0, %v1240
      %1242 = vmatmul.f32.gmra.mxu0 %v1131
      %v1243 = vpop.f32.mrf.mxu0
      %v1244 = vadd.f32 0.0, %v1243
      %1245 = vmatmul.f32.gmra.mxu0 %v1134
      %v1246 = vpop.f32.mrf.mxu0
      %v1247 = vadd.f32 0.0, %v1246
      %1248 = vdwg.mxu0
      %v1249 = vadd.f32 %v1005, %v1154
      %v1250 = vadd.f32 %v1006, %v1157
      %v1251 = vadd.f32 %v1007, %v1160
      %v1252 = vadd.f32 %v1008, %v1163
      %v1253 = vadd.f32 %v1009, %v1166
      %v1254 = vadd.f32 %v1010, %v1169
      %v1255 = vadd.f32 %v1011, %v1172
      %v1256 = vadd.f32 %v1012, %v1175
      %v1257 = vadd.f32 %v1013, %v1178
      %v1258 = vadd.f32 %v1014, %v1181
      %v1259 = vadd.f32 %v1015, %v1184
      %v1260 = vadd.f32 %v1016, %v1187
      %v1261 = vadd.f32 %v1017, %v1190
      %v1262 = vadd.f32 %v1018, %v1193
      %v1263 = vadd.f32 %v1019, %v1196
      %v1264 = vadd.f32 %v1020, %v1199
      %v1265 = vadd.f32 %v1021, %v1202
      %v1266 = vadd.f32 %v1022, %v1205
      %v1267 = vadd.f32 %v1023, %v1208
      %v1268 = vadd.f32 %v1024, %v1211
      %v1269 = vadd.f32 %v1025, %v1214
      %v1270 = vadd.f32 %v1026, %v1217
      %v1271 = vadd.f32 %v1027, %v1220
      %v1272 = vadd.f32 %v1028, %v1223
      %v1273 = vadd.f32 %v1029, %v1226
      %v1274 = vadd.f32 %v1030, %v1229
      %v1275 = vadd.f32 %v1031, %v1232
      %v1276 = vadd.f32 %v1032, %v1235
      %v1277 = vadd.f32 %v1033, %v1238
      %v1278 = vadd.f32 %v1034, %v1241
      %v1279 = vadd.f32 %v1035, %v1244
      %v1280 = vadd.f32 %v1036, %v1247
      %1281 = vst.msk [vmem:[#allocation2] sm:$0xff] %vm261, %v1249
      %1282 = vst.msk [vmem:[#allocation2 + $0x8] sm:$0xff] %vm261, %v1250
      %1283 = vst.msk [vmem:[#allocation2 + $0x10] sm:$0xff] %vm261, %v1251
      %1284 = vst.msk [vmem:[#allocation2 + $0x18] sm:$0xff] %vm261, %v1252
      %1285 = vst.msk [vmem:[#allocation2 + $0x20] sm:$0xff] %vm261, %v1253
      %1286 = vst.msk [vmem:[#allocation2 + $0x28] sm:$0xff] %vm261, %v1254
      %1287 = vst.msk [vmem:[#allocation2 + $0x30] sm:$0xff] %vm261, %v1255
      %1288 = vst.msk [vmem:[#allocation2 + $0x38] sm:$0xff] %vm261, %v1256
      %1289 = vst.msk [vmem:[#allocation2 + $0x40] sm:$0xff] %vm261, %v1257
      %1290 = vst.msk [vmem:[#allocation2 + $0x48] sm:$0xff] %vm261, %v1258
      %1291 = vst.msk [vmem:[#allocation2 + $0x50] sm:$0xff] %vm261, %v1259
      %1292 = vst.msk [vmem:[#allocation2 + $0x58] sm:$0xff] %vm261, %v1260
      %1293 = vst.msk [vmem:[#allocation2 + $0x60] sm:$0xff] %vm261, %v1261
      %1294 = vst.msk [vmem:[#allocation2 + $0x68] sm:$0xff] %vm261, %v1262
      %1295 = vst.msk [vmem:[#allocation2 + $0x70] sm:$0xff] %vm261, %v1263
      %1296 = vst.msk [vmem:[#allocation2 + $0x78] sm:$0xff] %vm261, %v1264
      %1297 = vst.msk [vmem:[#allocation2 + $0x80] sm:$0xff] %vm261, %v1265
      %1298 = vst.msk [vmem:[#allocation2 + $0x88] sm:$0xff] %vm261, %v1266
      %1299 = vst.msk [vmem:[#allocation2 + $0x90] sm:$0xff] %vm261, %v1267
      %1300 = vst.msk [vmem:[#allocation2 + $0x98] sm:$0xff] %vm261, %v1268
      %1301 = vst.msk [vmem:[#allocation2 + $0xa0] sm:$0xff] %vm261, %v1269
      %1302 = vst.msk [vmem:[#allocation2 + $0xa8] sm:$0xff] %vm261, %v1270
      %1303 = vst.msk [vmem:[#allocation2 + $0xb0] sm:$0xff] %vm261, %v1271
      %1304 = vst.msk [vmem:[#allocation2 + $0xb8] sm:$0xff] %vm261, %v1272
      %1305 = vst.msk [vmem:[#allocation2 + $0xc0] sm:$0xff] %vm261, %v1273
      %1306 = vst.msk [vmem:[#allocation2 + $0xc8] sm:$0xff] %vm261, %v1274
      %1307 = vst.msk [vmem:[#allocation2 + $0xd0] sm:$0xff] %vm261, %v1275
      %1308 = vst.msk [vmem:[#allocation2 + $0xd8] sm:$0xff] %vm261, %v1276
      %1309 = vst.msk [vmem:[#allocation2 + $0xe0] sm:$0xff] %vm261, %v1277
      %1310 = vst.msk [vmem:[#allocation2 + $0xe8] sm:$0xff] %vm261, %v1278
      %1311 = vst.msk [vmem:[#allocation2 + $0xf0] sm:$0xff] %vm261, %v1279
      %1312 = vst.msk [vmem:[#allocation2 + $0xf8] sm:$0xff] %vm261, %v1280
      %s1313 = scalar_lea.vmem %s251, 24
      %v1314 = vld [vmem:[%s1313] sm:$0xff]
      %v1315 = vld [vmem:[%s1313 + $0x8] sm:$0xff]
      %v1316 = vld [vmem:[%s1313 + $0x18] sm:$0xff]
      %v1317 = vld [vmem:[%s1313 + $0x20] sm:$0xff]
      %v1318 = vld [vmem:[%s1313 + $0x30] sm:$0xff]
      %v1319 = vld [vmem:[%s1313 + $0x38] sm:$0xff]
      %v1320 = vld [vmem:[%s1313 + $0x48] sm:$0xff]
      %v1321 = vld [vmem:[%s1313 + $0x50] sm:$0xff]
      %v1322 = vld [vmem:[%s1313 + $0x60] sm:$0xff]
      %v1323 = vld [vmem:[%s1313 + $0x68] sm:$0xff]
      %v1324 = vld [vmem:[%s1313 + $0x78] sm:$0xff]
      %v1325 = vld [vmem:[%s1313 + $0x80] sm:$0xff]
      %v1326 = vld [vmem:[%s1313 + $0x90] sm:$0xff]
      %v1327 = vld [vmem:[%s1313 + $0x98] sm:$0xff]
      %v1328 = vld [vmem:[%s1313 + $0xa8] sm:$0xff]
      %v1329 = vld [vmem:[%s1313 + $0xb0] sm:$0xff]
      %v1330 = vld [vmem:[%s1313 + $0xc0] sm:$0xff]
      %v1331 = vld [vmem:[%s1313 + $0xc8] sm:$0xff]
      %v1332 = vld [vmem:[%s1313 + $0xd8] sm:$0xff]
      %v1333 = vld [vmem:[%s1313 + $0xe0] sm:$0xff]
      %v1334 = vld [vmem:[%s1313 + $0xf0] sm:$0xff]
      %v1335 = vld [vmem:[%s1313 + $0xf8] sm:$0xff]
      %v1336 = vld [vmem:[%s1313 + $0x108] sm:$0xff]
      %v1337 = vld [vmem:[%s1313 + $0x110] sm:$0xff]
      %v1338 = vld [vmem:[%s1313 + $0x120] sm:$0xff]
      %v1339 = vld [vmem:[%s1313 + $0x128] sm:$0xff]
      %v1340 = vld [vmem:[%s1313 + $0x138] sm:$0xff]
      %v1341 = vld [vmem:[%s1313 + $0x140] sm:$0xff]
      %v1342 = vld [vmem:[%s1313 + $0x150] sm:$0xff]
      %v1343 = vld [vmem:[%s1313 + $0x158] sm:$0xff]
      %v1344 = vld [vmem:[%s1313 + $0x168] sm:$0xff]
      %v1345 = vld [vmem:[%s1313 + $0x170] sm:$0xff]
      %v1346 = vld [vmem:[#allocation2] sm:$0xff]
      %v1347 = vld [vmem:[#allocation2 + $0x8] sm:$0xff]
      %v1348 = vld [vmem:[#allocation2 + $0x10] sm:$0xff]
      %v1349 = vld [vmem:[#allocation2 + $0x18] sm:$0xff]
      %v1350 = vld [vmem:[#allocation2 + $0x20] sm:$0xff]
      %v1351 = vld [vmem:[#allocation2 + $0x28] sm:$0xff]
      %v1352 = vld [vmem:[#allocation2 + $0x30] sm:$0xff]
      %v1353 = vld [vmem:[#allocation2 + $0x38] sm:$0xff]
      %v1354 = vld [vmem:[#allocation2 + $0x40] sm:$0xff]
      %v1355 = vld [vmem:[#allocation2 + $0x48] sm:$0xff]
      %v1356 = vld [vmem:[#allocation2 + $0x50] sm:$0xff]
      %v1357 = vld [vmem:[#allocation2 + $0x58] sm:$0xff]
      %v1358 = vld [vmem:[#allocation2 + $0x60] sm:$0xff]
      %v1359 = vld [vmem:[#allocation2 + $0x68] sm:$0xff]
      %v1360 = vld [vmem:[#allocation2 + $0x70] sm:$0xff]
      %v1361 = vld [vmem:[#allocation2 + $0x78] sm:$0xff]
      %v1362 = vld [vmem:[#allocation2 + $0x80] sm:$0xff]
      %v1363 = vld [vmem:[#allocation2 + $0x88] sm:$0xff]
      %v1364 = vld [vmem:[#allocation2 + $0x90] sm:$0xff]
      %v1365 = vld [vmem:[#allocation2 + $0x98] sm:$0xff]
      %v1366 = vld [vmem:[#allocation2 + $0xa0] sm:$0xff]
      %v1367 = vld [vmem:[#allocation2 + $0xa8] sm:$0xff]
      %v1368 = vld [vmem:[#allocation2 + $0xb0] sm:$0xff]
      %v1369 = vld [vmem:[#allocation2 + $0xb8] sm:$0xff]
      %v1370 = vld [vmem:[#allocation2 + $0xc0] sm:$0xff]
      %v1371 = vld [vmem:[#allocation2 + $0xc8] sm:$0xff]
      %v1372 = vld [vmem:[#allocation2 + $0xd0] sm:$0xff]
      %v1373 = vld [vmem:[#allocation2 + $0xd8] sm:$0xff]
      %v1374 = vld [vmem:[#allocation2 + $0xe0] sm:$0xff]
      %v1375 = vld [vmem:[#allocation2 + $0xe8] sm:$0xff]
      %v1376 = vld [vmem:[#allocation2 + $0xf0] sm:$0xff]
      %v1377 = vld [vmem:[#allocation2 + $0xf8] sm:$0xff]
      %s1378 = scalar_lea.vmem %s1, 48
      %v1379 = vld [vmem:[%s1378] sm:$0xff]
      %v1380 = vld [vmem:[%s1378 + $0x8] sm:$0xff]
      %v1382 = vsel %vm261, %v1314, 0
      %v1385 = vsel %vm261, %v1315, 0
      %v1388 = vsel %vm261, %v1316, 0
      %v1391 = vsel %vm261, %v1317, 0
      %v1394 = vsel %vm261, %v1318, 0
      %v1397 = vsel %vm261, %v1319, 0
      %v1400 = vsel %vm261, %v1320, 0
      %v1403 = vsel %vm261, %v1321, 0
      %v1406 = vsel %vm261, %v1322, 0
      %v1409 = vsel %vm261, %v1323, 0
      %v1412 = vsel %vm261, %v1324, 0
      %v1415 = vsel %vm261, %v1325, 0
      %v1418 = vsel %vm261, %v1326, 0
      %v1421 = vsel %vm261, %v1327, 0
      %v1424 = vsel %vm261, %v1328, 0
      %v1427 = vsel %vm261, %v1329, 0
      %v1430 = vsel %vm261, %v1330, 0
      %v1433 = vsel %vm261, %v1331, 0
      %v1436 = vsel %vm261, %v1332, 0
      %v1439 = vsel %vm261, %v1333, 0
      %v1442 = vsel %vm261, %v1334, 0
      %v1445 = vsel %vm261, %v1335, 0
      %v1448 = vsel %vm261, %v1336, 0
      %v1451 = vsel %vm261, %v1337, 0
      %v1454 = vsel %vm261, %v1338, 0
      %v1457 = vsel %vm261, %v1339, 0
      %v1460 = vsel %vm261, %v1340, 0
      %v1463 = vsel %vm261, %v1341, 0
      %v1466 = vsel %vm261, %v1342, 0
      %v1469 = vsel %vm261, %v1343, 0
      %v1472 = vsel %vm261, %v1344, 0
      %v1475 = vsel %vm261, %v1345, 0
      %1477 = vmatpush.msra.mxu0 0.0
      %1478 = vmatpush.msra.mxu0 0.0
      %1479 = vmatpush.msra.mxu0 0.0
      %1480 = vmatpush.msra.mxu0 0.0
      %1481 = vmatpush.msra.mxu0 0.0
      %1482 = vmatpush.msra.mxu0 0.0
      %1483 = vmatpush.msra.mxu0 0.0
      %1484 = vmatpush.msra.mxu0 0.0
      %1485 = vmatpush.msra.mxu0 0.0
      %1486 = vmatpush.msra.mxu0 0.0
      %1487 = vmatpush.msra.mxu0 0.0
      %1488 = vmatpush.msra.mxu0 0.0
      %1489 = vmatpush.msra.mxu0 0.0
      %1490 = vmatpush.msra.mxu0 0.0
      %1491 = vmatpush.msra.mxu0 %v1380
      %1492 = vmatpush.msra.mxu0 %v1379
      %1493 = vmatmul.f32.gmra.mxu0 %v1382
      %v1494 = vpop.f32.mrf.mxu0
      %v1495 = vadd.f32 0.0, %v1494
      %1496 = vmatmul.f32.gmra.mxu0 %v1385
      %v1497 = vpop.f32.mrf.mxu0
      %v1498 = vadd.f32 0.0, %v1497
      %1499 = vmatmul.f32.gmra.mxu0 %v1388
      %v1500 = vpop.f32.mrf.mxu0
      %v1501 = vadd.f32 0.0, %v1500
      %1502 = vmatmul.f32.gmra.mxu0 %v1391
      %v1503 = vpop.f32.mrf.mxu0
      %v1504 = vadd.f32 0.0, %v1503
      %1505 = vmatmul.f32.gmra.mxu0 %v1394
      %v1506 = vpop.f32.mrf.mxu0
      %v1507 = vadd.f32 0.0, %v1506
      %1508 = vmatmul.f32.gmra.mxu0 %v1397
      %v1509 = vpop.f32.mrf.mxu0
      %v1510 = vadd.f32 0.0, %v1509
      %1511 = vmatmul.f32.gmra.mxu0 %v1400
      %v1512 = vpop.f32.mrf.mxu0
      %v1513 = vadd.f32 0.0, %v1512
      %1514 = vmatmul.f32.gmra.mxu0 %v1403
      %v1515 = vpop.f32.mrf.mxu0
      %v1516 = vadd.f32 0.0, %v1515
      %1517 = vmatmul.f32.gmra.mxu0 %v1406
      %v1518 = vpop.f32.mrf.mxu0
      %v1519 = vadd.f32 0.0, %v1518
      %1520 = vmatmul.f32.gmra.mxu0 %v1409
      %v1521 = vpop.f32.mrf.mxu0
      %v1522 = vadd.f32 0.0, %v1521
      %1523 = vmatmul.f32.gmra.mxu0 %v1412
      %v1524 = vpop.f32.mrf.mxu0
      %v1525 = vadd.f32 0.0, %v1524
      %1526 = vmatmul.f32.gmra.mxu0 %v1415
      %v1527 = vpop.f32.mrf.mxu0
      %v1528 = vadd.f32 0.0, %v1527
      %1529 = vmatmul.f32.gmra.mxu0 %v1418
      %v1530 = vpop.f32.mrf.mxu0
      %v1531 = vadd.f32 0.0, %v1530
      %1532 = vmatmul.f32.gmra.mxu0 %v1421
      %v1533 = vpop.f32.mrf.mxu0
      %v1534 = vadd.f32 0.0, %v1533
      %1535 = vmatmul.f32.gmra.mxu0 %v1424
      %v1536 = vpop.f32.mrf.mxu0
      %v1537 = vadd.f32 0.0, %v1536
      %1538 = vmatmul.f32.gmra.mxu0 %v1427
      %v1539 = vpop.f32.mrf.mxu0
      %v1540 = vadd.f32 0.0, %v1539
      %1541 = vmatmul.f32.gmra.mxu0 %v1430
      %v1542 = vpop.f32.mrf.mxu0
      %v1543 = vadd.f32 0.0, %v1542
      %1544 = vmatmul.f32.gmra.mxu0 %v1433
      %v1545 = vpop.f32.mrf.mxu0
      %v1546 = vadd.f32 0.0, %v1545
      %1547 = vmatmul.f32.gmra.mxu0 %v1436
      %v1548 = vpop.f32.mrf.mxu0
      %v1549 = vadd.f32 0.0, %v1548
      %1550 = vmatmul.f32.gmra.mxu0 %v1439
      %v1551 = vpop.f32.mrf.mxu0
      %v1552 = vadd.f32 0.0, %v1551
      %1553 = vmatmul.f32.gmra.mxu0 %v1442
      %v1554 = vpop.f32.mrf.mxu0
      %v1555 = vadd.f32 0.0, %v1554
      %1556 = vmatmul.f32.gmra.mxu0 %v1445
      %v1557 = vpop.f32.mrf.mxu0
      %v1558 = vadd.f32 0.0, %v1557
      %1559 = vmatmul.f32.gmra.mxu0 %v1448
      %v1560 = vpop.f32.mrf.mxu0
      %v1561 = vadd.f32 0.0, %v1560
      %1562 = vmatmul.f32.gmra.mxu0 %v1451
      %v1563 = vpop.f32.mrf.mxu0
      %v1564 = vadd.f32 0.0, %v1563
      %1565 = vmatmul.f32.gmra.mxu0 %v1454
      %v1566 = vpop.f32.mrf.mxu0
      %v1567 = vadd.f32 0.0, %v1566
      %1568 = vmatmul.f32.gmra.mxu0 %v1457
      %v1569 = vpop.f32.mrf.mxu0
      %v1570 = vadd.f32 0.0, %v1569
      %1571 = vmatmul.f32.gmra.mxu0 %v1460
      %v1572 = vpop.f32.mrf.mxu0
      %v1573 = vadd.f32 0.0, %v1572
      %1574 = vmatmul.f32.gmra.mxu0 %v1463
      %v1575 = vpop.f32.mrf.mxu0
      %v1576 = vadd.f32 0.0, %v1575
      %1577 = vmatmul.f32.gmra.mxu0 %v1466
      %v1578 = vpop.f32.mrf.mxu0
      %v1579 = vadd.f32 0.0, %v1578
      %1580 = vmatmul.f32.gmra.mxu0 %v1469
      %v1581 = vpop.f32.mrf.mxu0
      %v1582 = vadd.f32 0.0, %v1581
      %1583 = vmatmul.f32.gmra.mxu0 %v1472
      %v1584 = vpop.f32.mrf.mxu0
      %v1585 = vadd.f32 0.0, %v1584
      %1586 = vmatmul.f32.gmra.mxu0 %v1475
      %v1587 = vpop.f32.mrf.mxu0
      %v1588 = vadd.f32 0.0, %v1587
      %1589 = vdwg.mxu0
      %v1590 = vadd.f32 %v1346, %v1495
      %v1591 = vadd.f32 %v1347, %v1498
      %v1592 = vadd.f32 %v1348, %v1501
      %v1593 = vadd.f32 %v1349, %v1504
      %v1594 = vadd.f32 %v1350, %v1507
      %v1595 = vadd.f32 %v1351, %v1510
      %v1596 = vadd.f32 %v1352, %v1513
      %v1597 = vadd.f32 %v1353, %v1516
      %v1598 = vadd.f32 %v1354, %v1519
      %v1599 = vadd.f32 %v1355, %v1522
      %v1600 = vadd.f32 %v1356, %v1525
      %v1601 = vadd.f32 %v1357, %v1528
      %v1602 = vadd.f32 %v1358, %v1531
      %v1603 = vadd.f32 %v1359, %v1534
      %v1604 = vadd.f32 %v1360, %v1537
      %v1605 = vadd.f32 %v1361, %v1540
      %v1606 = vadd.f32 %v1362, %v1543
      %v1607 = vadd.f32 %v1363, %v1546
      %v1608 = vadd.f32 %v1364, %v1549
      %v1609 = vadd.f32 %v1365, %v1552
      %v1610 = vadd.f32 %v1366, %v1555
      %v1611 = vadd.f32 %v1367, %v1558
      %v1612 = vadd.f32 %v1368, %v1561
      %v1613 = vadd.f32 %v1369, %v1564
      %v1614 = vadd.f32 %v1370, %v1567
      %v1615 = vadd.f32 %v1371, %v1570
      %v1616 = vadd.f32 %v1372, %v1573
      %v1617 = vadd.f32 %v1373, %v1576
      %v1618 = vadd.f32 %v1374, %v1579
      %v1619 = vadd.f32 %v1375, %v1582
      %v1620 = vadd.f32 %v1376, %v1585
      %v1621 = vadd.f32 %v1377, %v1588
      %1622 = vst.msk [vmem:[#allocation2] sm:$0xff] %vm261, %v1590
      %1623 = vst.msk [vmem:[#allocation2 + $0x8] sm:$0xff] %vm261, %v1591
      %1624 = vst.msk [vmem:[#allocation2 + $0x10] sm:$0xff] %vm261, %v1592
      %1625 = vst.msk [vmem:[#allocation2 + $0x18] sm:$0xff] %vm261, %v1593
      %1626 = vst.msk [vmem:[#allocation2 + $0x20] sm:$0xff] %vm261, %v1594
      %1627 = vst.msk [vmem:[#allocation2 + $0x28] sm:$0xff] %vm261, %v1595
      %1628 = vst.msk [vmem:[#allocation2 + $0x30] sm:$0xff] %vm261, %v1596
      %1629 = vst.msk [vmem:[#allocation2 + $0x38] sm:$0xff] %vm261, %v1597
      %1630 = vst.msk [vmem:[#allocation2 + $0x40] sm:$0xff] %vm261, %v1598
      %1631 = vst.msk [vmem:[#allocation2 + $0x48] sm:$0xff] %vm261, %v1599
      %1632 = vst.msk [vmem:[#allocation2 + $0x50] sm:$0xff] %vm261, %v1600
      %1633 = vst.msk [vmem:[#allocation2 + $0x58] sm:$0xff] %vm261, %v1601
      %1634 = vst.msk [vmem:[#allocation2 + $0x60] sm:$0xff] %vm261, %v1602
      %1635 = vst.msk [vmem:[#allocation2 + $0x68] sm:$0xff] %vm261, %v1603
      %1636 = vst.msk [vmem:[#allocation2 + $0x70] sm:$0xff] %vm261, %v1604
      %1637 = vst.msk [vmem:[#allocation2 + $0x78] sm:$0xff] %vm261, %v1605
      %1638 = vst.msk [vmem:[#allocation2 + $0x80] sm:$0xff] %vm261, %v1606
      %1639 = vst.msk [vmem:[#allocation2 + $0x88] sm:$0xff] %vm261, %v1607
      %1640 = vst.msk [vmem:[#allocation2 + $0x90] sm:$0xff] %vm261, %v1608
      %1641 = vst.msk [vmem:[#allocation2 + $0x98] sm:$0xff] %vm261, %v1609
      %1642 = vst.msk [vmem:[#allocation2 + $0xa0] sm:$0xff] %vm261, %v1610
      %1643 = vst.msk [vmem:[#allocation2 + $0xa8] sm:$0xff] %vm261, %v1611
      %1644 = vst.msk [vmem:[#allocation2 + $0xb0] sm:$0xff] %vm261, %v1612
      %1645 = vst.msk [vmem:[#allocation2 + $0xb8] sm:$0xff] %vm261, %v1613
      %1646 = vst.msk [vmem:[#allocation2 + $0xc0] sm:$0xff] %vm261, %v1614
      %1647 = vst.msk [vmem:[#allocation2 + $0xc8] sm:$0xff] %vm261, %v1615
      %1648 = vst.msk [vmem:[#allocation2 + $0xd0] sm:$0xff] %vm261, %v1616
      %1649 = vst.msk [vmem:[#allocation2 + $0xd8] sm:$0xff] %vm261, %v1617
      %1650 = vst.msk [vmem:[#allocation2 + $0xe0] sm:$0xff] %vm261, %v1618
      %1651 = vst.msk [vmem:[#allocation2 + $0xe8] sm:$0xff] %vm261, %v1619
      %1652 = vst.msk [vmem:[#allocation2 + $0xf0] sm:$0xff] %vm261, %v1620
      %1653 = vst.msk [vmem:[#allocation2 + $0xf8] sm:$0xff] %vm261, %v1621
      %v1654 = vld [vmem:[%s1313 + $0x1] sm:$0xff]
      %v1655 = vld [vmem:[%s1313 + $0x9] sm:$0xff]
      %v1656 = vld [vmem:[%s1313 + $0x19] sm:$0xff]
      %v1657 = vld [vmem:[%s1313 + $0x21] sm:$0xff]
      %v1658 = vld [vmem:[%s1313 + $0x31] sm:$0xff]
      %v1659 = vld [vmem:[%s1313 + $0x39] sm:$0xff]
      %v1660 = vld [vmem:[%s1313 + $0x49] sm:$0xff]
      %v1661 = vld [vmem:[%s1313 + $0x51] sm:$0xff]
      %v1662 = vld [vmem:[%s1313 + $0x61] sm:$0xff]
      %v1663 = vld [vmem:[%s1313 + $0x69] sm:$0xff]
      %v1664 = vld [vmem:[%s1313 + $0x79] sm:$0xff]
      %v1665 = vld [vmem:[%s1313 + $0x81] sm:$0xff]
      %v1666 = vld [vmem:[%s1313 + $0x91] sm:$0xff]
      %v1667 = vld [vmem:[%s1313 + $0x99] sm:$0xff]
      %v1668 = vld [vmem:[%s1313 + $0xa9] sm:$0xff]
      %v1669 = vld [vmem:[%s1313 + $0xb1] sm:$0xff]
      %v1670 = vld [vmem:[%s1313 + $0xc1] sm:$0xff]
      %v1671 = vld [vmem:[%s1313 + $0xc9] sm:$0xff]
      %v1672 = vld [vmem:[%s1313 + $0xd9] sm:$0xff]
      %v1673 = vld [vmem:[%s1313 + $0xe1] sm:$0xff]
      %v1674 = vld [vmem:[%s1313 + $0xf1] sm:$0xff]
      %v1675 = vld [vmem:[%s1313 + $0xf9] sm:$0xff]
      %v1676 = vld [vmem:[%s1313 + $0x109] sm:$0xff]
      %v1677 = vld [vmem:[%s1313 + $0x111] sm:$0xff]
      %v1678 = vld [vmem:[%s1313 + $0x121] sm:$0xff]
      %v1679 = vld [vmem:[%s1313 + $0x129] sm:$0xff]
      %v1680 = vld [vmem:[%s1313 + $0x139] sm:$0xff]
      %v1681 = vld [vmem:[%s1313 + $0x141] sm:$0xff]
      %v1682 = vld [vmem:[%s1313 + $0x151] sm:$0xff]
      %v1683 = vld [vmem:[%s1313 + $0x159] sm:$0xff]
      %v1684 = vld [vmem:[%s1313 + $0x169] sm:$0xff]
      %v1685 = vld [vmem:[%s1313 + $0x171] sm:$0xff]
      %v1686 = vld [vmem:[#allocation2] sm:$0xff]
      %v1687 = vld [vmem:[#allocation2 + $0x8] sm:$0xff]
      %v1688 = vld [vmem:[#allocation2 + $0x10] sm:$0xff]
      %v1689 = vld [vmem:[#allocation2 + $0x18] sm:$0xff]
      %v1690 = vld [vmem:[#allocation2 + $0x20] sm:$0xff]
      %v1691 = vld [vmem:[#allocation2 + $0x28] sm:$0xff]
      %v1692 = vld [vmem:[#allocation2 + $0x30] sm:$0xff]
      %v1693 = vld [vmem:[#allocation2 + $0x38] sm:$0xff]
      %v1694 = vld [vmem:[#allocation2 + $0x40] sm:$0xff]
      %v1695 = vld [vmem:[#allocation2 + $0x48] sm:$0xff]
      %v1696 = vld [vmem:[#allocation2 + $0x50] sm:$0xff]
      %v1697 = vld [vmem:[#allocation2 + $0x58] sm:$0xff]
      %v1698 = vld [vmem:[#allocation2 + $0x60] sm:$0xff]
      %v1699 = vld [vmem:[#allocation2 + $0x68] sm:$0xff]
      %v1700 = vld [vmem:[#allocation2 + $0x70] sm:$0xff]
      %v1701 = vld [vmem:[#allocation2 + $0x78] sm:$0xff]
      %v1702 = vld [vmem:[#allocation2 + $0x80] sm:$0xff]
      %v1703 = vld [vmem:[#allocation2 + $0x88] sm:$0xff]
      %v1704 = vld [vmem:[#allocation2 + $0x90] sm:$0xff]
      %v1705 = vld [vmem:[#allocation2 + $0x98] sm:$0xff]
      %v1706 = vld [vmem:[#allocation2 + $0xa0] sm:$0xff]
      %v1707 = vld [vmem:[#allocation2 + $0xa8] sm:$0xff]
      %v1708 = vld [vmem:[#allocation2 + $0xb0] sm:$0xff]
      %v1709 = vld [vmem:[#allocation2 + $0xb8] sm:$0xff]
      %v1710 = vld [vmem:[#allocation2 + $0xc0] sm:$0xff]
      %v1711 = vld [vmem:[#allocation2 + $0xc8] sm:$0xff]
      %v1712 = vld [vmem:[#allocation2 + $0xd0] sm:$0xff]
      %v1713 = vld [vmem:[#allocation2 + $0xd8] sm:$0xff]
      %v1714 = vld [vmem:[#allocation2 + $0xe0] sm:$0xff]
      %v1715 = vld [vmem:[#allocation2 + $0xe8] sm:$0xff]
      %v1716 = vld [vmem:[#allocation2 + $0xf0] sm:$0xff]
      %v1717 = vld [vmem:[#allocation2 + $0xf8] sm:$0xff]
      %s1718 = scalar_lea.vmem %s1, 64
      %v1719 = vld [vmem:[%s1718] sm:$0xff]
      %v1720 = vld [vmem:[%s1718 + $0x8] sm:$0xff]
      %v1722 = vsel %vm261, %v1654, 0
      %v1725 = vsel %vm261, %v1655, 0
      %v1728 = vsel %vm261, %v1656, 0
      %v1731 = vsel %vm261, %v1657, 0
      %v1734 = vsel %vm261, %v1658, 0
      %v1737 = vsel %vm261, %v1659, 0
      %v1740 = vsel %vm261, %v1660, 0
      %v1743 = vsel %vm261, %v1661, 0
      %v1746 = vsel %vm261, %v1662, 0
      %v1749 = vsel %vm261, %v1663, 0
      %v1752 = vsel %vm261, %v1664, 0
      %v1755 = vsel %vm261, %v1665, 0
      %v1758 = vsel %vm261, %v1666, 0
      %v1761 = vsel %vm261, %v1667, 0
      %v1764 = vsel %vm261, %v1668, 0
      %v1767 = vsel %vm261, %v1669, 0
      %v1770 = vsel %vm261, %v1670, 0
      %v1773 = vsel %vm261, %v1671, 0
      %v1776 = vsel %vm261, %v1672, 0
      %v1779 = vsel %vm261, %v1673, 0
      %v1782 = vsel %vm261, %v1674, 0
      %v1785 = vsel %vm261, %v1675, 0
      %v1788 = vsel %vm261, %v1676, 0
      %v1791 = vsel %vm261, %v1677, 0
      %v1794 = vsel %vm261, %v1678, 0
      %v1797 = vsel %vm261, %v1679, 0
      %v1800 = vsel %vm261, %v1680, 0
      %v1803 = vsel %vm261, %v1681, 0
      %v1806 = vsel %vm261, %v1682, 0
      %v1809 = vsel %vm261, %v1683, 0
      %v1812 = vsel %vm261, %v1684, 0
      %v1815 = vsel %vm261, %v1685, 0
      %1817 = vmatpush.msra.mxu0 0.0
      %1818 = vmatpush.msra.mxu0 0.0
      %1819 = vmatpush.msra.mxu0 0.0
      %1820 = vmatpush.msra.mxu0 0.0
      %1821 = vmatpush.msra.mxu0 0.0
      %1822 = vmatpush.msra.mxu0 0.0
      %1823 = vmatpush.msra.mxu0 0.0
      %1824 = vmatpush.msra.mxu0 0.0
      %1825 = vmatpush.msra.mxu0 0.0
      %1826 = vmatpush.msra.mxu0 0.0
      %1827 = vmatpush.msra.mxu0 0.0
      %1828 = vmatpush.msra.mxu0 0.0
      %1829 = vmatpush.msra.mxu0 0.0
      %1830 = vmatpush.msra.mxu0 0.0
      %1831 = vmatpush.msra.mxu0 %v1720
      %1832 = vmatpush.msra.mxu0 %v1719
      %1833 = vmatmul.f32.gmra.mxu0 %v1722
      %v1834 = vpop.f32.mrf.mxu0
      %v1835 = vadd.f32 0.0, %v1834
      %1836 = vmatmul.f32.gmra.mxu0 %v1725
      %v1837 = vpop.f32.mrf.mxu0
      %v1838 = vadd.f32 0.0, %v1837
      %1839 = vmatmul.f32.gmra.mxu0 %v1728
      %v1840 = vpop.f32.mrf.mxu0
      %v1841 = vadd.f32 0.0, %v1840
      %1842 = vmatmul.f32.gmra.mxu0 %v1731
      %v1843 = vpop.f32.mrf.mxu0
      %v1844 = vadd.f32 0.0, %v1843
      %1845 = vmatmul.f32.gmra.mxu0 %v1734
      %v1846 = vpop.f32.mrf.mxu0
      %v1847 = vadd.f32 0.0, %v1846
      %1848 = vmatmul.f32.gmra.mxu0 %v1737
      %v1849 = vpop.f32.mrf.mxu0
      %v1850 = vadd.f32 0.0, %v1849
      %1851 = vmatmul.f32.gmra.mxu0 %v1740
      %v1852 = vpop.f32.mrf.mxu0
      %v1853 = vadd.f32 0.0, %v1852
      %1854 = vmatmul.f32.gmra.mxu0 %v1743
      %v1855 = vpop.f32.mrf.mxu0
      %v1856 = vadd.f32 0.0, %v1855
      %1857 = vmatmul.f32.gmra.mxu0 %v1746
      %v1858 = vpop.f32.mrf.mxu0
      %v1859 = vadd.f32 0.0, %v1858
      %1860 = vmatmul.f32.gmra.mxu0 %v1749
      %v1861 = vpop.f32.mrf.mxu0
      %v1862 = vadd.f32 0.0, %v1861
      %1863 = vmatmul.f32.gmra.mxu0 %v1752
      %v1864 = vpop.f32.mrf.mxu0
      %v1865 = vadd.f32 0.0, %v1864
      %1866 = vmatmul.f32.gmra.mxu0 %v1755
      %v1867 = vpop.f32.mrf.mxu0
      %v1868 = vadd.f32 0.0, %v1867
      %1869 = vmatmul.f32.gmra.mxu0 %v1758
      %v1870 = vpop.f32.mrf.mxu0
      %v1871 = vadd.f32 0.0, %v1870
      %1872 = vmatmul.f32.gmra.mxu0 %v1761
      %v1873 = vpop.f32.mrf.mxu0
      %v1874 = vadd.f32 0.0, %v1873
      %1875 = vmatmul.f32.gmra.mxu0 %v1764
      %v1876 = vpop.f32.mrf.mxu0
      %v1877 = vadd.f32 0.0, %v1876
      %1878 = vmatmul.f32.gmra.mxu0 %v1767
      %v1879 = vpop.f32.mrf.mxu0
      %v1880 = vadd.f32 0.0, %v1879
      %1881 = vmatmul.f32.gmra.mxu0 %v1770
      %v1882 = vpop.f32.mrf.mxu0
      %v1883 = vadd.f32 0.0, %v1882
      %1884 = vmatmul.f32.gmra.mxu0 %v1773
      %v1885 = vpop.f32.mrf.mxu0
      %v1886 = vadd.f32 0.0, %v1885
      %1887 = vmatmul.f32.gmra.mxu0 %v1776
      %v1888 = vpop.f32.mrf.mxu0
      %v1889 = vadd.f32 0.0, %v1888
      %1890 = vmatmul.f32.gmra.mxu0 %v1779
      %v1891 = vpop.f32.mrf.mxu0
      %v1892 = vadd.f32 0.0, %v1891
      %1893 = vmatmul.f32.gmra.mxu0 %v1782
      %v1894 = vpop.f32.mrf.mxu0
      %v1895 = vadd.f32 0.0, %v1894
      %1896 = vmatmul.f32.gmra.mxu0 %v1785
      %v1897 = vpop.f32.mrf.mxu0
      %v1898 = vadd.f32 0.0, %v1897
      %1899 = vmatmul.f32.gmra.mxu0 %v1788
      %v1900 = vpop.f32.mrf.mxu0
      %v1901 = vadd.f32 0.0, %v1900
      %1902 = vmatmul.f32.gmra.mxu0 %v1791
      %v1903 = vpop.f32.mrf.mxu0
      %v1904 = vadd.f32 0.0, %v1903
      %1905 = vmatmul.f32.gmra.mxu0 %v1794
      %v1906 = vpop.f32.mrf.mxu0
      %v1907 = vadd.f32 0.0, %v1906
      %1908 = vmatmul.f32.gmra.mxu0 %v1797
      %v1909 = vpop.f32.mrf.mxu0
      %v1910 = vadd.f32 0.0, %v1909
      %1911 = vmatmul.f32.gmra.mxu0 %v1800
      %v1912 = vpop.f32.mrf.mxu0
      %v1913 = vadd.f32 0.0, %v1912
      %1914 = vmatmul.f32.gmra.mxu0 %v1803
      %v1915 = vpop.f32.mrf.mxu0
      %v1916 = vadd.f32 0.0, %v1915
      %1917 = vmatmul.f32.gmra.mxu0 %v1806
      %v1918 = vpop.f32.mrf.mxu0
      %v1919 = vadd.f32 0.0, %v1918
      %1920 = vmatmul.f32.gmra.mxu0 %v1809
      %v1921 = vpop.f32.mrf.mxu0
      %v1922 = vadd.f32 0.0, %v1921
      %1923 = vmatmul.f32.gmra.mxu0 %v1812
      %v1924 = vpop.f32.mrf.mxu0
      %v1925 = vadd.f32 0.0, %v1924
      %1926 = vmatmul.f32.gmra.mxu0 %v1815
      %v1927 = vpop.f32.mrf.mxu0
      %v1928 = vadd.f32 0.0, %v1927
      %1929 = vdwg.mxu0
      %v1930 = vadd.f32 %v1686, %v1835
      %v1931 = vadd.f32 %v1687, %v1838
      %v1932 = vadd.f32 %v1688, %v1841
      %v1933 = vadd.f32 %v1689, %v1844
      %v1934 = vadd.f32 %v1690, %v1847
      %v1935 = vadd.f32 %v1691, %v1850
      %v1936 = vadd.f32 %v1692, %v1853
      %v1937 = vadd.f32 %v1693, %v1856
      %v1938 = vadd.f32 %v1694, %v1859
      %v1939 = vadd.f32 %v1695, %v1862
      %v1940 = vadd.f32 %v1696, %v1865
      %v1941 = vadd.f32 %v1697, %v1868
      %v1942 = vadd.f32 %v1698, %v1871
      %v1943 = vadd.f32 %v1699, %v1874
      %v1944 = vadd.f32 %v1700, %v1877
      %v1945 = vadd.f32 %v1701, %v1880
      %v1946 = vadd.f32 %v1702, %v1883
      %v1947 = vadd.f32 %v1703, %v1886
      %v1948 = vadd.f32 %v1704, %v1889
      %v1949 = vadd.f32 %v1705, %v1892
      %v1950 = vadd.f32 %v1706, %v1895
      %v1951 = vadd.f32 %v1707, %v1898
      %v1952 = vadd.f32 %v1708, %v1901
      %v1953 = vadd.f32 %v1709, %v1904
      %v1954 = vadd.f32 %v1710, %v1907
      %v1955 = vadd.f32 %v1711, %v1910
      %v1956 = vadd.f32 %v1712, %v1913
      %v1957 = vadd.f32 %v1713, %v1916
      %v1958 = vadd.f32 %v1714, %v1919
      %v1959 = vadd.f32 %v1715, %v1922
      %v1960 = vadd.f32 %v1716, %v1925
      %v1961 = vadd.f32 %v1717, %v1928
      %1962 = vst.msk [vmem:[#allocation2] sm:$0xff] %vm261, %v1930
      %1963 = vst.msk [vmem:[#allocation2 + $0x8] sm:$0xff] %vm261, %v1931
      %1964 = vst.msk [vmem:[#allocation2 + $0x10] sm:$0xff] %vm261, %v1932
      %1965 = vst.msk [vmem:[#allocation2 + $0x18] sm:$0xff] %vm261, %v1933
      %1966 = vst.msk [vmem:[#allocation2 + $0x20] sm:$0xff] %vm261, %v1934
      %1967 = vst.msk [vmem:[#allocation2 + $0x28] sm:$0xff] %vm261, %v1935
      %1968 = vst.msk [vmem:[#allocation2 + $0x30] sm:$0xff] %vm261, %v1936
      %1969 = vst.msk [vmem:[#allocation2 + $0x38] sm:$0xff] %vm261, %v1937
      %1970 = vst.msk [vmem:[#allocation2 + $0x40] sm:$0xff] %vm261, %v1938
      %1971 = vst.msk [vmem:[#allocation2 + $0x48] sm:$0xff] %vm261, %v1939
      %1972 = vst.msk [vmem:[#allocation2 + $0x50] sm:$0xff] %vm261, %v1940
      %1973 = vst.msk [vmem:[#allocation2 + $0x58] sm:$0xff] %vm261, %v1941
      %1974 = vst.msk [vmem:[#allocation2 + $0x60] sm:$0xff] %vm261, %v1942
      %1975 = vst.msk [vmem:[#allocation2 + $0x68] sm:$0xff] %vm261, %v1943
      %1976 = vst.msk [vmem:[#allocation2 + $0x70] sm:$0xff] %vm261, %v1944
      %1977 = vst.msk [vmem:[#allocation2 + $0x78] sm:$0xff] %vm261, %v1945
      %1978 = vst.msk [vmem:[#allocation2 + $0x80] sm:$0xff] %vm261, %v1946
      %1979 = vst.msk [vmem:[#allocation2 + $0x88] sm:$0xff] %vm261, %v1947
      %1980 = vst.msk [vmem:[#allocation2 + $0x90] sm:$0xff] %vm261, %v1948
      %1981 = vst.msk [vmem:[#allocation2 + $0x98] sm:$0xff] %vm261, %v1949
      %1982 = vst.msk [vmem:[#allocation2 + $0xa0] sm:$0xff] %vm261, %v1950
      %1983 = vst.msk [vmem:[#allocation2 + $0xa8] sm:$0xff] %vm261, %v1951
      %1984 = vst.msk [vmem:[#allocation2 + $0xb0] sm:$0xff] %vm261, %v1952
      %1985 = vst.msk [vmem:[#allocation2 + $0xb8] sm:$0xff] %vm261, %v1953
      %1986 = vst.msk [vmem:[#allocation2 + $0xc0] sm:$0xff] %vm261, %v1954
      %1987 = vst.msk [vmem:[#allocation2 + $0xc8] sm:$0xff] %vm261, %v1955
      %1988 = vst.msk [vmem:[#allocation2 + $0xd0] sm:$0xff] %vm261, %v1956
      %1989 = vst.msk [vmem:[#allocation2 + $0xd8] sm:$0xff] %vm261, %v1957
      %1990 = vst.msk [vmem:[#allocation2 + $0xe0] sm:$0xff] %vm261, %v1958
      %1991 = vst.msk [vmem:[#allocation2 + $0xe8] sm:$0xff] %vm261, %v1959
      %1992 = vst.msk [vmem:[#allocation2 + $0xf0] sm:$0xff] %vm261, %v1960
      %1993 = vst.msk [vmem:[#allocation2 + $0xf8] sm:$0xff] %vm261, %v1961
      %v1994 = vld [vmem:[%s1313 + $0x2] sm:$0xff]
      %v1995 = vld [vmem:[%s1313 + $0xa] sm:$0xff]
      %v1996 = vld [vmem:[%s1313 + $0x1a] sm:$0xff]
      %v1997 = vld [vmem:[%s1313 + $0x22] sm:$0xff]
      %v1998 = vld [vmem:[%s1313 + $0x32] sm:$0xff]
      %v1999 = vld [vmem:[%s1313 + $0x3a] sm:$0xff]
      %v2000 = vld [vmem:[%s1313 + $0x4a] sm:$0xff]
      %v2001 = vld [vmem:[%s1313 + $0x52] sm:$0xff]
      %v2002 = vld [vmem:[%s1313 + $0x62] sm:$0xff]
      %v2003 = vld [vmem:[%s1313 + $0x6a] sm:$0xff]
      %v2004 = vld [vmem:[%s1313 + $0x7a] sm:$0xff]
      %v2005 = vld [vmem:[%s1313 + $0x82] sm:$0xff]
      %v2006 = vld [vmem:[%s1313 + $0x92] sm:$0xff]
      %v2007 = vld [vmem:[%s1313 + $0x9a] sm:$0xff]
      %v2008 = vld [vmem:[%s1313 + $0xaa] sm:$0xff]
      %v2009 = vld [vmem:[%s1313 + $0xb2] sm:$0xff]
      %v2010 = vld [vmem:[%s1313 + $0xc2] sm:$0xff]
      %v2011 = vld [vmem:[%s1313 + $0xca] sm:$0xff]
      %v2012 = vld [vmem:[%s1313 + $0xda] sm:$0xff]
      %v2013 = vld [vmem:[%s1313 + $0xe2] sm:$0xff]
      %v2014 = vld [vmem:[%s1313 + $0xf2] sm:$0xff]
      %v2015 = vld [vmem:[%s1313 + $0xfa] sm:$0xff]
      %v2016 = vld [vmem:[%s1313 + $0x10a] sm:$0xff]
      %v2017 = vld [vmem:[%s1313 + $0x112] sm:$0xff]
      %v2018 = vld [vmem:[%s1313 + $0x122] sm:$0xff]
      %v2019 = vld [vmem:[%s1313 + $0x12a] sm:$0xff]
      %v2020 = vld [vmem:[%s1313 + $0x13a] sm:$0xff]
      %v2021 = vld [vmem:[%s1313 + $0x142] sm:$0xff]
      %v2022 = vld [vmem:[%s1313 + $0x152] sm:$0xff]
      %v2023 = vld [vmem:[%s1313 + $0x15a] sm:$0xff]
      %v2024 = vld [vmem:[%s1313 + $0x16a] sm:$0xff]
      %v2025 = vld [vmem:[%s1313 + $0x172] sm:$0xff]
      %v2026 = vld [vmem:[#allocation2] sm:$0xff]
      %v2027 = vld [vmem:[#allocation2 + $0x8] sm:$0xff]
      %v2028 = vld [vmem:[#allocation2 + $0x10] sm:$0xff]
      %v2029 = vld [vmem:[#allocation2 + $0x18] sm:$0xff]
      %v2030 = vld [vmem:[#allocation2 + $0x20] sm:$0xff]
      %v2031 = vld [vmem:[#allocation2 + $0x28] sm:$0xff]
      %v2032 = vld [vmem:[#allocation2 + $0x30] sm:$0xff]
      %v2033 = vld [vmem:[#allocation2 + $0x38] sm:$0xff]
      %v2034 = vld [vmem:[#allocation2 + $0x40] sm:$0xff]
      %v2035 = vld [vmem:[#allocation2 + $0x48] sm:$0xff]
      %v2036 = vld [vmem:[#allocation2 + $0x50] sm:$0xff]
      %v2037 = vld [vmem:[#allocation2 + $0x58] sm:$0xff]
      %v2038 = vld [vmem:[#allocation2 + $0x60] sm:$0xff]
      %v2039 = vld [vmem:[#allocation2 + $0x68] sm:$0xff]
      %v2040 = vld [vmem:[#allocation2 + $0x70] sm:$0xff]
      %v2041 = vld [vmem:[#allocation2 + $0x78] sm:$0xff]
      %v2042 = vld [vmem:[#allocation2 + $0x80] sm:$0xff]
      %v2043 = vld [vmem:[#allocation2 + $0x88] sm:$0xff]
      %v2044 = vld [vmem:[#allocation2 + $0x90] sm:$0xff]
      %v2045 = vld [vmem:[#allocation2 + $0x98] sm:$0xff]
      %v2046 = vld [vmem:[#allocation2 + $0xa0] sm:$0xff]
      %v2047 = vld [vmem:[#allocation2 + $0xa8] sm:$0xff]
      %v2048 = vld [vmem:[#allocation2 + $0xb0] sm:$0xff]
      %v2049 = vld [vmem:[#allocation2 + $0xb8] sm:$0xff]
      %v2050 = vld [vmem:[#allocation2 + $0xc0] sm:$0xff]
      %v2051 = vld [vmem:[#allocation2 + $0xc8] sm:$0xff]
      %v2052 = vld [vmem:[#allocation2 + $0xd0] sm:$0xff]
      %v2053 = vld [vmem:[#allocation2 + $0xd8] sm:$0xff]
      %v2054 = vld [vmem:[#allocation2 + $0xe0] sm:$0xff]
      %v2055 = vld [vmem:[#allocation2 + $0xe8] sm:$0xff]
      %v2056 = vld [vmem:[#allocation2 + $0xf0] sm:$0xff]
      %v2057 = vld [vmem:[#allocation2 + $0xf8] sm:$0xff]
      %s2058 = scalar_lea.vmem %s1, 80
      %v2059 = vld [vmem:[%s2058] sm:$0xff]
      %v2060 = vld [vmem:[%s2058 + $0x8] sm:$0xff]
      %v2062 = vsel %vm261, %v1994, 0
      %v2065 = vsel %vm261, %v1995, 0
      %v2068 = vsel %vm261, %v1996, 0
      %v2071 = vsel %vm261, %v1997, 0
      %v2074 = vsel %vm261, %v1998, 0
      %v2077 = vsel %vm261, %v1999, 0
      %v2080 = vsel %vm261, %v2000, 0
      %v2083 = vsel %vm261, %v2001, 0
      %v2086 = vsel %vm261, %v2002, 0
      %v2089 = vsel %vm261, %v2003, 0
      %v2092 = vsel %vm261, %v2004, 0
      %v2095 = vsel %vm261, %v2005, 0
      %v2098 = vsel %vm261, %v2006, 0
      %v2101 = vsel %vm261, %v2007, 0
      %v2104 = vsel %vm261, %v2008, 0
      %v2107 = vsel %vm261, %v2009, 0
      %v2110 = vsel %vm261, %v2010, 0
      %v2113 = vsel %vm261, %v2011, 0
      %v2116 = vsel %vm261, %v2012, 0
      %v2119 = vsel %vm261, %v2013, 0
      %v2122 = vsel %vm261, %v2014, 0
      %v2125 = vsel %vm261, %v2015, 0
      %v2128 = vsel %vm261, %v2016, 0
      %v2131 = vsel %vm261, %v2017, 0
      %v2134 = vsel %vm261, %v2018, 0
      %v2137 = vsel %vm261, %v2019, 0
      %v2140 = vsel %vm261, %v2020, 0
      %v2143 = vsel %vm261, %v2021, 0
      %v2146 = vsel %vm261, %v2022, 0
      %v2149 = vsel %vm261, %v2023, 0
      %v2152 = vsel %vm261, %v2024, 0
      %v2155 = vsel %vm261, %v2025, 0
      %2157 = vmatpush.msra.mxu0 0.0
      %2158 = vmatpush.msra.mxu0 0.0
      %2159 = vmatpush.msra.mxu0 0.0
      %2160 = vmatpush.msra.mxu0 0.0
      %2161 = vmatpush.msra.mxu0 0.0
      %2162 = vmatpush.msra.mxu0 0.0
      %2163 = vmatpush.msra.mxu0 0.0
      %2164 = vmatpush.msra.mxu0 0.0
      %2165 = vmatpush.msra.mxu0 0.0
      %2166 = vmatpush.msra.mxu0 0.0
      %2167 = vmatpush.msra.mxu0 0.0
      %2168 = vmatpush.msra.mxu0 0.0
      %2169 = vmatpush.msra.mxu0 0.0
      %2170 = vmatpush.msra.mxu0 0.0
      %2171 = vmatpush.msra.mxu0 %v2060
      %2172 = vmatpush.msra.mxu0 %v2059
      %2173 = vmatmul.f32.gmra.mxu0 %v2062
      %v2174 = vpop.f32.mrf.mxu0
      %v2175 = vadd.f32 0.0, %v2174
      %2176 = vmatmul.f32.gmra.mxu0 %v2065
      %v2177 = vpop.f32.mrf.mxu0
      %v2178 = vadd.f32 0.0, %v2177
      %2179 = vmatmul.f32.gmra.mxu0 %v2068
      %v2180 = vpop.f32.mrf.mxu0
      %v2181 = vadd.f32 0.0, %v2180
      %2182 = vmatmul.f32.gmra.mxu0 %v2071
      %v2183 = vpop.f32.mrf.mxu0
      %v2184 = vadd.f32 0.0, %v2183
      %2185 = vmatmul.f32.gmra.mxu0 %v2074
      %v2186 = vpop.f32.mrf.mxu0
      %v2187 = vadd.f32 0.0, %v2186
      %2188 = vmatmul.f32.gmra.mxu0 %v2077
      %v2189 = vpop.f32.mrf.mxu0
      %v2190 = vadd.f32 0.0, %v2189
      %2191 = vmatmul.f32.gmra.mxu0 %v2080
      %v2192 = vpop.f32.mrf.mxu0
      %v2193 = vadd.f32 0.0, %v2192
      %2194 = vmatmul.f32.gmra.mxu0 %v2083
      %v2195 = vpop.f32.mrf.mxu0
      %v2196 = vadd.f32 0.0, %v2195
      %2197 = vmatmul.f32.gmra.mxu0 %v2086
      %v2198 = vpop.f32.mrf.mxu0
      %v2199 = vadd.f32 0.0, %v2198
      %2200 = vmatmul.f32.gmra.mxu0 %v2089
      %v2201 = vpop.f32.mrf.mxu0
      %v2202 = vadd.f32 0.0, %v2201
      %2203 = vmatmul.f32.gmra.mxu0 %v2092
      %v2204 = vpop.f32.mrf.mxu0
      %v2205 = vadd.f32 0.0, %v2204
      %2206 = vmatmul.f32.gmra.mxu0 %v2095
      %v2207 = vpop.f32.mrf.mxu0
      %v2208 = vadd.f32 0.0, %v2207
      %2209 = vmatmul.f32.gmra.mxu0 %v2098
      %v2210 = vpop.f32.mrf.mxu0
      %v2211 = vadd.f32 0.0, %v2210
      %2212 = vmatmul.f32.gmra.mxu0 %v2101
      %v2213 = vpop.f32.mrf.mxu0
      %v2214 = vadd.f32 0.0, %v2213
      %2215 = vmatmul.f32.gmra.mxu0 %v2104
      %v2216 = vpop.f32.mrf.mxu0
      %v2217 = vadd.f32 0.0, %v2216
      %2218 = vmatmul.f32.gmra.mxu0 %v2107
      %v2219 = vpop.f32.mrf.mxu0
      %v2220 = vadd.f32 0.0, %v2219
      %2221 = vmatmul.f32.gmra.mxu0 %v2110
      %v2222 = vpop.f32.mrf.mxu0
      %v2223 = vadd.f32 0.0, %v2222
      %2224 = vmatmul.f32.gmra.mxu0 %v2113
      %v2225 = vpop.f32.mrf.mxu0
      %v2226 = vadd.f32 0.0, %v2225
      %2227 = vmatmul.f32.gmra.mxu0 %v2116
      %v2228 = vpop.f32.mrf.mxu0
      %v2229 = vadd.f32 0.0, %v2228
      %2230 = vmatmul.f32.gmra.mxu0 %v2119
      %v2231 = vpop.f32.mrf.mxu0
      %v2232 = vadd.f32 0.0, %v2231
      %2233 = vmatmul.f32.gmra.mxu0 %v2122
      %v2234 = vpop.f32.mrf.mxu0
      %v2235 = vadd.f32 0.0, %v2234
      %2236 = vmatmul.f32.gmra.mxu0 %v2125
      %v2237 = vpop.f32.mrf.mxu0
      %v2238 = vadd.f32 0.0, %v2237
      %2239 = vmatmul.f32.gmra.mxu0 %v2128
      %v2240 = vpop.f32.mrf.mxu0
      %v2241 = vadd.f32 0.0, %v2240
      %2242 = vmatmul.f32.gmra.mxu0 %v2131
      %v2243 = vpop.f32.mrf.mxu0
      %v2244 = vadd.f32 0.0, %v2243
      %2245 = vmatmul.f32.gmra.mxu0 %v2134
      %v2246 = vpop.f32.mrf.mxu0
      %v2247 = vadd.f32 0.0, %v2246
      %2248 = vmatmul.f32.gmra.mxu0 %v2137
      %v2249 = vpop.f32.mrf.mxu0
      %v2250 = vadd.f32 0.0, %v2249
      %2251 = vmatmul.f32.gmra.mxu0 %v2140
      %v2252 = vpop.f32.mrf.mxu0
      %v2253 = vadd.f32 0.0, %v2252
      %2254 = vmatmul.f32.gmra.mxu0 %v2143
      %v2255 = vpop.f32.mrf.mxu0
      %v2256 = vadd.f32 0.0, %v2255
      %2257 = vmatmul.f32.gmra.mxu0 %v2146
      %v2258 = vpop.f32.mrf.mxu0
      %v2259 = vadd.f32 0.0, %v2258
      %2260 = vmatmul.f32.gmra.mxu0 %v2149
      %v2261 = vpop.f32.mrf.mxu0
      %v2262 = vadd.f32 0.0, %v2261
      %2263 = vmatmul.f32.gmra.mxu0 %v2152
      %v2264 = vpop.f32.mrf.mxu0
      %v2265 = vadd.f32 0.0, %v2264
      %2266 = vmatmul.f32.gmra.mxu0 %v2155
      %v2267 = vpop.f32.mrf.mxu0
      %v2268 = vadd.f32 0.0, %v2267
      %2269 = vdwg.mxu0
      %v2270 = vadd.f32 %v2026, %v2175
      %v2271 = vadd.f32 %v2027, %v2178
      %v2272 = vadd.f32 %v2028, %v2181
      %v2273 = vadd.f32 %v2029, %v2184
      %v2274 = vadd.f32 %v2030, %v2187
      %v2275 = vadd.f32 %v2031, %v2190
      %v2276 = vadd.f32 %v2032, %v2193
      %v2277 = vadd.f32 %v2033, %v2196
      %v2278 = vadd.f32 %v2034, %v2199
      %v2279 = vadd.f32 %v2035, %v2202
      %v2280 = vadd.f32 %v2036, %v2205
      %v2281 = vadd.f32 %v2037, %v2208
      %v2282 = vadd.f32 %v2038, %v2211
      %v2283 = vadd.f32 %v2039, %v2214
      %v2284 = vadd.f32 %v2040, %v2217
      %v2285 = vadd.f32 %v2041, %v2220
      %v2286 = vadd.f32 %v2042, %v2223
      %v2287 = vadd.f32 %v2043, %v2226
      %v2288 = vadd.f32 %v2044, %v2229
      %v2289 = vadd.f32 %v2045, %v2232
      %v2290 = vadd.f32 %v2046, %v2235
      %v2291 = vadd.f32 %v2047, %v2238
      %v2292 = vadd.f32 %v2048, %v2241
      %v2293 = vadd.f32 %v2049, %v2244
      %v2294 = vadd.f32 %v2050, %v2247
      %v2295 = vadd.f32 %v2051, %v2250
      %v2296 = vadd.f32 %v2052, %v2253
      %v2297 = vadd.f32 %v2053, %v2256
      %v2298 = vadd.f32 %v2054, %v2259
      %v2299 = vadd.f32 %v2055, %v2262
      %v2300 = vadd.f32 %v2056, %v2265
      %v2301 = vadd.f32 %v2057, %v2268
      %2302 = vst.msk [vmem:[#allocation2] sm:$0xff] %vm261, %v2270
      %2303 = vst.msk [vmem:[#allocation2 + $0x8] sm:$0xff] %vm261, %v2271
      %2304 = vst.msk [vmem:[#allocation2 + $0x10] sm:$0xff] %vm261, %v2272
      %2305 = vst.msk [vmem:[#allocation2 + $0x18] sm:$0xff] %vm261, %v2273
      %2306 = vst.msk [vmem:[#allocation2 + $0x20] sm:$0xff] %vm261, %v2274
      %2307 = vst.msk [vmem:[#allocation2 + $0x28] sm:$0xff] %vm261, %v2275
      %2308 = vst.msk [vmem:[#allocation2 + $0x30] sm:$0xff] %vm261, %v2276
      %2309 = vst.msk [vmem:[#allocation2 + $0x38] sm:$0xff] %vm261, %v2277
      %2310 = vst.msk [vmem:[#allocation2 + $0x40] sm:$0xff] %vm261, %v2278
      %2311 = vst.msk [vmem:[#allocation2 + $0x48] sm:$0xff] %vm261, %v2279
      %2312 = vst.msk [vmem:[#allocation2 + $0x50] sm:$0xff] %vm261, %v2280
      %2313 = vst.msk [vmem:[#allocation2 + $0x58] sm:$0xff] %vm261, %v2281
      %2314 = vst.msk [vmem:[#allocation2 + $0x60] sm:$0xff] %vm261, %v2282
      %2315 = vst.msk [vmem:[#allocation2 + $0x68] sm:$0xff] %vm261, %v2283
      %2316 = vst.msk [vmem:[#allocation2 + $0x70] sm:$0xff] %vm261, %v2284
      %2317 = vst.msk [vmem:[#allocation2 + $0x78] sm:$0xff] %vm261, %v2285
      %2318 = vst.msk [vmem:[#allocation2 + $0x80] sm:$0xff] %vm261, %v2286
      %2319 = vst.msk [vmem:[#allocation2 + $0x88] sm:$0xff] %vm261, %v2287
      %2320 = vst.msk [vmem:[#allocation2 + $0x90] sm:$0xff] %vm261, %v2288
      %2321 = vst.msk [vmem:[#allocation2 + $0x98] sm:$0xff] %vm261, %v2289
      %2322 = vst.msk [vmem:[#allocation2 + $0xa0] sm:$0xff] %vm261, %v2290
      %2323 = vst.msk [vmem:[#allocation2 + $0xa8] sm:$0xff] %vm261, %v2291
      %2324 = vst.msk [vmem:[#allocation2 + $0xb0] sm:$0xff] %vm261, %v2292
      %2325 = vst.msk [vmem:[#allocation2 + $0xb8] sm:$0xff] %vm261, %v2293
      %2326 = vst.msk [vmem:[#allocation2 + $0xc0] sm:$0xff] %vm261, %v2294
      %2327 = vst.msk [vmem:[#allocation2 + $0xc8] sm:$0xff] %vm261, %v2295
      %2328 = vst.msk [vmem:[#allocation2 + $0xd0] sm:$0xff] %vm261, %v2296
      %2329 = vst.msk [vmem:[#allocation2 + $0xd8] sm:$0xff] %vm261, %v2297
      %2330 = vst.msk [vmem:[#allocation2 + $0xe0] sm:$0xff] %vm261, %v2298
      %2331 = vst.msk [vmem:[#allocation2 + $0xe8] sm:$0xff] %vm261, %v2299
      %2332 = vst.msk [vmem:[#allocation2 + $0xf0] sm:$0xff] %vm261, %v2300
      %2333 = vst.msk [vmem:[#allocation2 + $0xf8] sm:$0xff] %vm261, %v2301
      %s2334 = scalar_lea.vmem %s251, 48
      %v2335 = vld [vmem:[%s2334] sm:$0xff]
      %v2336 = vld [vmem:[%s2334 + $0x8] sm:$0xff]
      %v2337 = vld [vmem:[%s2334 + $0x18] sm:$0xff]
      %v2338 = vld [vmem:[%s2334 + $0x20] sm:$0xff]
      %v2339 = vld [vmem:[%s2334 + $0x30] sm:$0xff]
      %v2340 = vld [vmem:[%s2334 + $0x38] sm:$0xff]
      %v2341 = vld [vmem:[%s2334 + $0x48] sm:$0xff]
      %v2342 = vld [vmem:[%s2334 + $0x50] sm:$0xff]
      %v2343 = vld [vmem:[%s2334 + $0x60] sm:$0xff]
      %v2344 = vld [vmem:[%s2334 + $0x68] sm:$0xff]
      %v2345 = vld [vmem:[%s2334 + $0x78] sm:$0xff]
      %v2346 = vld [vmem:[%s2334 + $0x80] sm:$0xff]
      %v2347 = vld [vmem:[%s2334 + $0x90] sm:$0xff]
      %v2348 = vld [vmem:[%s2334 + $0x98] sm:$0xff]
      %v2349 = vld [vmem:[%s2334 + $0xa8] sm:$0xff]
      %v2350 = vld [vmem:[%s2334 + $0xb0] sm:$0xff]
      %v2351 = vld [vmem:[%s2334 + $0xc0] sm:$0xff]
      %v2352 = vld [vmem:[%s2334 + $0xc8] sm:$0xff]
      %v2353 = vld [vmem:[%s2334 + $0xd8] sm:$0xff]
      %v2354 = vld [vmem:[%s2334 + $0xe0] sm:$0xff]
      %v2355 = vld [vmem:[%s2334 + $0xf0] sm:$0xff]
      %v2356 = vld [vmem:[%s2334 + $0xf8] sm:$0xff]
      %v2357 = vld [vmem:[%s2334 + $0x108] sm:$0xff]
      %v2358 = vld [vmem:[%s2334 + $0x110] sm:$0xff]
      %v2359 = vld [vmem:[%s2334 + $0x120] sm:$0xff]
      %v2360 = vld [vmem:[%s2334 + $0x128] sm:$0xff]
      %v2361 = vld [vmem:[%s2334 + $0x138] sm:$0xff]
      %v2362 = vld [vmem:[%s2334 + $0x140] sm:$0xff]
      %v2363 = vld [vmem:[%s2334 + $0x150] sm:$0xff]
      %v2364 = vld [vmem:[%s2334 + $0x158] sm:$0xff]
      %v2365 = vld [vmem:[%s2334 + $0x168] sm:$0xff]
      %v2366 = vld [vmem:[%s2334 + $0x170] sm:$0xff]
      %v2367 = vld [vmem:[#allocation2] sm:$0xff]
      %v2368 = vld [vmem:[#allocation2 + $0x8] sm:$0xff]
      %v2369 = vld [vmem:[#allocation2 + $0x10] sm:$0xff]
      %v2370 = vld [vmem:[#allocation2 + $0x18] sm:$0xff]
      %v2371 = vld [vmem:[#allocation2 + $0x20] sm:$0xff]
      %v2372 = vld [vmem:[#allocation2 + $0x28] sm:$0xff]
      %v2373 = vld [vmem:[#allocation2 + $0x30] sm:$0xff]
      %v2374 = vld [vmem:[#allocation2 + $0x38] sm:$0xff]
      %v2375 = vld [vmem:[#allocation2 + $0x40] sm:$0xff]
      %v2376 = vld [vmem:[#allocation2 + $0x48] sm:$0xff]
      %v2377 = vld [vmem:[#allocation2 + $0x50] sm:$0xff]
      %v2378 = vld [vmem:[#allocation2 + $0x58] sm:$0xff]
      %v2379 = vld [vmem:[#allocation2 + $0x60] sm:$0xff]
      %v2380 = vld [vmem:[#allocation2 + $0x68] sm:$0xff]
      %v2381 = vld [vmem:[#allocation2 + $0x70] sm:$0xff]
      %v2382 = vld [vmem:[#allocation2 + $0x78] sm:$0xff]
      %v2383 = vld [vmem:[#allocation2 + $0x80] sm:$0xff]
      %v2384 = vld [vmem:[#allocation2 + $0x88] sm:$0xff]
      %v2385 = vld [vmem:[#allocation2 + $0x90] sm:$0xff]
      %v2386 = vld [vmem:[#allocation2 + $0x98] sm:$0xff]
      %v2387 = vld [vmem:[#allocation2 + $0xa0] sm:$0xff]
      %v2388 = vld [vmem:[#allocation2 + $0xa8] sm:$0xff]
      %v2389 = vld [vmem:[#allocation2 + $0xb0] sm:$0xff]
      %v2390 = vld [vmem:[#allocation2 + $0xb8] sm:$0xff]
      %v2391 = vld [vmem:[#allocation2 + $0xc0] sm:$0xff]
      %v2392 = vld [vmem:[#allocation2 + $0xc8] sm:$0xff]
      %v2393 = vld [vmem:[#allocation2 + $0xd0] sm:$0xff]
      %v2394 = vld [vmem:[#allocation2 + $0xd8] sm:$0xff]
      %v2395 = vld [vmem:[#allocation2 + $0xe0] sm:$0xff]
      %v2396 = vld [vmem:[#allocation2 + $0xe8] sm:$0xff]
      %v2397 = vld [vmem:[#allocation2 + $0xf0] sm:$0xff]
      %v2398 = vld [vmem:[#allocation2 + $0xf8] sm:$0xff]
      %s2399 = scalar_lea.vmem %s1, 96
      %v2400 = vld [vmem:[%s2399] sm:$0xff]
      %v2401 = vld [vmem:[%s2399 + $0x8] sm:$0xff]
      %v2403 = vsel %vm261, %v2335, 0
      %v2406 = vsel %vm261, %v2336, 0
      %v2409 = vsel %vm261, %v2337, 0
      %v2412 = vsel %vm261, %v2338, 0
      %v2415 = vsel %vm261, %v2339, 0
      %v2418 = vsel %vm261, %v2340, 0
      %v2421 = vsel %vm261, %v2341, 0
      %v2424 = vsel %vm261, %v2342, 0
      %v2427 = vsel %vm261, %v2343, 0
      %v2430 = vsel %vm261, %v2344, 0
      %v2433 = vsel %vm261, %v2345, 0
      %v2436 = vsel %vm261, %v2346, 0
      %v2439 = vsel %vm261, %v2347, 0
      %v2442 = vsel %vm261, %v2348, 0
      %v2445 = vsel %vm261, %v2349, 0
      %v2448 = vsel %vm261, %v2350, 0
      %v2451 = vsel %vm261, %v2351, 0
      %v2454 = vsel %vm261, %v2352, 0
      %v2457 = vsel %vm261, %v2353, 0
      %v2460 = vsel %vm261, %v2354, 0
      %v2463 = vsel %vm261, %v2355, 0
      %v2466 = vsel %vm261, %v2356, 0
      %v2469 = vsel %vm261, %v2357, 0
      %v2472 = vsel %vm261, %v2358, 0
      %v2475 = vsel %vm261, %v2359, 0
      %v2478 = vsel %vm261, %v2360, 0
      %v2481 = vsel %vm261, %v2361, 0
      %v2484 = vsel %vm261, %v2362, 0
      %v2487 = vsel %vm261, %v2363, 0
      %v2490 = vsel %vm261, %v2364, 0
      %v2493 = vsel %vm261, %v2365, 0
      %v2496 = vsel %vm261, %v2366, 0
      %2498 = vmatpush.msra.mxu0 0.0
      %2499 = vmatpush.msra.mxu0 0.0
      %2500 = vmatpush.msra.mxu0 0.0
      %2501 = vmatpush.msra.mxu0 0.0
      %2502 = vmatpush.msra.mxu0 0.0
      %2503 = vmatpush.msra.mxu0 0.0
      %2504 = vmatpush.msra.mxu0 0.0
      %2505 = vmatpush.msra.mxu0 0.0
      %2506 = vmatpush.msra.mxu0 0.0
      %2507 = vmatpush.msra.mxu0 0.0
      %2508 = vmatpush.msra.mxu0 0.0
      %2509 = vmatpush.msra.mxu0 0.0
      %2510 = vmatpush.msra.mxu0 0.0
      %2511 = vmatpush.msra.mxu0 0.0
      %2512 = vmatpush.msra.mxu0 %v2401
      %2513 = vmatpush.msra.mxu0 %v2400
      %2514 = vmatmul.f32.gmra.mxu0 %v2403
      %v2515 = vpop.f32.mrf.mxu0
      %v2516 = vadd.f32 0.0, %v2515
      %2517 = vmatmul.f32.gmra.mxu0 %v2406
      %v2518 = vpop.f32.mrf.mxu0
      %v2519 = vadd.f32 0.0, %v2518
      %2520 = vmatmul.f32.gmra.mxu0 %v2409
      %v2521 = vpop.f32.mrf.mxu0
      %v2522 = vadd.f32 0.0, %v2521
      %2523 = vmatmul.f32.gmra.mxu0 %v2412
      %v2524 = vpop.f32.mrf.mxu0
      %v2525 = vadd.f32 0.0, %v2524
      %2526 = vmatmul.f32.gmra.mxu0 %v2415
      %v2527 = vpop.f32.mrf.mxu0
      %v2528 = vadd.f32 0.0, %v2527
      %2529 = vmatmul.f32.gmra.mxu0 %v2418
      %v2530 = vpop.f32.mrf.mxu0
      %v2531 = vadd.f32 0.0, %v2530
      %2532 = vmatmul.f32.gmra.mxu0 %v2421
      %v2533 = vpop.f32.mrf.mxu0
      %v2534 = vadd.f32 0.0, %v2533
      %2535 = vmatmul.f32.gmra.mxu0 %v2424
      %v2536 = vpop.f32.mrf.mxu0
      %v2537 = vadd.f32 0.0, %v2536
      %2538 = vmatmul.f32.gmra.mxu0 %v2427
      %v2539 = vpop.f32.mrf.mxu0
      %v2540 = vadd.f32 0.0, %v2539
      %2541 = vmatmul.f32.gmra.mxu0 %v2430
      %v2542 = vpop.f32.mrf.mxu0
      %v2543 = vadd.f32 0.0, %v2542
      %2544 = vmatmul.f32.gmra.mxu0 %v2433
      %v2545 = vpop.f32.mrf.mxu0
      %v2546 = vadd.f32 0.0, %v2545
      %2547 = vmatmul.f32.gmra.mxu0 %v2436
      %v2548 = vpop.f32.mrf.mxu0
      %v2549 = vadd.f32 0.0, %v2548
      %2550 = vmatmul.f32.gmra.mxu0 %v2439
      %v2551 = vpop.f32.mrf.mxu0
      %v2552 = vadd.f32 0.0, %v2551
      %2553 = vmatmul.f32.gmra.mxu0 %v2442
      %v2554 = vpop.f32.mrf.mxu0
      %v2555 = vadd.f32 0.0, %v2554
      %2556 = vmatmul.f32.gmra.mxu0 %v2445
      %v2557 = vpop.f32.mrf.mxu0
      %v2558 = vadd.f32 0.0, %v2557
      %2559 = vmatmul.f32.gmra.mxu0 %v2448
      %v2560 = vpop.f32.mrf.mxu0
      %v2561 = vadd.f32 0.0, %v2560
      %2562 = vmatmul.f32.gmra.mxu0 %v2451
      %v2563 = vpop.f32.mrf.mxu0
      %v2564 = vadd.f32 0.0, %v2563
      %2565 = vmatmul.f32.gmra.mxu0 %v2454
      %v2566 = vpop.f32.mrf.mxu0
      %v2567 = vadd.f32 0.0, %v2566
      %2568 = vmatmul.f32.gmra.mxu0 %v2457
      %v2569 = vpop.f32.mrf.mxu0
      %v2570 = vadd.f32 0.0, %v2569
      %2571 = vmatmul.f32.gmra.mxu0 %v2460
      %v2572 = vpop.f32.mrf.mxu0
      %v2573 = vadd.f32 0.0, %v2572
      %2574 = vmatmul.f32.gmra.mxu0 %v2463
      %v2575 = vpop.f32.mrf.mxu0
      %v2576 = vadd.f32 0.0, %v2575
      %2577 = vmatmul.f32.gmra.mxu0 %v2466
      %v2578 = vpop.f32.mrf.mxu0
      %v2579 = vadd.f32 0.0, %v2578
      %2580 = vmatmul.f32.gmra.mxu0 %v2469
      %v2581 = vpop.f32.mrf.mxu0
      %v2582 = vadd.f32 0.0, %v2581
      %2583 = vmatmul.f32.gmra.mxu0 %v2472
      %v2584 = vpop.f32.mrf.mxu0
      %v2585 = vadd.f32 0.0, %v2584
      %2586 = vmatmul.f32.gmra.mxu0 %v2475
      %v2587 = vpop.f32.mrf.mxu0
      %v2588 = vadd.f32 0.0, %v2587
      %2589 = vmatmul.f32.gmra.mxu0 %v2478
      %v2590 = vpop.f32.mrf.mxu0
      %v2591 = vadd.f32 0.0, %v2590
      %2592 = vmatmul.f32.gmra.mxu0 %v2481
      %v2593 = vpop.f32.mrf.mxu0
      %v2594 = vadd.f32 0.0, %v2593
      %2595 = vmatmul.f32.gmra.mxu0 %v2484
      %v2596 = vpop.f32.mrf.mxu0
      %v2597 = vadd.f32 0.0, %v2596
      %2598 = vmatmul.f32.gmra.mxu0 %v2487
      %v2599 = vpop.f32.mrf.mxu0
      %v2600 = vadd.f32 0.0, %v2599
      %2601 = vmatmul.f32.gmra.mxu0 %v2490
      %v2602 = vpop.f32.mrf.mxu0
      %v2603 = vadd.f32 0.0, %v2602
      %2604 = vmatmul.f32.gmra.mxu0 %v2493
      %v2605 = vpop.f32.mrf.mxu0
      %v2606 = vadd.f32 0.0, %v2605
      %2607 = vmatmul.f32.gmra.mxu0 %v2496
      %v2608 = vpop.f32.mrf.mxu0
      %v2609 = vadd.f32 0.0, %v2608
      %2610 = vdwg.mxu0
      %v2611 = vadd.f32 %v2367, %v2516
      %v2612 = vadd.f32 %v2368, %v2519
      %v2613 = vadd.f32 %v2369, %v2522
      %v2614 = vadd.f32 %v2370, %v2525
      %v2615 = vadd.f32 %v2371, %v2528
      %v2616 = vadd.f32 %v2372, %v2531
      %v2617 = vadd.f32 %v2373, %v2534
      %v2618 = vadd.f32 %v2374, %v2537
      %v2619 = vadd.f32 %v2375, %v2540
      %v2620 = vadd.f32 %v2376, %v2543
      %v2621 = vadd.f32 %v2377, %v2546
      %v2622 = vadd.f32 %v2378, %v2549
      %v2623 = vadd.f32 %v2379, %v2552
      %v2624 = vadd.f32 %v2380, %v2555
      %v2625 = vadd.f32 %v2381, %v2558
      %v2626 = vadd.f32 %v2382, %v2561
      %v2627 = vadd.f32 %v2383, %v2564
      %v2628 = vadd.f32 %v2384, %v2567
      %v2629 = vadd.f32 %v2385, %v2570
      %v2630 = vadd.f32 %v2386, %v2573
      %v2631 = vadd.f32 %v2387, %v2576
      %v2632 = vadd.f32 %v2388, %v2579
      %v2633 = vadd.f32 %v2389, %v2582
      %v2634 = vadd.f32 %v2390, %v2585
      %v2635 = vadd.f32 %v2391, %v2588
      %v2636 = vadd.f32 %v2392, %v2591
      %v2637 = vadd.f32 %v2393, %v2594
      %v2638 = vadd.f32 %v2394, %v2597
      %v2639 = vadd.f32 %v2395, %v2600
      %v2640 = vadd.f32 %v2396, %v2603
      %v2641 = vadd.f32 %v2397, %v2606
      %v2642 = vadd.f32 %v2398, %v2609
      %2643 = vst.msk [vmem:[#allocation2] sm:$0xff] %vm261, %v2611
      %2644 = vst.msk [vmem:[#allocation2 + $0x8] sm:$0xff] %vm261, %v2612
      %2645 = vst.msk [vmem:[#allocation2 + $0x10] sm:$0xff] %vm261, %v2613
      %2646 = vst.msk [vmem:[#allocation2 + $0x18] sm:$0xff] %vm261, %v2614
      %2647 = vst.msk [vmem:[#allocation2 + $0x20] sm:$0xff] %vm261, %v2615
      %2648 = vst.msk [vmem:[#allocation2 + $0x28] sm:$0xff] %vm261, %v2616
      %2649 = vst.msk [vmem:[#allocation2 + $0x30] sm:$0xff] %vm261, %v2617
      %2650 = vst.msk [vmem:[#allocation2 + $0x38] sm:$0xff] %vm261, %v2618
      %2651 = vst.msk [vmem:[#allocation2 + $0x40] sm:$0xff] %vm261, %v2619
      %2652 = vst.msk [vmem:[#allocation2 + $0x48] sm:$0xff] %vm261, %v2620
      %2653 = vst.msk [vmem:[#allocation2 + $0x50] sm:$0xff] %vm261, %v2621
      %2654 = vst.msk [vmem:[#allocation2 + $0x58] sm:$0xff] %vm261, %v2622
      %2655 = vst.msk [vmem:[#allocation2 + $0x60] sm:$0xff] %vm261, %v2623
      %2656 = vst.msk [vmem:[#allocation2 + $0x68] sm:$0xff] %vm261, %v2624
      %2657 = vst.msk [vmem:[#allocation2 + $0x70] sm:$0xff] %vm261, %v2625
      %2658 = vst.msk [vmem:[#allocation2 + $0x78] sm:$0xff] %vm261, %v2626
      %2659 = vst.msk [vmem:[#allocation2 + $0x80] sm:$0xff] %vm261, %v2627
      %2660 = vst.msk [vmem:[#allocation2 + $0x88] sm:$0xff] %vm261, %v2628
      %2661 = vst.msk [vmem:[#allocation2 + $0x90] sm:$0xff] %vm261, %v2629
      %2662 = vst.msk [vmem:[#allocation2 + $0x98] sm:$0xff] %vm261, %v2630
      %2663 = vst.msk [vmem:[#allocation2 + $0xa0] sm:$0xff] %vm261, %v2631
      %2664 = vst.msk [vmem:[#allocation2 + $0xa8] sm:$0xff] %vm261, %v2632
      %2665 = vst.msk [vmem:[#allocation2 + $0xb0] sm:$0xff] %vm261, %v2633
      %2666 = vst.msk [vmem:[#allocation2 + $0xb8] sm:$0xff] %vm261, %v2634
      %2667 = vst.msk [vmem:[#allocation2 + $0xc0] sm:$0xff] %vm261, %v2635
      %2668 = vst.msk [vmem:[#allocation2 + $0xc8] sm:$0xff] %vm261, %v2636
      %2669 = vst.msk [vmem:[#allocation2 + $0xd0] sm:$0xff] %vm261, %v2637
      %2670 = vst.msk [vmem:[#allocation2 + $0xd8] sm:$0xff] %vm261, %v2638
      %2671 = vst.msk [vmem:[#allocation2 + $0xe0] sm:$0xff] %vm261, %v2639
      %2672 = vst.msk [vmem:[#allocation2 + $0xe8] sm:$0xff] %vm261, %v2640
      %2673 = vst.msk [vmem:[#allocation2 + $0xf0] sm:$0xff] %vm261, %v2641
      %2674 = vst.msk [vmem:[#allocation2 + $0xf8] sm:$0xff] %vm261, %v2642
      %v2675 = vld [vmem:[%s2334 + $0x1] sm:$0xff]
      %v2676 = vld [vmem:[%s2334 + $0x9] sm:$0xff]
      %v2677 = vld [vmem:[%s2334 + $0x19] sm:$0xff]
      %v2678 = vld [vmem:[%s2334 + $0x21] sm:$0xff]
      %v2679 = vld [vmem:[%s2334 + $0x31] sm:$0xff]
      %v2680 = vld [vmem:[%s2334 + $0x39] sm:$0xff]
      %v2681 = vld [vmem:[%s2334 + $0x49] sm:$0xff]
      %v2682 = vld [vmem:[%s2334 + $0x51] sm:$0xff]
      %v2683 = vld [vmem:[%s2334 + $0x61] sm:$0xff]
      %v2684 = vld [vmem:[%s2334 + $0x69] sm:$0xff]
      %v2685 = vld [vmem:[%s2334 + $0x79] sm:$0xff]
      %v2686 = vld [vmem:[%s2334 + $0x81] sm:$0xff]
      %v2687 = vld [vmem:[%s2334 + $0x91] sm:$0xff]
      %v2688 = vld [vmem:[%s2334 + $0x99] sm:$0xff]
      %v2689 = vld [vmem:[%s2334 + $0xa9] sm:$0xff]
      %v2690 = vld [vmem:[%s2334 + $0xb1] sm:$0xff]
      %v2691 = vld [vmem:[%s2334 + $0xc1] sm:$0xff]
      %v2692 = vld [vmem:[%s2334 + $0xc9] sm:$0xff]
      %v2693 = vld [vmem:[%s2334 + $0xd9] sm:$0xff]
      %v2694 = vld [vmem:[%s2334 + $0xe1] sm:$0xff]
      %v2695 = vld [vmem:[%s2334 + $0xf1] sm:$0xff]
      %v2696 = vld [vmem:[%s2334 + $0xf9] sm:$0xff]
      %v2697 = vld [vmem:[%s2334 + $0x109] sm:$0xff]
      %v2698 = vld [vmem:[%s2334 + $0x111] sm:$0xff]
      %v2699 = vld [vmem:[%s2334 + $0x121] sm:$0xff]
      %v2700 = vld [vmem:[%s2334 + $0x129] sm:$0xff]
      %v2701 = vld [vmem:[%s2334 + $0x139] sm:$0xff]
      %v2702 = vld [vmem:[%s2334 + $0x141] sm:$0xff]
      %v2703 = vld [vmem:[%s2334 + $0x151] sm:$0xff]
      %v2704 = vld [vmem:[%s2334 + $0x159] sm:$0xff]
      %v2705 = vld [vmem:[%s2334 + $0x169] sm:$0xff]
      %v2706 = vld [vmem:[%s2334 + $0x171] sm:$0xff]
      %v2707 = vld [vmem:[#allocation2] sm:$0xff]
      %v2708 = vld [vmem:[#allocation2 + $0x8] sm:$0xff]
      %v2709 = vld [vmem:[#allocation2 + $0x10] sm:$0xff]
      %v2710 = vld [vmem:[#allocation2 + $0x18] sm:$0xff]
      %v2711 = vld [vmem:[#allocation2 + $0x20] sm:$0xff]
      %v2712 = vld [vmem:[#allocation2 + $0x28] sm:$0xff]
      %v2713 = vld [vmem:[#allocation2 + $0x30] sm:$0xff]
      %v2714 = vld [vmem:[#allocation2 + $0x38] sm:$0xff]
      %v2715 = vld [vmem:[#allocation2 + $0x40] sm:$0xff]
      %v2716 = vld [vmem:[#allocation2 + $0x48] sm:$0xff]
      %v2717 = vld [vmem:[#allocation2 + $0x50] sm:$0xff]
      %v2718 = vld [vmem:[#allocation2 + $0x58] sm:$0xff]
      %v2719 = vld [vmem:[#allocation2 + $0x60] sm:$0xff]
      %v2720 = vld [vmem:[#allocation2 + $0x68] sm:$0xff]
      %v2721 = vld [vmem:[#allocation2 + $0x70] sm:$0xff]
      %v2722 = vld [vmem:[#allocation2 + $0x78] sm:$0xff]
      %v2723 = vld [vmem:[#allocation2 + $0x80] sm:$0xff]
      %v2724 = vld [vmem:[#allocation2 + $0x88] sm:$0xff]
      %v2725 = vld [vmem:[#allocation2 + $0x90] sm:$0xff]
      %v2726 = vld [vmem:[#allocation2 + $0x98] sm:$0xff]
      %v2727 = vld [vmem:[#allocation2 + $0xa0] sm:$0xff]
      %v2728 = vld [vmem:[#allocation2 + $0xa8] sm:$0xff]
      %v2729 = vld [vmem:[#allocation2 + $0xb0] sm:$0xff]
      %v2730 = vld [vmem:[#allocation2 + $0xb8] sm:$0xff]
      %v2731 = vld [vmem:[#allocation2 + $0xc0] sm:$0xff]
      %v2732 = vld [vmem:[#allocation2 + $0xc8] sm:$0xff]
      %v2733 = vld [vmem:[#allocation2 + $0xd0] sm:$0xff]
      %v2734 = vld [vmem:[#allocation2 + $0xd8] sm:$0xff]
      %v2735 = vld [vmem:[#allocation2 + $0xe0] sm:$0xff]
      %v2736 = vld [vmem:[#allocation2 + $0xe8] sm:$0xff]
      %v2737 = vld [vmem:[#allocation2 + $0xf0] sm:$0xff]
      %v2738 = vld [vmem:[#allocation2 + $0xf8] sm:$0xff]
      %s2739 = scalar_lea.vmem %s1, 112
      %v2740 = vld [vmem:[%s2739] sm:$0xff]
      %v2741 = vld [vmem:[%s2739 + $0x8] sm:$0xff]
      %v2743 = vsel %vm261, %v2675, 0
      %v2746 = vsel %vm261, %v2676, 0
      %v2749 = vsel %vm261, %v2677, 0
      %v2752 = vsel %vm261, %v2678, 0
      %v2755 = vsel %vm261, %v2679, 0
      %v2758 = vsel %vm261, %v2680, 0
      %v2761 = vsel %vm261, %v2681, 0
      %v2764 = vsel %vm261, %v2682, 0
      %v2767 = vsel %vm261, %v2683, 0
      %v2770 = vsel %vm261, %v2684, 0
      %v2773 = vsel %vm261, %v2685, 0
      %v2776 = vsel %vm261, %v2686, 0
      %v2779 = vsel %vm261, %v2687, 0
      %v2782 = vsel %vm261, %v2688, 0
      %v2785 = vsel %vm261, %v2689, 0
      %v2788 = vsel %vm261, %v2690, 0
      %v2791 = vsel %vm261, %v2691, 0
      %v2794 = vsel %vm261, %v2692, 0
      %v2797 = vsel %vm261, %v2693, 0
      %v2800 = vsel %vm261, %v2694, 0
      %v2803 = vsel %vm261, %v2695, 0
      %v2806 = vsel %vm261, %v2696, 0
      %v2809 = vsel %vm261, %v2697, 0
      %v2812 = vsel %vm261, %v2698, 0
      %v2815 = vsel %vm261, %v2699, 0
      %v2818 = vsel %vm261, %v2700, 0
      %v2821 = vsel %vm261, %v2701, 0
      %v2824 = vsel %vm261, %v2702, 0
      %v2827 = vsel %vm261, %v2703, 0
      %v2830 = vsel %vm261, %v2704, 0
      %v2833 = vsel %vm261, %v2705, 0
      %v2836 = vsel %vm261, %v2706, 0
      %2838 = vmatpush.msra.mxu0 0.0
      %2839 = vmatpush.msra.mxu0 0.0
      %2840 = vmatpush.msra.mxu0 0.0
      %2841 = vmatpush.msra.mxu0 0.0
      %2842 = vmatpush.msra.mxu0 0.0
      %2843 = vmatpush.msra.mxu0 0.0
      %2844 = vmatpush.msra.mxu0 0.0
      %2845 = vmatpush.msra.mxu0 0.0
      %2846 = vmatpush.msra.mxu0 0.0
      %2847 = vmatpush.msra.mxu0 0.0
      %2848 = vmatpush.msra.mxu0 0.0
      %2849 = vmatpush.msra.mxu0 0.0
      %2850 = vmatpush.msra.mxu0 0.0
      %2851 = vmatpush.msra.mxu0 0.0
      %2852 = vmatpush.msra.mxu0 %v2741
      %2853 = vmatpush.msra.mxu0 %v2740
      %2854 = vmatmul.f32.gmra.mxu0 %v2743
      %v2855 = vpop.f32.mrf.mxu0
      %v2856 = vadd.f32 0.0, %v2855
      %2857 = vmatmul.f32.gmra.mxu0 %v2746
      %v2858 = vpop.f32.mrf.mxu0
      %v2859 = vadd.f32 0.0, %v2858
      %2860 = vmatmul.f32.gmra.mxu0 %v2749
      %v2861 = vpop.f32.mrf.mxu0
      %v2862 = vadd.f32 0.0, %v2861
      %2863 = vmatmul.f32.gmra.mxu0 %v2752
      %v2864 = vpop.f32.mrf.mxu0
      %v2865 = vadd.f32 0.0, %v2864
      %2866 = vmatmul.f32.gmra.mxu0 %v2755
      %v2867 = vpop.f32.mrf.mxu0
      %v2868 = vadd.f32 0.0, %v2867
      %2869 = vmatmul.f32.gmra.mxu0 %v2758
      %v2870 = vpop.f32.mrf.mxu0
      %v2871 = vadd.f32 0.0, %v2870
      %2872 = vmatmul.f32.gmra.mxu0 %v2761
      %v2873 = vpop.f32.mrf.mxu0
      %v2874 = vadd.f32 0.0, %v2873
      %2875 = vmatmul.f32.gmra.mxu0 %v2764
      %v2876 = vpop.f32.mrf.mxu0
      %v2877 = vadd.f32 0.0, %v2876
      %2878 = vmatmul.f32.gmra.mxu0 %v2767
      %v2879 = vpop.f32.mrf.mxu0
      %v2880 = vadd.f32 0.0, %v2879
      %2881 = vmatmul.f32.gmra.mxu0 %v2770
      %v2882 = vpop.f32.mrf.mxu0
      %v2883 = vadd.f32 0.0, %v2882
      %2884 = vmatmul.f32.gmra.mxu0 %v2773
      %v2885 = vpop.f32.mrf.mxu0
      %v2886 = vadd.f32 0.0, %v2885
      %2887 = vmatmul.f32.gmra.mxu0 %v2776
      %v2888 = vpop.f32.mrf.mxu0
      %v2889 = vadd.f32 0.0, %v2888
      %2890 = vmatmul.f32.gmra.mxu0 %v2779
      %v2891 = vpop.f32.mrf.mxu0
      %v2892 = vadd.f32 0.0, %v2891
      %2893 = vmatmul.f32.gmra.mxu0 %v2782
      %v2894 = vpop.f32.mrf.mxu0
      %v2895 = vadd.f32 0.0, %v2894
      %2896 = vmatmul.f32.gmra.mxu0 %v2785
      %v2897 = vpop.f32.mrf.mxu0
      %v2898 = vadd.f32 0.0, %v2897
      %2899 = vmatmul.f32.gmra.mxu0 %v2788
      %v2900 = vpop.f32.mrf.mxu0
      %v2901 = vadd.f32 0.0, %v2900
      %2902 = vmatmul.f32.gmra.mxu0 %v2791
      %v2903 = vpop.f32.mrf.mxu0
      %v2904 = vadd.f32 0.0, %v2903
      %2905 = vmatmul.f32.gmra.mxu0 %v2794
      %v2906 = vpop.f32.mrf.mxu0
      %v2907 = vadd.f32 0.0, %v2906
      %2908 = vmatmul.f32.gmra.mxu0 %v2797
      %v2909 = vpop.f32.mrf.mxu0
      %v2910 = vadd.f32 0.0, %v2909
      %2911 = vmatmul.f32.gmra.mxu0 %v2800
      %v2912 = vpop.f32.mrf.mxu0
      %v2913 = vadd.f32 0.0, %v2912
      %2914 = vmatmul.f32.gmra.mxu0 %v2803
      %v2915 = vpop.f32.mrf.mxu0
      %v2916 = vadd.f32 0.0, %v2915
      %2917 = vmatmul.f32.gmra.mxu0 %v2806
      %v2918 = vpop.f32.mrf.mxu0
      %v2919 = vadd.f32 0.0, %v2918
      %2920 = vmatmul.f32.gmra.mxu0 %v2809
      %v2921 = vpop.f32.mrf.mxu0
      %v2922 = vadd.f32 0.0, %v2921
      %2923 = vmatmul.f32.gmra.mxu0 %v2812
      %v2924 = vpop.f32.mrf.mxu0
      %v2925 = vadd.f32 0.0, %v2924
      %2926 = vmatmul.f32.gmra.mxu0 %v2815
      %v2927 = vpop.f32.mrf.mxu0
      %v2928 = vadd.f32 0.0, %v2927
      %2929 = vmatmul.f32.gmra.mxu0 %v2818
      %v2930 = vpop.f32.mrf.mxu0
      %v2931 = vadd.f32 0.0, %v2930
      %2932 = vmatmul.f32.gmra.mxu0 %v2821
      %v2933 = vpop.f32.mrf.mxu0
      %v2934 = vadd.f32 0.0, %v2933
      %2935 = vmatmul.f32.gmra.mxu0 %v2824
      %v2936 = vpop.f32.mrf.mxu0
      %v2937 = vadd.f32 0.0, %v2936
      %2938 = vmatmul.f32.gmra.mxu0 %v2827
      %v2939 = vpop.f32.mrf.mxu0
      %v2940 = vadd.f32 0.0, %v2939
      %2941 = vmatmul.f32.gmra.mxu0 %v2830
      %v2942 = vpop.f32.mrf.mxu0
      %v2943 = vadd.f32 0.0, %v2942
      %2944 = vmatmul.f32.gmra.mxu0 %v2833
      %v2945 = vpop.f32.mrf.mxu0
      %v2946 = vadd.f32 0.0, %v2945
      %2947 = vmatmul.f32.gmra.mxu0 %v2836
      %v2948 = vpop.f32.mrf.mxu0
      %v2949 = vadd.f32 0.0, %v2948
      %2950 = vdwg.mxu0
      %v2951 = vadd.f32 %v2707, %v2856
      %v2952 = vadd.f32 %v2708, %v2859
      %v2953 = vadd.f32 %v2709, %v2862
      %v2954 = vadd.f32 %v2710, %v2865
      %v2955 = vadd.f32 %v2711, %v2868
      %v2956 = vadd.f32 %v2712, %v2871
      %v2957 = vadd.f32 %v2713, %v2874
      %v2958 = vadd.f32 %v2714, %v2877
      %v2959 = vadd.f32 %v2715, %v2880
      %v2960 = vadd.f32 %v2716, %v2883
      %v2961 = vadd.f32 %v2717, %v2886
      %v2962 = vadd.f32 %v2718, %v2889
      %v2963 = vadd.f32 %v2719, %v2892
      %v2964 = vadd.f32 %v2720, %v2895
      %v2965 = vadd.f32 %v2721, %v2898
      %v2966 = vadd.f32 %v2722, %v2901
      %v2967 = vadd.f32 %v2723, %v2904
      %v2968 = vadd.f32 %v2724, %v2907
      %v2969 = vadd.f32 %v2725, %v2910
      %v2970 = vadd.f32 %v2726, %v2913
      %v2971 = vadd.f32 %v2727, %v2916
      %v2972 = vadd.f32 %v2728, %v2919
      %v2973 = vadd.f32 %v2729, %v2922
      %v2974 = vadd.f32 %v2730, %v2925
      %v2975 = vadd.f32 %v2731, %v2928
      %v2976 = vadd.f32 %v2732, %v2931
      %v2977 = vadd.f32 %v2733, %v2934
      %v2978 = vadd.f32 %v2734, %v2937
      %v2979 = vadd.f32 %v2735, %v2940
      %v2980 = vadd.f32 %v2736, %v2943
      %v2981 = vadd.f32 %v2737, %v2946
      %v2982 = vadd.f32 %v2738, %v2949
      %2983 = vst.msk [vmem:[#allocation2] sm:$0xff] %vm261, %v2951
      %2984 = vst.msk [vmem:[#allocation2 + $0x8] sm:$0xff] %vm261, %v2952
      %2985 = vst.msk [vmem:[#allocation2 + $0x10] sm:$0xff] %vm261, %v2953
      %2986 = vst.msk [vmem:[#allocation2 + $0x18] sm:$0xff] %vm261, %v2954
      %2987 = vst.msk [vmem:[#allocation2 + $0x20] sm:$0xff] %vm261, %v2955
      %2988 = vst.msk [vmem:[#allocation2 + $0x28] sm:$0xff] %vm261, %v2956
      %2989 = vst.msk [vmem:[#allocation2 + $0x30] sm:$0xff] %vm261, %v2957
      %2990 = vst.msk [vmem:[#allocation2 + $0x38] sm:$0xff] %vm261, %v2958
      %2991 = vst.msk [vmem:[#allocation2 + $0x40] sm:$0xff] %vm261, %v2959
      %2992 = vst.msk [vmem:[#allocation2 + $0x48] sm:$0xff] %vm261, %v2960
      %2993 = vst.msk [vmem:[#allocation2 + $0x50] sm:$0xff] %vm261, %v2961
      %2994 = vst.msk [vmem:[#allocation2 + $0x58] sm:$0xff] %vm261, %v2962
      %2995 = vst.msk [vmem:[#allocation2 + $0x60] sm:$0xff] %vm261, %v2963
      %2996 = vst.msk [vmem:[#allocation2 + $0x68] sm:$0xff] %vm261, %v2964
      %2997 = vst.msk [vmem:[#allocation2 + $0x70] sm:$0xff] %vm261, %v2965
      %2998 = vst.msk [vmem:[#allocation2 + $0x78] sm:$0xff] %vm261, %v2966
      %2999 = vst.msk [vmem:[#allocation2 + $0x80] sm:$0xff] %vm261, %v2967
      %3000 = vst.msk [vmem:[#allocation2 + $0x88] sm:$0xff] %vm261, %v2968
      %3001 = vst.msk [vmem:[#allocation2 + $0x90] sm:$0xff] %vm261, %v2969
      %3002 = vst.msk [vmem:[#allocation2 + $0x98] sm:$0xff] %vm261, %v2970
      %3003 = vst.msk [vmem:[#allocation2 + $0xa0] sm:$0xff] %vm261, %v2971
      %3004 = vst.msk [vmem:[#allocation2 + $0xa8] sm:$0xff] %vm261, %v2972
      %3005 = vst.msk [vmem:[#allocation2 + $0xb0] sm:$0xff] %vm261, %v2973
      %3006 = vst.msk [vmem:[#allocation2 + $0xb8] sm:$0xff] %vm261, %v2974
      %3007 = vst.msk [vmem:[#allocation2 + $0xc0] sm:$0xff] %vm261, %v2975
      %3008 = vst.msk [vmem:[#allocation2 + $0xc8] sm:$0xff] %vm261, %v2976
      %3009 = vst.msk [vmem:[#allocation2 + $0xd0] sm:$0xff] %vm261, %v2977
      %3010 = vst.msk [vmem:[#allocation2 + $0xd8] sm:$0xff] %vm261, %v2978
      %3011 = vst.msk [vmem:[#allocation2 + $0xe0] sm:$0xff] %vm261, %v2979
      %3012 = vst.msk [vmem:[#allocation2 + $0xe8] sm:$0xff] %vm261, %v2980
      %3013 = vst.msk [vmem:[#allocation2 + $0xf0] sm:$0xff] %vm261, %v2981
      %3014 = vst.msk [vmem:[#allocation2 + $0xf8] sm:$0xff] %vm261, %v2982
      %v3015 = vld [vmem:[%s2334 + $0x2] sm:$0xff]
      %v3016 = vld [vmem:[%s2334 + $0xa] sm:$0xff]
      %v3017 = vld [vmem:[%s2334 + $0x1a] sm:$0xff]
      %v3018 = vld [vmem:[%s2334 + $0x22] sm:$0xff]
      %v3019 = vld [vmem:[%s2334 + $0x32] sm:$0xff]
      %v3020 = vld [vmem:[%s2334 + $0x3a] sm:$0xff]
      %v3021 = vld [vmem:[%s2334 + $0x4a] sm:$0xff]
      %v3022 = vld [vmem:[%s2334 + $0x52] sm:$0xff]
      %v3023 = vld [vmem:[%s2334 + $0x62] sm:$0xff]
      %v3024 = vld [vmem:[%s2334 + $0x6a] sm:$0xff]
      %v3025 = vld [vmem:[%s2334 + $0x7a] sm:$0xff]
      %v3026 = vld [vmem:[%s2334 + $0x82] sm:$0xff]
      %v3027 = vld [vmem:[%s2334 + $0x92] sm:$0xff]
      %v3028 = vld [vmem:[%s2334 + $0x9a] sm:$0xff]
      %v3029 = vld [vmem:[%s2334 + $0xaa] sm:$0xff]
      %v3030 = vld [vmem:[%s2334 + $0xb2] sm:$0xff]
      %v3031 = vld [vmem:[%s2334 + $0xc2] sm:$0xff]
      %v3032 = vld [vmem:[%s2334 + $0xca] sm:$0xff]
      %v3033 = vld [vmem:[%s2334 + $0xda] sm:$0xff]
      %v3034 = vld [vmem:[%s2334 + $0xe2] sm:$0xff]
      %v3035 = vld [vmem:[%s2334 + $0xf2] sm:$0xff]
      %v3036 = vld [vmem:[%s2334 + $0xfa] sm:$0xff]
      %v3037 = vld [vmem:[%s2334 + $0x10a] sm:$0xff]
      %v3038 = vld [vmem:[%s2334 + $0x112] sm:$0xff]
      %v3039 = vld [vmem:[%s2334 + $0x122] sm:$0xff]
      %v3040 = vld [vmem:[%s2334 + $0x12a] sm:$0xff]
      %v3041 = vld [vmem:[%s2334 + $0x13a] sm:$0xff]
      %v3042 = vld [vmem:[%s2334 + $0x142] sm:$0xff]
      %v3043 = vld [vmem:[%s2334 + $0x152] sm:$0xff]
      %v3044 = vld [vmem:[%s2334 + $0x15a] sm:$0xff]
      %v3045 = vld [vmem:[%s2334 + $0x16a] sm:$0xff]
      %v3046 = vld [vmem:[%s2334 + $0x172] sm:$0xff]
      %v3047 = vld [vmem:[#allocation2] sm:$0xff]
      %v3048 = vld [vmem:[#allocation2 + $0x8] sm:$0xff]
      %v3049 = vld [vmem:[#allocation2 + $0x10] sm:$0xff]
      %v3050 = vld [vmem:[#allocation2 + $0x18] sm:$0xff]
      %v3051 = vld [vmem:[#allocation2 + $0x20] sm:$0xff]
      %v3052 = vld [vmem:[#allocation2 + $0x28] sm:$0xff]
      %v3053 = vld [vmem:[#allocation2 + $0x30] sm:$0xff]
      %v3054 = vld [vmem:[#allocation2 + $0x38] sm:$0xff]
      %v3055 = vld [vmem:[#allocation2 + $0x40] sm:$0xff]
      %v3056 = vld [vmem:[#allocation2 + $0x48] sm:$0xff]
      %v3057 = vld [vmem:[#allocation2 + $0x50] sm:$0xff]
      %v3058 = vld [vmem:[#allocation2 + $0x58] sm:$0xff]
      %v3059 = vld [vmem:[#allocation2 + $0x60] sm:$0xff]
      %v3060 = vld [vmem:[#allocation2 + $0x68] sm:$0xff]
      %v3061 = vld [vmem:[#allocation2 + $0x70] sm:$0xff]
      %v3062 = vld [vmem:[#allocation2 + $0x78] sm:$0xff]
      %v3063 = vld [vmem:[#allocation2 + $0x80] sm:$0xff]
      %v3064 = vld [vmem:[#allocation2 + $0x88] sm:$0xff]
      %v3065 = vld [vmem:[#allocation2 + $0x90] sm:$0xff]
      %v3066 = vld [vmem:[#allocation2 + $0x98] sm:$0xff]
      %v3067 = vld [vmem:[#allocation2 + $0xa0] sm:$0xff]
      %v3068 = vld [vmem:[#allocation2 + $0xa8] sm:$0xff]
      %v3069 = vld [vmem:[#allocation2 + $0xb0] sm:$0xff]
      %v3070 = vld [vmem:[#allocation2 + $0xb8] sm:$0xff]
      %v3071 = vld [vmem:[#allocation2 + $0xc0] sm:$0xff]
      %v3072 = vld [vmem:[#allocation2 + $0xc8] sm:$0xff]
      %v3073 = vld [vmem:[#allocation2 + $0xd0] sm:$0xff]
      %v3074 = vld [vmem:[#allocation2 + $0xd8] sm:$0xff]
      %v3075 = vld [vmem:[#allocation2 + $0xe0] sm:$0xff]
      %v3076 = vld [vmem:[#allocation2 + $0xe8] sm:$0xff]
      %v3077 = vld [vmem:[#allocation2 + $0xf0] sm:$0xff]
      %v3078 = vld [vmem:[#allocation2 + $0xf8] sm:$0xff]
      %s3079 = scalar_lea.vmem %s1, 128
      %v3080 = vld [vmem:[%s3079] sm:$0xff]
      %v3081 = vld [vmem:[%s3079 + $0x8] sm:$0xff]
      %v3083 = vsel %vm261, %v3015, 0
      %v3086 = vsel %vm261, %v3016, 0
      %v3089 = vsel %vm261, %v3017, 0
      %v3092 = vsel %vm261, %v3018, 0
      %v3095 = vsel %vm261, %v3019, 0
      %v3098 = vsel %vm261, %v3020, 0
      %v3101 = vsel %vm261, %v3021, 0
      %v3104 = vsel %vm261, %v3022, 0
      %v3107 = vsel %vm261, %v3023, 0
      %v3110 = vsel %vm261, %v3024, 0
      %v3113 = vsel %vm261, %v3025, 0
      %v3116 = vsel %vm261, %v3026, 0
      %v3119 = vsel %vm261, %v3027, 0
      %v3122 = vsel %vm261, %v3028, 0
      %v3125 = vsel %vm261, %v3029, 0
      %v3128 = vsel %vm261, %v3030, 0
      %v3131 = vsel %vm261, %v3031, 0
      %v3134 = vsel %vm261, %v3032, 0
      %v3137 = vsel %vm261, %v3033, 0
      %v3140 = vsel %vm261, %v3034, 0
      %v3143 = vsel %vm261, %v3035, 0
      %v3146 = vsel %vm261, %v3036, 0
      %v3149 = vsel %vm261, %v3037, 0
      %v3152 = vsel %vm261, %v3038, 0
      %v3155 = vsel %vm261, %v3039, 0
      %v3158 = vsel %vm261, %v3040, 0
      %v3161 = vsel %vm261, %v3041, 0
      %v3164 = vsel %vm261, %v3042, 0
      %v3167 = vsel %vm261, %v3043, 0
      %v3170 = vsel %vm261, %v3044, 0
      %v3173 = vsel %vm261, %v3045, 0
      %v3176 = vsel %vm261, %v3046, 0
      %3178 = vmatpush.msra.mxu0 0.0
      %3179 = vmatpush.msra.mxu0 0.0
      %3180 = vmatpush.msra.mxu0 0.0
      %3181 = vmatpush.msra.mxu0 0.0
      %3182 = vmatpush.msra.mxu0 0.0
      %3183 = vmatpush.msra.mxu0 0.0
      %3184 = vmatpush.msra.mxu0 0.0
      %3185 = vmatpush.msra.mxu0 0.0
      %3186 = vmatpush.msra.mxu0 0.0
      %3187 = vmatpush.msra.mxu0 0.0
      %3188 = vmatpush.msra.mxu0 0.0
      %3189 = vmatpush.msra.mxu0 0.0
      %3190 = vmatpush.msra.mxu0 0.0
      %3191 = vmatpush.msra.mxu0 0.0
      %3192 = vmatpush.msra.mxu0 %v3081
      %3193 = vmatpush.msra.mxu0 %v3080
      %3194 = vmatmul.f32.gmra.mxu0 %v3083
      %v3195 = vpop.f32.mrf.mxu0
      %v3196 = vadd.f32 0.0, %v3195
      %3197 = vmatmul.f32.gmra.mxu0 %v3086
      %v3198 = vpop.f32.mrf.mxu0
      %v3199 = vadd.f32 0.0, %v3198
      %3200 = vmatmul.f32.gmra.mxu0 %v3089
      %v3201 = vpop.f32.mrf.mxu0
      %v3202 = vadd.f32 0.0, %v3201
      %3203 = vmatmul.f32.gmra.mxu0 %v3092
      %v3204 = vpop.f32.mrf.mxu0
      %v3205 = vadd.f32 0.0, %v3204
      %3206 = vmatmul.f32.gmra.mxu0 %v3095
      %v3207 = vpop.f32.mrf.mxu0
      %v3208 = vadd.f32 0.0, %v3207
      %3209 = vmatmul.f32.gmra.mxu0 %v3098
      %v3210 = vpop.f32.mrf.mxu0
      %v3211 = vadd.f32 0.0, %v3210
      %3212 = vmatmul.f32.gmra.mxu0 %v3101
      %v3213 = vpop.f32.mrf.mxu0
      %v3214 = vadd.f32 0.0, %v3213
      %3215 = vmatmul.f32.gmra.mxu0 %v3104
      %v3216 = vpop.f32.mrf.mxu0
      %v3217 = vadd.f32 0.0, %v3216
      %3218 = vmatmul.f32.gmra.mxu0 %v3107
      %v3219 = vpop.f32.mrf.mxu0
      %v3220 = vadd.f32 0.0, %v3219
      %3221 = vmatmul.f32.gmra.mxu0 %v3110
      %v3222 = vpop.f32.mrf.mxu0
      %v3223 = vadd.f32 0.0, %v3222
      %3224 = vmatmul.f32.gmra.mxu0 %v3113
      %v3225 = vpop.f32.mrf.mxu0
      %v3226 = vadd.f32 0.0, %v3225
      %3227 = vmatmul.f32.gmra.mxu0 %v3116
      %v3228 = vpop.f32.mrf.mxu0
      %v3229 = vadd.f32 0.0, %v3228
      %3230 = vmatmul.f32.gmra.mxu0 %v3119
      %v3231 = vpop.f32.mrf.mxu0
      %v3232 = vadd.f32 0.0, %v3231
      %3233 = vmatmul.f32.gmra.mxu0 %v3122
      %v3234 = vpop.f32.mrf.mxu0
      %v3235 = vadd.f32 0.0, %v3234
      %3236 = vmatmul.f32.gmra.mxu0 %v3125
      %v3237 = vpop.f32.mrf.mxu0
      %v3238 = vadd.f32 0.0, %v3237
      %3239 = vmatmul.f32.gmra.mxu0 %v3128
      %v3240 = vpop.f32.mrf.mxu0
      %v3241 = vadd.f32 0.0, %v3240
      %3242 = vmatmul.f32.gmra.mxu0 %v3131
      %v3243 = vpop.f32.mrf.mxu0
      %v3244 = vadd.f32 0.0, %v3243
      %3245 = vmatmul.f32.gmra.mxu0 %v3134
      %v3246 = vpop.f32.mrf.mxu0
      %v3247 = vadd.f32 0.0, %v3246
      %3248 = vmatmul.f32.gmra.mxu0 %v3137
      %v3249 = vpop.f32.mrf.mxu0
      %v3250 = vadd.f32 0.0, %v3249
      %3251 = vmatmul.f32.gmra.mxu0 %v3140
      %v3252 = vpop.f32.mrf.mxu0
      %v3253 = vadd.f32 0.0, %v3252
      %3254 = vmatmul.f32.gmra.mxu0 %v3143
      %v3255 = vpop.f32.mrf.mxu0
      %v3256 = vadd.f32 0.0, %v3255
      %3257 = vmatmul.f32.gmra.mxu0 %v3146
      %v3258 = vpop.f32.mrf.mxu0
      %v3259 = vadd.f32 0.0, %v3258
      %3260 = vmatmul.f32.gmra.mxu0 %v3149
      %v3261 = vpop.f32.mrf.mxu0
      %v3262 = vadd.f32 0.0, %v3261
      %3263 = vmatmul.f32.gmra.mxu0 %v3152
      %v3264 = vpop.f32.mrf.mxu0
      %v3265 = vadd.f32 0.0, %v3264
      %3266 = vmatmul.f32.gmra.mxu0 %v3155
      %v3267 = vpop.f32.mrf.mxu0
      %v3268 = vadd.f32 0.0, %v3267
      %3269 = vmatmul.f32.gmra.mxu0 %v3158
      %v3270 = vpop.f32.mrf.mxu0
      %v3271 = vadd.f32 0.0, %v3270
      %3272 = vmatmul.f32.gmra.mxu0 %v3161
      %v3273 = vpop.f32.mrf.mxu0
      %v3274 = vadd.f32 0.0, %v3273
      %3275 = vmatmul.f32.gmra.mxu0 %v3164
      %v3276 = vpop.f32.mrf.mxu0
      %v3277 = vadd.f32 0.0, %v3276
      %3278 = vmatmul.f32.gmra.mxu0 %v3167
      %v3279 = vpop.f32.mrf.mxu0
      %v3280 = vadd.f32 0.0, %v3279
      %3281 = vmatmul.f32.gmra.mxu0 %v3170
      %v3282 = vpop.f32.mrf.mxu0
      %v3283 = vadd.f32 0.0, %v3282
      %3284 = vmatmul.f32.gmra.mxu0 %v3173
      %v3285 = vpop.f32.mrf.mxu0
      %v3286 = vadd.f32 0.0, %v3285
      %3287 = vmatmul.f32.gmra.mxu0 %v3176
      %v3288 = vpop.f32.mrf.mxu0
      %v3289 = vadd.f32 0.0, %v3288
      %3290 = vdwg.mxu0
      %v3291 = vadd.f32 %v3047, %v3196
      %v3292 = vadd.f32 %v3048, %v3199
      %v3293 = vadd.f32 %v3049, %v3202
      %v3294 = vadd.f32 %v3050, %v3205
      %v3295 = vadd.f32 %v3051, %v3208
      %v3296 = vadd.f32 %v3052, %v3211
      %v3297 = vadd.f32 %v3053, %v3214
      %v3298 = vadd.f32 %v3054, %v3217
      %v3299 = vadd.f32 %v3055, %v3220
      %v3300 = vadd.f32 %v3056, %v3223
      %v3301 = vadd.f32 %v3057, %v3226
      %v3302 = vadd.f32 %v3058, %v3229
      %v3303 = vadd.f32 %v3059, %v3232
      %v3304 = vadd.f32 %v3060, %v3235
      %v3305 = vadd.f32 %v3061, %v3238
      %v3306 = vadd.f32 %v3062, %v3241
      %v3307 = vadd.f32 %v3063, %v3244
      %v3308 = vadd.f32 %v3064, %v3247
      %v3309 = vadd.f32 %v3065, %v3250
      %v3310 = vadd.f32 %v3066, %v3253
      %v3311 = vadd.f32 %v3067, %v3256
      %v3312 = vadd.f32 %v3068, %v3259
      %v3313 = vadd.f32 %v3069, %v3262
      %v3314 = vadd.f32 %v3070, %v3265
      %v3315 = vadd.f32 %v3071, %v3268
      %v3316 = vadd.f32 %v3072, %v3271
      %v3317 = vadd.f32 %v3073, %v3274
      %v3318 = vadd.f32 %v3074, %v3277
      %v3319 = vadd.f32 %v3075, %v3280
      %v3320 = vadd.f32 %v3076, %v3283
      %v3321 = vadd.f32 %v3077, %v3286
      %v3322 = vadd.f32 %v3078, %v3289
      %3323 = vst.msk [vmem:[#allocation2] sm:$0xff] %vm261, %v3291
      %3324 = vst.msk [vmem:[#allocation2 + $0x8] sm:$0xff] %vm261, %v3292
      %3325 = vst.msk [vmem:[#allocation2 + $0x10] sm:$0xff] %vm261, %v3293
      %3326 = vst.msk [vmem:[#allocation2 + $0x18] sm:$0xff] %vm261, %v3294
      %3327 = vst.msk [vmem:[#allocation2 + $0x20] sm:$0xff] %vm261, %v3295
      %3328 = vst.msk [vmem:[#allocation2 + $0x28] sm:$0xff] %vm261, %v3296
      %3329 = vst.msk [vmem:[#allocation2 + $0x30] sm:$0xff] %vm261, %v3297
      %3330 = vst.msk [vmem:[#allocation2 + $0x38] sm:$0xff] %vm261, %v3298
      %3331 = vst.msk [vmem:[#allocation2 + $0x40] sm:$0xff] %vm261, %v3299
      %3332 = vst.msk [vmem:[#allocation2 + $0x48] sm:$0xff] %vm261, %v3300
      %3333 = vst.msk [vmem:[#allocation2 + $0x50] sm:$0xff] %vm261, %v3301
      %3334 = vst.msk [vmem:[#allocation2 + $0x58] sm:$0xff] %vm261, %v3302
      %3335 = vst.msk [vmem:[#allocation2 + $0x60] sm:$0xff] %vm261, %v3303
      %3336 = vst.msk [vmem:[#allocation2 + $0x68] sm:$0xff] %vm261, %v3304
      %3337 = vst.msk [vmem:[#allocation2 + $0x70] sm:$0xff] %vm261, %v3305
      %3338 = vst.msk [vmem:[#allocation2 + $0x78] sm:$0xff] %vm261, %v3306
      %3339 = vst.msk [vmem:[#allocation2 + $0x80] sm:$0xff] %vm261, %v3307
      %3340 = vst.msk [vmem:[#allocation2 + $0x88] sm:$0xff] %vm261, %v3308
      %3341 = vst.msk [vmem:[#allocation2 + $0x90] sm:$0xff] %vm261, %v3309
      %3342 = vst.msk [vmem:[#allocation2 + $0x98] sm:$0xff] %vm261, %v3310
      %3343 = vst.msk [vmem:[#allocation2 + $0xa0] sm:$0xff] %vm261, %v3311
      %3344 = vst.msk [vmem:[#allocation2 + $0xa8] sm:$0xff] %vm261, %v3312
      %3345 = vst.msk [vmem:[#allocation2 + $0xb0] sm:$0xff] %vm261, %v3313
      %3346 = vst.msk [vmem:[#allocation2 + $0xb8] sm:$0xff] %vm261, %v3314
      %3347 = vst.msk [vmem:[#allocation2 + $0xc0] sm:$0xff] %vm261, %v3315
      %3348 = vst.msk [vmem:[#allocation2 + $0xc8] sm:$0xff] %vm261, %v3316
      %3349 = vst.msk [vmem:[#allocation2 + $0xd0] sm:$0xff] %vm261, %v3317
      %3350 = vst.msk [vmem:[#allocation2 + $0xd8] sm:$0xff] %vm261, %v3318
      %3351 = vst.msk [vmem:[#allocation2 + $0xe0] sm:$0xff] %vm261, %v3319
      %3352 = vst.msk [vmem:[#allocation2 + $0xe8] sm:$0xff] %vm261, %v3320
      %3353 = vst.msk [vmem:[#allocation2 + $0xf0] sm:$0xff] %vm261, %v3321
      %3354 = vst.msk [vmem:[#allocation2 + $0xf8] sm:$0xff] %vm261, %v3322
      %v3355 = vld [vmem:[#allocation2] sm:$0xff]
      %v3356 = vld [vmem:[#allocation2 + $0x8] sm:$0xff]
      %v3357 = vld [vmem:[#allocation2 + $0x10] sm:$0xff]
      %v3358 = vld [vmem:[#allocation2 + $0x18] sm:$0xff]
      %v3359 = vld [vmem:[#allocation2 + $0x20] sm:$0xff]
      %v3360 = vld [vmem:[#allocation2 + $0x28] sm:$0xff]
      %v3361 = vld [vmem:[#allocation2 + $0x30] sm:$0xff]
      %v3362 = vld [vmem:[#allocation2 + $0x38] sm:$0xff]
      %v3363 = vld [vmem:[#allocation2 + $0x40] sm:$0xff]
      %v3364 = vld [vmem:[#allocation2 + $0x48] sm:$0xff]
      %v3365 = vld [vmem:[#allocation2 + $0x50] sm:$0xff]
      %v3366 = vld [vmem:[#allocation2 + $0x58] sm:$0xff]
      %v3367 = vld [vmem:[#allocation2 + $0x60] sm:$0xff]
      %v3368 = vld [vmem:[#allocation2 + $0x68] sm:$0xff]
      %v3369 = vld [vmem:[#allocation2 + $0x70] sm:$0xff]
      %v3370 = vld [vmem:[#allocation2 + $0x78] sm:$0xff]
      %v3371 = vld [vmem:[#allocation2 + $0x80] sm:$0xff]
      %v3372 = vld [vmem:[#allocation2 + $0x88] sm:$0xff]
      %v3373 = vld [vmem:[#allocation2 + $0x90] sm:$0xff]
      %v3374 = vld [vmem:[#allocation2 + $0x98] sm:$0xff]
      %v3375 = vld [vmem:[#allocation2 + $0xa0] sm:$0xff]
      %v3376 = vld [vmem:[#allocation2 + $0xa8] sm:$0xff]
      %v3377 = vld [vmem:[#allocation2 + $0xb0] sm:$0xff]
      %v3378 = vld [vmem:[#allocation2 + $0xb8] sm:$0xff]
      %v3379 = vld [vmem:[#allocation2 + $0xc0] sm:$0xff]
      %v3380 = vld [vmem:[#allocation2 + $0xc8] sm:$0xff]
      %v3381 = vld [vmem:[#allocation2 + $0xd0] sm:$0xff]
      %v3382 = vld [vmem:[#allocation2 + $0xd8] sm:$0xff]
      %v3383 = vld [vmem:[#allocation2 + $0xe0] sm:$0xff]
      %v3384 = vld [vmem:[#allocation2 + $0xe8] sm:$0xff]
      %v3385 = vld [vmem:[#allocation2 + $0xf0] sm:$0xff]
      %v3386 = vld [vmem:[#allocation2 + $0xf8] sm:$0xff]
      %v3387 = vld [vmem:[%s2] sm:$0x1]
      %v3389 = vperm.slane %v3387, 0
      %v3391 = vadd.f32 %v3355, %v3389
      %v3392 = vadd.f32 %v3356, %v3389
      %v3393 = vadd.f32 %v3357, %v3389
      %v3394 = vadd.f32 %v3358, %v3389
      %v3395 = vadd.f32 %v3359, %v3389
      %v3396 = vadd.f32 %v3360, %v3389
      %v3397 = vadd.f32 %v3361, %v3389
      %v3398 = vadd.f32 %v3362, %v3389
      %v3399 = vadd.f32 %v3363, %v3389
      %v3400 = vadd.f32 %v3364, %v3389
      %v3401 = vadd.f32 %v3365, %v3389
      %v3402 = vadd.f32 %v3366, %v3389
      %v3403 = vadd.f32 %v3367, %v3389
      %v3404 = vadd.f32 %v3368, %v3389
      %v3405 = vadd.f32 %v3369, %v3389
      %v3406 = vadd.f32 %v3370, %v3389
      %v3407 = vadd.f32 %v3371, %v3389
      %v3408 = vadd.f32 %v3372, %v3389
      %v3409 = vadd.f32 %v3373, %v3389
      %v3410 = vadd.f32 %v3374, %v3389
      %v3411 = vadd.f32 %v3375, %v3389
      %v3412 = vadd.f32 %v3376, %v3389
      %v3413 = vadd.f32 %v3377, %v3389
      %v3414 = vadd.f32 %v3378, %v3389
      %v3415 = vadd.f32 %v3379, %v3389
      %v3416 = vadd.f32 %v3380, %v3389
      %v3417 = vadd.f32 %v3381, %v3389
      %v3418 = vadd.f32 %v3382, %v3389
      %v3419 = vadd.f32 %v3383, %v3389
      %v3420 = vadd.f32 %v3384, %v3389
      %v3421 = vadd.f32 %v3385, %v3389
      %v3422 = vadd.f32 %v3386, %v3389
      %v3423 = vmax.f32 %v3391, 0.0
      %v3424 = vmax.f32 %v3392, 0.0
      %v3425 = vmax.f32 %v3393, 0.0
      %v3426 = vmax.f32 %v3394, 0.0
      %v3427 = vmax.f32 %v3395, 0.0
      %v3428 = vmax.f32 %v3396, 0.0
      %v3429 = vmax.f32 %v3397, 0.0
      %v3430 = vmax.f32 %v3398, 0.0
      %v3431 = vmax.f32 %v3399, 0.0
      %v3432 = vmax.f32 %v3400, 0.0
      %v3433 = vmax.f32 %v3401, 0.0
      %v3434 = vmax.f32 %v3402, 0.0
      %v3435 = vmax.f32 %v3403, 0.0
      %v3436 = vmax.f32 %v3404, 0.0
      %v3437 = vmax.f32 %v3405, 0.0
      %v3438 = vmax.f32 %v3406, 0.0
      %v3439 = vmax.f32 %v3407, 0.0
      %v3440 = vmax.f32 %v3408, 0.0
      %v3441 = vmax.f32 %v3409, 0.0
      %v3442 = vmax.f32 %v3410, 0.0
      %v3443 = vmax.f32 %v3411, 0.0
      %v3444 = vmax.f32 %v3412, 0.0
      %v3445 = vmax.f32 %v3413, 0.0
      %v3446 = vmax.f32 %v3414, 0.0
      %v3447 = vmax.f32 %v3415, 0.0
      %v3448 = vmax.f32 %v3416, 0.0
      %v3449 = vmax.f32 %v3417, 0.0
      %v3450 = vmax.f32 %v3418, 0.0
      %v3451 = vmax.f32 %v3419, 0.0
      %v3452 = vmax.f32 %v3420, 0.0
      %v3453 = vmax.f32 %v3421, 0.0
      %v3454 = vmax.f32 %v3422, 0.0
      %v3455 = vld [vmem:[%s3] sm:$0xff]
      %v3456 = vld [vmem:[%s3 + $0x8] sm:$0xff]
      %v3457 = vld [vmem:[%s4] sm:$0x1]
      %v3459 = vperm.slane %v3457, 0
      %v3462 = vsel %vm261, %v3423, 0
      %v3465 = vsel %vm261, %v3424, 0
      %v3468 = vsel %vm261, %v3425, 0
      %v3471 = vsel %vm261, %v3426, 0
      %v3474 = vsel %vm261, %v3427, 0
      %v3477 = vsel %vm261, %v3428, 0
      %v3480 = vsel %vm261, %v3429, 0
      %v3483 = vsel %vm261, %v3430, 0
      %v3486 = vsel %vm261, %v3431, 0
      %v3489 = vsel %vm261, %v3432, 0
      %v3492 = vsel %vm261, %v3433, 0
      %v3495 = vsel %vm261, %v3434, 0
      %v3498 = vsel %vm261, %v3435, 0
      %v3501 = vsel %vm261, %v3436, 0
      %v3504 = vsel %vm261, %v3437, 0
      %v3507 = vsel %vm261, %v3438, 0
      %v3510 = vsel %vm261, %v3439, 0
      %v3513 = vsel %vm261, %v3440, 0
      %v3516 = vsel %vm261, %v3441, 0
      %v3519 = vsel %vm261, %v3442, 0
      %v3522 = vsel %vm261, %v3443, 0
      %v3525 = vsel %vm261, %v3444, 0
      %v3528 = vsel %vm261, %v3445, 0
      %v3531 = vsel %vm261, %v3446, 0
      %v3534 = vsel %vm261, %v3447, 0
      %v3537 = vsel %vm261, %v3448, 0
      %v3540 = vsel %vm261, %v3449, 0
      %v3543 = vsel %vm261, %v3450, 0
      %v3546 = vsel %vm261, %v3451, 0
      %v3549 = vsel %vm261, %v3452, 0
      %v3552 = vsel %vm261, %v3453, 0
      %v3555 = vsel %vm261, %v3454, 0
      %3557 = vmatpush.msra.mxu0 0.0
      %3558 = vmatpush.msra.mxu0 0.0
      %3559 = vmatpush.msra.mxu0 0.0
      %3560 = vmatpush.msra.mxu0 0.0
      %3561 = vmatpush.msra.mxu0 0.0
      %3562 = vmatpush.msra.mxu0 0.0
      %3563 = vmatpush.msra.mxu0 0.0
      %3564 = vmatpush.msra.mxu0 0.0
      %3565 = vmatpush.msra.mxu0 0.0
      %3566 = vmatpush.msra.mxu0 0.0
      %3567 = vmatpush.msra.mxu0 0.0
      %3568 = vmatpush.msra.mxu0 0.0
      %3569 = vmatpush.msra.mxu0 0.0
      %3570 = vmatpush.msra.mxu0 0.0
      %3571 = vmatpush.msra.mxu0 %v3456
      %3572 = vmatpush.msra.mxu0 %v3455
      %3573 = vmatmul.f32.gmra.mxu0 %v3462
      %v3574 = vpop.f32.mrf.mxu0
      %v3575 = vadd.f32 %v3459, %v3574
      %3576 = vmatmul.f32.gmra.mxu0 %v3465
      %v3577 = vpop.f32.mrf.mxu0
      %v3578 = vadd.f32 %v3459, %v3577
      %3579 = vmatmul.f32.gmra.mxu0 %v3468
      %v3580 = vpop.f32.mrf.mxu0
      %v3581 = vadd.f32 %v3459, %v3580
      %3582 = vmatmul.f32.gmra.mxu0 %v3471
      %v3583 = vpop.f32.mrf.mxu0
      %v3584 = vadd.f32 %v3459, %v3583
      %3585 = vmatmul.f32.gmra.mxu0 %v3474
      %v3586 = vpop.f32.mrf.mxu0
      %v3587 = vadd.f32 %v3459, %v3586
      %3588 = vmatmul.f32.gmra.mxu0 %v3477
      %v3589 = vpop.f32.mrf.mxu0
      %v3590 = vadd.f32 %v3459, %v3589
      %3591 = vmatmul.f32.gmra.mxu0 %v3480
      %v3592 = vpop.f32.mrf.mxu0
      %v3593 = vadd.f32 %v3459, %v3592
      %3594 = vmatmul.f32.gmra.mxu0 %v3483
      %v3595 = vpop.f32.mrf.mxu0
      %v3596 = vadd.f32 %v3459, %v3595
      %3597 = vmatmul.f32.gmra.mxu0 %v3486
      %v3598 = vpop.f32.mrf.mxu0
      %v3599 = vadd.f32 %v3459, %v3598
      %3600 = vmatmul.f32.gmra.mxu0 %v3489
      %v3601 = vpop.f32.mrf.mxu0
      %v3602 = vadd.f32 %v3459, %v3601
      %3603 = vmatmul.f32.gmra.mxu0 %v3492
      %v3604 = vpop.f32.mrf.mxu0
      %v3605 = vadd.f32 %v3459, %v3604
      %3606 = vmatmul.f32.gmra.mxu0 %v3495
      %v3607 = vpop.f32.mrf.mxu0
      %v3608 = vadd.f32 %v3459, %v3607
      %3609 = vmatmul.f32.gmra.mxu0 %v3498
      %v3610 = vpop.f32.mrf.mxu0
      %v3611 = vadd.f32 %v3459, %v3610
      %3612 = vmatmul.f32.gmra.mxu0 %v3501
      %v3613 = vpop.f32.mrf.mxu0
      %v3614 = vadd.f32 %v3459, %v3613
      %3615 = vmatmul.f32.gmra.mxu0 %v3504
      %v3616 = vpop.f32.mrf.mxu0
      %v3617 = vadd.f32 %v3459, %v3616
      %3618 = vmatmul.f32.gmra.mxu0 %v3507
      %v3619 = vpop.f32.mrf.mxu0
      %v3620 = vadd.f32 %v3459, %v3619
      %3621 = vmatmul.f32.gmra.mxu0 %v3510
      %v3622 = vpop.f32.mrf.mxu0
      %v3623 = vadd.f32 %v3459, %v3622
      %3624 = vmatmul.f32.gmra.mxu0 %v3513
      %v3625 = vpop.f32.mrf.mxu0
      %v3626 = vadd.f32 %v3459, %v3625
      %3627 = vmatmul.f32.gmra.mxu0 %v3516
      %v3628 = vpop.f32.mrf.mxu0
      %v3629 = vadd.f32 %v3459, %v3628
      %3630 = vmatmul.f32.gmra.mxu0 %v3519
      %v3631 = vpop.f32.mrf.mxu0
      %v3632 = vadd.f32 %v3459, %v3631
      %3633 = vmatmul.f32.gmra.mxu0 %v3522
      %v3634 = vpop.f32.mrf.mxu0
      %v3635 = vadd.f32 %v3459, %v3634
      %3636 = vmatmul.f32.gmra.mxu0 %v3525
      %v3637 = vpop.f32.mrf.mxu0
      %v3638 = vadd.f32 %v3459, %v3637
      %3639 = vmatmul.f32.gmra.mxu0 %v3528
      %v3640 = vpop.f32.mrf.mxu0
      %v3641 = vadd.f32 %v3459, %v3640
      %3642 = vmatmul.f32.gmra.mxu0 %v3531
      %v3643 = vpop.f32.mrf.mxu0
      %v3644 = vadd.f32 %v3459, %v3643
      %3645 = vmatmul.f32.gmra.mxu0 %v3534
      %v3646 = vpop.f32.mrf.mxu0
      %v3647 = vadd.f32 %v3459, %v3646
      %3648 = vmatmul.f32.gmra.mxu0 %v3537
      %v3649 = vpop.f32.mrf.mxu0
      %v3650 = vadd.f32 %v3459, %v3649
      %3651 = vmatmul.f32.gmra.mxu0 %v3540
      %v3652 = vpop.f32.mrf.mxu0
      %v3653 = vadd.f32 %v3459, %v3652
      %3654 = vmatmul.f32.gmra.mxu0 %v3543
      %v3655 = vpop.f32.mrf.mxu0
      %v3656 = vadd.f32 %v3459, %v3655
      %3657 = vmatmul.f32.gmra.mxu0 %v3546
      %v3658 = vpop.f32.mrf.mxu0
      %v3659 = vadd.f32 %v3459, %v3658
      %3660 = vmatmul.f32.gmra.mxu0 %v3549
      %v3661 = vpop.f32.mrf.mxu0
      %v3662 = vadd.f32 %v3459, %v3661
      %3663 = vmatmul.f32.gmra.mxu0 %v3552
      %v3664 = vpop.f32.mrf.mxu0
      %v3665 = vadd.f32 %v3459, %v3664
      %3666 = vmatmul.f32.gmra.mxu0 %v3555
      %v3667 = vpop.f32.mrf.mxu0
      %v3668 = vadd.f32 %v3459, %v3667
      %3669 = vdwg.mxu0
      %3670 = vxpose.xlu0.b32.start [1/16] %v3575, 128
      %3671 = vxpose.xlu0.b32.cont [2/16] %v3578, 128
      %3672 = vxpose.xlu0.b32.cont [3/16] %v3581, 128
      %3673 = vxpose.xlu0.b32.cont [4/16] %v3584, 128
      %3674 = vxpose.xlu0.b32.cont [5/16] %v3587, 128
      %3675 = vxpose.xlu0.b32.cont [6/16] %v3590, 128
      %3676 = vxpose.xlu0.b32.cont [7/16] %v3593, 128
      %3677 = vxpose.xlu0.b32.cont [8/16] %v3596, 128
      %3678 = vxpose.xlu0.b32.cont [9/16] %v3599, 128
      %3679 = vxpose.xlu0.b32.cont [10/16] %v3602, 128
      %3680 = vxpose.xlu0.b32.cont [11/16] %v3605, 128
      %3681 = vxpose.xlu0.b32.cont [12/16] %v3608, 128
      %3682 = vxpose.xlu0.b32.cont [13/16] %v3611, 128
      %3683 = vxpose.xlu0.b32.cont [14/16] %v3614, 128
      %3684 = vxpose.xlu0.b32.cont [15/16] %v3617, 128
      %3685 = vxpose.xlu0.b32.end [16/16] %v3620, 128
      %v3686 = vpop.trf.xlu0
      %v3687 = vpop.trf.xlu0
      %v3688 = vpop.trf.xlu0
      %v3689 = vpop.trf.xlu0
      %v3690 = vpop.trf.xlu0
      %v3691 = vpop.trf.xlu0
      %v3692 = vpop.trf.xlu0
      %v3693 = vpop.trf.xlu0
      %v3694 = vpop.trf.xlu0
      %v3695 = vpop.trf.xlu0
      %v3696 = vpop.trf.xlu0
      %v3697 = vpop.trf.xlu0
      %v3698 = vpop.trf.xlu0
      %v3699 = vpop.trf.xlu0
      %v3700 = vpop.trf.xlu0
      %v3701 = vpop.trf.xlu0
      %3702 = vxpose.xlu0.b32.start [1/16] %v3623, 128
      %3703 = vxpose.xlu0.b32.cont [2/16] %v3626, 128
      %3704 = vxpose.xlu0.b32.cont [3/16] %v3629, 128
      %3705 = vxpose.xlu0.b32.cont [4/16] %v3632, 128
      %3706 = vxpose.xlu0.b32.cont [5/16] %v3635, 128
      %3707 = vxpose.xlu0.b32.cont [6/16] %v3638, 128
      %3708 = vxpose.xlu0.b32.cont [7/16] %v3641, 128
      %3709 = vxpose.xlu0.b32.cont [8/16] %v3644, 128
      %3710 = vxpose.xlu0.b32.cont [9/16] %v3647, 128
      %3711 = vxpose.xlu0.b32.cont [10/16] %v3650, 128
      %3712 = vxpose.xlu0.b32.cont [11/16] %v3653, 128
      %3713 = vxpose.xlu0.b32.cont [12/16] %v3656, 128
      %3714 = vxpose.xlu0.b32.cont [13/16] %v3659, 128
      %3715 = vxpose.xlu0.b32.cont [14/16] %v3662, 128
      %3716 = vxpose.xlu0.b32.cont [15/16] %v3665, 128
      %3717 = vxpose.xlu0.b32.end [16/16] %v3668, 128
      %v3718 = vpop.trf.xlu0
      %v3719 = vpop.trf.xlu0
      %v3720 = vpop.trf.xlu0
      %v3721 = vpop.trf.xlu0
      %v3722 = vpop.trf.xlu0
      %v3723 = vpop.trf.xlu0
      %v3724 = vpop.trf.xlu0
      %v3725 = vpop.trf.xlu0
      %v3726 = vpop.trf.xlu0
      %v3727 = vpop.trf.xlu0
      %v3728 = vpop.trf.xlu0
      %v3729 = vpop.trf.xlu0
      %v3730 = vpop.trf.xlu0
      %v3731 = vpop.trf.xlu0
      %v3732 = vpop.trf.xlu0
      %v3733 = vpop.trf.xlu0
      %3734 = vst [vmem:[%s260] sm:$0xff] %v3686
      %3735 = vst [vmem:[%s260 + $0x8] sm:$0xff] %v3718
      %3736 = vst [vmem:[%s260 + $0x10] sm:$0x7f] %v3687
      %3737 = vst [vmem:[%s260 + $0x18] sm:$0x7f] %v3719
      %p3738 = scmp.lt.s32.totalorder %s20, 1
      %s3739 = scalar_select %p3738, %s20, 1
      %p3740 = scmp.lt.s32.totalorder %s21, 0
      %s3741 = scalar_select %p3740, %s21, 0
      %s3742 = smul.addr %s3741, 4
      %s3743 = smul.addr %s3739, 4
      %s3744 = sadd.s32 %s3742, %s3743
      %s3745 = smul.addr %s3744, 8
      %s3746 = scalar_lea.vmem %s5, %s3745
      // Predicated region
      $region41: #{tpu_custom_call.1} parent=39 // pred_check
        %p3747 = pneg %p160
      $region42: #{tpu_custom_call.1} parent=39 // pred_check_branch
        %3749 = sbr.rel (%p3747) target = $region44
      $region43: #{tpu_custom_call.1} parent=39 // pred_region
        _
      $region44: #{tpu_custom_call.1} parent=39 // pred_fallthru
        _
    $region40: #{tpu_custom_call.1} parent=5 // pred_fallthru
      _
    %p3750 = scmp.le.s32.totalorder 2, %s11
    // Predicated region
    $region45: #{tpu_custom_call.1} parent=5 // pred_check
      %p3751 = pneg %p3750
    $region46: #{tpu_custom_call.1} parent=5 // pred_check_branch
      %3753 = sbr.rel (%p3751) target = $region48
    $region47: #{tpu_custom_call.1} parent=5 // pred_region
      %s3754 = ssub.s32 %s11, 2
      // Predicated region
      $region49: #{tpu_custom_call.1} parent=47 // pred_check
        %p3755 = pneg %p166
      $region50: #{tpu_custom_call.1} parent=47 // pred_check_branch
        %3757 = sbr.rel (%p3755) target = $region52
      $region51: #{tpu_custom_call.1} parent=47 // pred_region
        %p3758 = scmp.lt.s32.totalorder %s22, 1
        %s3759 = scalar_select %p3758, %s22, 1
        %p3760 = scmp.lt.s32.totalorder %s23, 0
        %s3761 = scalar_select %p3760, %s23, 0
        %s3762 = smul.addr %s3761, 4
        %s3763 = smul.addr %s3759, 4
        %s3764 = sadd.s32 %s3762, %s3763
        %s3765 = smul.addr %s3764, 8
        %s3766 = scalar_lea.vmem %s5, %s3765
      $region52: #{tpu_custom_call.1} parent=47 // pred_fallthru
        _
    $region48: #{tpu_custom_call.1} parent=5 // pred_fallthru
      _
  $region6: #{tpu_custom_call.1} parent=0 // loop_footer
    %s15 = sadd.s32 1, %s11
  $region7: #{tpu_custom_call.1} parent=0 // loop_footer_branch
    %10 = sbr.rel target = $region3
  $region8: #{tpu_custom_call.1} parent=0 // loop_exit
    _

</llo_original>
